<compile_context>
chip_gen: v7x
topology: tpu7x:2x2x1
jax: 0.10.0
libtpu: 0.0.40
codegen_flags: <defaults>
</compile_context>

<pallas_src>
import math
from functools import partial

import jax
import jax.numpy as jnp
from jax.experimental import pallas as pl
from jax.experimental.pallas import tpu as pltpu

EPS = 1e-5  # PyTorch LayerNorm / BatchNorm eps
BF16 = jnp.bfloat16
F32 = jnp.float32


# ----------------------------------------------------------------------------- helpers
def _layernorm(x, g, b):
    mu = jnp.mean(x, axis=-1, keepdims=True)
    var = jnp.mean(jnp.square(x - mu), axis=-1, keepdims=True)
    return (x - mu) * jax.lax.rsqrt(var + EPS) * g + b


def _const_spec(a):
    nd = a.ndim
    return pl.BlockSpec(a.shape, lambda *_: (0,) * nd)


def _swish_mlp(x, g, b, w1, b1, w2, b2, factor):
    """Pre-norm Swish MLP with (half-step) residual — the conformer FeedForward module."""
    xn = _layernorm(x, g, b).astype(BF16)
    h = jnp.dot(xn, w1, preferred_element_type=F32) + b1
    h = h * jax.nn.sigmoid(h)                                         # Swish
    y = jnp.dot(h.astype(BF16), w2, preferred_element_type=F32) + b2
    return x + factor * y


# ----------------------------------------------------------------------------- fused conformer kernel
def _conformer_kernel(x_ref, *refs, num_heads, d_head, kernel_size):
    (f1g, f1b, f1w1, f1b1, f1w2, f1b2,
     ag, ab, wqkv, bqkv, pp, u_row, v_row, wo, bo,
     cg, cb, wpw1, bpw1, dw, bns, bnb, wpw2, bpw2,
     f2g, f2b, f2w1, f2b1, f2w2, f2b2,
     fg, fb, o_ref) = refs

    T, D = x_ref.shape[1], x_ref.shape[2]
    x = x_ref[0]                                                      # (T, D) f32

    # ---- FeedForward module #1 (half-step residual) ----------------------------------
    x1 = _swish_mlp(x, f1g[...], f1b[...], f1w1[...], f1b1[...], f1w2[...], f1b2[...], 0.5)

    # ---- Multi-headed self-attention with relative positional encoding ---------------
    xn = _layernorm(x1, ag[...], ab[...]).astype(BF16)
    # wqkv carries the 1/sqrt(D) score scale on the Q third (folded host-side).
    qkv = jnp.dot(xn, wqkv[...], preferred_element_type=F32) + bqkv[...]   # (T, 3D) f32
    q = qkv[:, :D]
    kb = qkv[:, D:2 * D].astype(BF16)
    vb = qkv[:, 2 * D:].astype(BF16)
    qu = (q + u_row[...]).astype(BF16)                                # content-score query
    qv = (q + v_row[...]).astype(BF16)                                # position-score query
    ppb = pp[...]                                                     # (T+1, D) bf16, row 0 == 0
    dn = (((1,), (1,)), ((), ()))                                     # contract last dims (no transpose)

    ctx_parts = []
    for h in range(num_heads):
        sl = slice(h * d_head, (h + 1) * d_head)
        cs = jax.lax.dot_general(qu[:, sl], kb[:, sl], dn,
                                 preferred_element_type=F32)          # (T, T) content score
        # P is the zero-padded positional score: P[:, 0] = 0, P[:, m] = ps[:, m-1].
        P = jax.lax.dot_general(qv[:, sl], ppb[:, sl], dn,
                                preferred_element_type=F32)           # (T, T+1)
        # Exact Transformer-XL relative shift, fully in VMEM:
        #   shifted[i, j] = P[i, T-i+j]   for j <= i
        #   shifted[i, j] = P[i+1, j-i-1] for j >  i
        # which is the static window Pext[i, T-i : 2T-i] of Pext = [P | roll_up(P)].
        P_up = jnp.concatenate([P[1:], P[:1]], axis=0)                # row-rolled copy
        Pext = jnp.concatenate([P, P_up], axis=1)                     # (T, 2T+2)
        shifted = jnp.concatenate(
            [Pext[i:i + 1, T - i:2 * T - i] for i in range(T)], axis=0)   # (T, T)

        s = cs + shifted                                              # scale already folded in
        m = jnp.max(s, axis=-1, keepdims=True)
        e = jnp.exp(s - m)
        # approx reciprocal uses the EUP slot; ~2^-12 relative error, well inside tolerance.
        attn = e * pl.reciprocal(jnp.sum(e, axis=-1, keepdims=True), approx=True)
        ctx_parts.append(jnp.dot(attn.astype(BF16), vb[:, sl],
                                 preferred_element_type=F32))
    ctx = jnp.concatenate(ctx_parts, axis=1)                          # (T, D) lane-dense

    y = (jnp.dot(ctx.astype(BF16), wo[...], preferred_element_type=F32)
         + bo[...] + x1)                                              # out-proj + residual

    # ---- conformer convolution module (stays in VMEM) ---------------------------------
    xc = _layernorm(y, cg[...], cb[...]).astype(BF16)
    h1 = jnp.dot(xc, wpw1[...], preferred_element_type=F32) + bpw1[...]    # (T, 2D)
    glu = h1[:, :D] * jax.nn.sigmoid(h1[:, D:])                       # GLU
    pad = (kernel_size - 1) // 2
    zpad = jnp.zeros((pad, D), F32)
    gp = jnp.concatenate([zpad, glu, zpad], axis=0)                   # (T + K - 1, D)
    dwv = dw[...]                                                     # (K, D)
    acc = jnp.zeros((T, D), F32)
    for kk in range(kernel_size):                                     # depthwise conv: K shifted FMAs
        acc = acc + gp[kk:kk + T, :] * dwv[kk:kk + 1, :]
    bn = acc * bns[...] + bnb[...]                                    # eval-mode BatchNorm (folded)
    sw = bn * jax.nn.sigmoid(bn)                                      # Swish
    y2 = y + jnp.dot(sw.astype(BF16), wpw2[...], preferred_element_type=F32) + bpw2[...]

    # ---- FeedForward module #2 + final LayerNorm --------------------------------------
    y3 = _swish_mlp(y2, f2g[...], f2b[...], f2w1[...], f2b1[...], f2w2[...], f2b2[...], 0.5)
    o_ref[0] = _layernorm(y3, fg[...], fb[...])


# ----------------------------------------------------------------------------- glue (plain JAX)
def sinusoidal_pe(length, d_model):
    pos = jnp.arange(length, dtype=F32)[:, None]
    div = jnp.exp(jnp.arange(0, d_model, 2, dtype=F32) * -(math.log(10000.0) / d_model))
    pe = jnp.zeros((length, d_model), F32)
    pe = pe.at[:, 0::2].set(jnp.sin(pos * div))
    pe = pe.at[:, 1::2].set(jnp.cos(pos * div))
    return pe


def conformer_block_forward(x, params, num_heads):
    B, T, D = x.shape
    d_head = D // num_heads
    ap, cp = params["attn"], params["conv"]
    f1, f2 = params["ff1"], params["ff2"]
    K = cp["dw_w"].shape[0]
    inv = 1.0 / math.sqrt(D)

    # Host-side prep (tiny, batch-independent): fold 1/sqrt(D) into the Q path, pack Q|K|V,
    # hoist the positional projection pe @ Wp out of the grid and prepend its zero pad row.
    pe = sinusoidal_pe(T, D)
    ppext = jnp.concatenate([jnp.zeros((1, D), F32), pe @ ap["wp"]], axis=0).astype(BF16)
    wqkv = jnp.concatenate([ap["wq"] * inv, ap["wk"], ap["wv"]], axis=1).astype(BF16)
    bqkv = jnp.concatenate([ap["bq"] * inv, ap["bk"], ap["bv"]], axis=1)
    u_row = ap["u_bias"].reshape(1, D) * inv
    v_row = ap["v_bias"].reshape(1, D) * inv

    args = (
        x,
        # FF1
        f1["ln_g"], f1["ln_b"], f1["w1"].astype(BF16), f1["b1"], f1["w2"].astype(BF16), f1["b2"],
        # MHSA
        ap["ln_g"], ap["ln_b"], wqkv, bqkv, ppext, u_row, v_row,
        ap["wo"].astype(BF16), ap["bo"],
        # conv module
        cp["ln_g"], cp["ln_b"], cp["pw1_w"].astype(BF16), cp["pw1_b"],
        cp["dw_w"].reshape(K, D), cp["bn_scale"], cp["bn_shift"],
        cp["pw2_w"].astype(BF16), cp["pw2_b"],
        # FF2
        f2["ln_g"], f2["ln_b"], f2["w1"].astype(BF16), f2["b1"], f2["w2"].astype(BF16), f2["b2"],
        # final LN
        params["ln_g"], params["ln_b"],
    )

    xspec = pl.BlockSpec((1, T, D), lambda b: (b, 0, 0))
    return pl.pallas_call(
        partial(_conformer_kernel, num_heads=num_heads, d_head=d_head, kernel_size=K),
        out_shape=jax.ShapeDtypeStruct((B, T, D), F32),
        grid=(B,),
        in_specs=[xspec] + [_const_spec(a) for a in args[1:]],
        out_specs=xspec,
        compiler_params=pltpu.CompilerParams(
            dimension_semantics=("parallel",),
            vmem_limit_bytes=48 * 1024 * 1024,   # above default scoped limit, below physical on all gens
        ),
    )(*args)


# ----------------------------------------------------------------------------- params
def xavier(key, shape):
    a = math.sqrt(6.0 / (shape[0] + shape[1]))
    return jax.random.uniform(key, shape, F32, -a, a)


def init_params(key, D, H, ff_expand, K):
    dh = D // H
    it = iter(jax.random.split(key, 32))
    nk = lambda: next(it)
    uni = lambda k, s, b: jax.random.uniform(k, s, F32, -b, b)
    ones = lambda s: jnp.ones(s, F32)
    zeros = lambda s: jnp.zeros(s, F32)

    def ff():
        Fdim = D * ff_expand
        return dict(ln_g=ones((1, D)), ln_b=zeros((1, D)),
                    w1=xavier(nk(), (D, Fdim)), b1=zeros((1, Fdim)),
                    w2=xavier(nk(), (Fdim, D)), b2=zeros((1, D)))

    attn = dict(ln_g=ones((1, D)), ln_b=zeros((1, D)),
                wq=xavier(nk(), (D, D)), bq=zeros((1, D)),
                wk=xavier(nk(), (D, D)), bk=zeros((1, D)),
                wv=xavier(nk(), (D, D)), bv=zeros((1, D)),
                wp=xavier(nk(), (D, D)),
                wo=xavier(nk(), (D, D)), bo=zeros((1, D)),
                u_bias=xavier(nk(), (H, dh)), v_bias=xavier(nk(), (H, dh)))

    bn_gamma, bn_beta = ones((1, D)), zeros((1, D))
    run_mean, run_var = zeros((1, D)), ones((1, D))
    scale = bn_gamma * jax.lax.rsqrt(run_var + EPS)
    conv = dict(ln_g=ones((1, D)), ln_b=zeros((1, D)),
                pw1_w=uni(nk(), (D, 2 * D), 1.0 / math.sqrt(D)),
                pw1_b=uni(nk(), (1, 2 * D), 1.0 / math.sqrt(D)),
                dw_w=uni(nk(), (K, 1, D), 1.0 / math.sqrt(K)),
                bn_scale=scale, bn_shift=bn_beta - run_mean * scale,
                pw2_w=uni(nk(), (D, D), 1.0 / math.sqrt(D)),
                pw2_b=uni(nk(), (1, D), 1.0 / math.sqrt(D)))

    return dict(ff1=ff(), ff2=ff(), attn=attn, conv=conv,
                ln_g=ones((1, D)), ln_b=zeros((1, D)))


# ----------------------------------------------------------------------------- pure-JAX reference
def relative_shift(ps):                      # mirrors RelativeMultiHeadAttention._relative_shift
    B, H, T1, T2 = ps.shape
    padded = jnp.concatenate([jnp.zeros((B, H, T1, 1), ps.dtype), ps], axis=-1)
    padded = padded.reshape(B, H, T2 + 1, T1)
    return padded[:, :, 1:].reshape(B, H, T1, T2)


def reference_forward(x, params, H, K):
    B, T, D = x.shape
    dh = D // H

    def ff(x2, pp):
        h = _layernorm(x2, pp["ln_g"], pp["ln_b"]) @ pp["w1"] + pp["b1"]
        h = h * jax.nn.sigmoid(h)
        return x2 + 0.5 * (h @ pp["w2"] + pp["b2"])

    x2 = ff(x.reshape(B * T, D), params["ff1"])
    ap = params["attn"]
    xn = _layernorm(x2, ap["ln_g"], ap["ln_b"])
    pe = sinusoidal_pe(T, D)
    q = (xn @ ap["wq"] + ap["bq"]).reshape(B, T, H, dh)
    k = (xn @ ap["wk"] + ap["bk"]).reshape(B, T, H, dh).transpose(0, 2, 1, 3)
    v = (xn @ ap["wv"] + ap["bv"]).reshape(B, T, H, dh).transpose(0, 2, 1, 3)
    pp = jnp.broadcast_to((pe @ ap["wp"]).reshape(1, T, H, dh), (B, T, H, dh))
    cs = jnp.einsum("bihd,bhjd->bhij", q + ap["u_bias"], k)
    ps = jnp.einsum("bihd,bhjd->bhij", q + ap["v_bias"], pp.transpose(0, 2, 1, 3))
    score = (cs + relative_shift(ps)) / math.sqrt(D)
    attn = jax.nn.softmax(score, -1)
    ctx = jnp.einsum("bhij,bhjd->bhid", attn, v).transpose(0, 2, 1, 3).reshape(B * T, D)
    x2 = ctx @ ap["wo"] + ap["bo"] + x2

    cp = params["conv"]
    x3 = x2.reshape(B, T, D)
    xn = _layernorm(x3, cp["ln_g"], cp["ln_b"])
    h = xn @ cp["pw1_w"] + cp["pw1_b"]
    glu = h[..., :D] * jax.nn.sigmoid(h[..., D:])
    pad = (K - 1) // 2
    gp = jnp.pad(glu, ((0, 0), (pad, pad), (0, 0)))
    dw = sum(gp[:, kk:kk + T, :] * cp["dw_w"][kk] for kk in range(K))
    bn = dw * cp["bn_scale"] + cp["bn_shift"]
    sw = bn * jax.nn.sigmoid(bn)
    x3 = x3 + (sw @ cp["pw2_w"] + cp["pw2_b"])

    x2 = ff(x3.reshape(B * T, D), params["ff2"])
    return _layernorm(x2, params["ln_g"], params["ln_b"]).reshape(B, T, D)


# ----------------------------------------------------------------------------- main
if __name__ == "__main__":
    B, T, D, H, K = 2, 16, 64, 4, 15   # encoder_dim=64, 4 heads, conv_kernel_size=15
    key = jax.random.PRNGKey(0)
    kx, kp = jax.random.split(key)
    x = jax.random.normal(kx, (B, T, D), F32)

    params = init_params(kp, D, H, ff_expand=4, K=K)

    fwd = jax.jit(conformer_block_forward, static_argnums=2)
    out = jax.block_until_ready(fwd(x, params, H))

    ref = reference_forward(x, params, H, K)
    assert out.shape == (B, T, D)
    assert bool(jnp.all(jnp.isfinite(out)))
    max_err = float(jnp.max(jnp.abs(out - ref)))
    assert max_err < 5e-2, f"mismatch vs reference: {max_err}"
    print("KERNEL_OK")
</pallas_src>

<mosaic_0001>
module attributes {stable_mosaic.version = 11 : i64} {
  func.func @_conformer_kernel(%arg0: i32, %arg1: memref<1x16x64xf32, #tpu.memory_space<vmem>>, %arg2: memref<1x64xf32, #tpu.memory_space<vmem>>, %arg3: memref<1x64xf32, #tpu.memory_space<vmem>>, %arg4: memref<64x256xbf16, #tpu.memory_space<vmem>>, %arg5: memref<1x256xf32, #tpu.memory_space<vmem>>, %arg6: memref<256x64xbf16, #tpu.memory_space<vmem>>, %arg7: memref<1x64xf32, #tpu.memory_space<vmem>>, %arg8: memref<1x64xf32, #tpu.memory_space<vmem>>, %arg9: memref<1x64xf32, #tpu.memory_space<vmem>>, %arg10: memref<64x192xbf16, #tpu.memory_space<vmem>>, %arg11: memref<1x192xf32, #tpu.memory_space<vmem>>, %arg12: memref<17x64xbf16, #tpu.memory_space<vmem>>, %arg13: memref<1x64xf32, #tpu.memory_space<vmem>>, %arg14: memref<1x64xf32, #tpu.memory_space<vmem>>, %arg15: memref<64x64xbf16, #tpu.memory_space<vmem>>, %arg16: memref<1x64xf32, #tpu.memory_space<vmem>>, %arg17: memref<1x64xf32, #tpu.memory_space<vmem>>, %arg18: memref<1x64xf32, #tpu.memory_space<vmem>>, %arg19: memref<64x128xbf16, #tpu.memory_space<vmem>>, %arg20: memref<1x128xf32, #tpu.memory_space<vmem>>, %arg21: memref<15x64xf32, #tpu.memory_space<vmem>>, %arg22: memref<1x64xf32, #tpu.memory_space<vmem>>, %arg23: memref<1x64xf32, #tpu.memory_space<vmem>>, %arg24: memref<64x64xbf16, #tpu.memory_space<vmem>>, %arg25: memref<1x64xf32, #tpu.memory_space<vmem>>, %arg26: memref<1x64xf32, #tpu.memory_space<vmem>>, %arg27: memref<1x64xf32, #tpu.memory_space<vmem>>, %arg28: memref<64x256xbf16, #tpu.memory_space<vmem>>, %arg29: memref<1x256xf32, #tpu.memory_space<vmem>>, %arg30: memref<256x64xbf16, #tpu.memory_space<vmem>>, %arg31: memref<1x64xf32, #tpu.memory_space<vmem>>, %arg32: memref<1x64xf32, #tpu.memory_space<vmem>>, %arg33: memref<1x64xf32, #tpu.memory_space<vmem>>, %arg34: memref<1x16x64xf32, #tpu.memory_space<vmem>>) attributes {dimension_semantics = [#tpu.dimension_semantics<parallel>], iteration_bounds = array<i64: 2>, scalar_prefetch = 0 : i64, scratch_operands = 0 : i64, tpu.core_type = #tpu.core_type<tc>, window_params = [{transform_indices = @transform_0, window_bounds = array<i64: 1, 16, 64>}, {pipeline_mode = #tpu.pipeline_mode<synchronous>, transform_indices = @transform_1, window_bounds = array<i64: 1, 64>}, {pipeline_mode = #tpu.pipeline_mode<synchronous>, transform_indices = @transform_2, window_bounds = array<i64: 1, 64>}, {pipeline_mode = #tpu.pipeline_mode<synchronous>, transform_indices = @transform_3, window_bounds = array<i64: 64, 256>}, {pipeline_mode = #tpu.pipeline_mode<synchronous>, transform_indices = @transform_4, window_bounds = array<i64: 1, 256>}, {pipeline_mode = #tpu.pipeline_mode<synchronous>, transform_indices = @transform_5, window_bounds = array<i64: 256, 64>}, {pipeline_mode = #tpu.pipeline_mode<synchronous>, transform_indices = @transform_6, window_bounds = array<i64: 1, 64>}, {pipeline_mode = #tpu.pipeline_mode<synchronous>, transform_indices = @transform_7, window_bounds = array<i64: 1, 64>}, {pipeline_mode = #tpu.pipeline_mode<synchronous>, transform_indices = @transform_8, window_bounds = array<i64: 1, 64>}, {pipeline_mode = #tpu.pipeline_mode<synchronous>, transform_indices = @transform_9, window_bounds = array<i64: 64, 192>}, {pipeline_mode = #tpu.pipeline_mode<synchronous>, transform_indices = @transform_10, window_bounds = array<i64: 1, 192>}, {pipeline_mode = #tpu.pipeline_mode<synchronous>, transform_indices = @transform_11, window_bounds = array<i64: 17, 64>}, {pipeline_mode = #tpu.pipeline_mode<synchronous>, transform_indices = @transform_12, window_bounds = array<i64: 1, 64>}, {pipeline_mode = #tpu.pipeline_mode<synchronous>, transform_indices = @transform_13, window_bounds = array<i64: 1, 64>}, {pipeline_mode = #tpu.pipeline_mode<synchronous>, transform_indices = @transform_14, window_bounds = array<i64: 64, 64>}, {pipeline_mode = #tpu.pipeline_mode<synchronous>, transform_indices = @transform_15, window_bounds = array<i64: 1, 64>}, {pipeline_mode = #tpu.pipeline_mode<synchronous>, transform_indices = @transform_16, window_bounds = array<i64: 1, 64>}, {pipeline_mode = #tpu.pipeline_mode<synchronous>, transform_indices = @transform_17, window_bounds = array<i64: 1, 64>}, {pipeline_mode = #tpu.pipeline_mode<synchronous>, transform_indices = @transform_18, window_bounds = array<i64: 64, 128>}, {pipeline_mode = #tpu.pipeline_mode<synchronous>, transform_indices = @transform_19, window_bounds = array<i64: 1, 128>}, {pipeline_mode = #tpu.pipeline_mode<synchronous>, transform_indices = @transform_20, window_bounds = array<i64: 15, 64>}, {pipeline_mode = #tpu.pipeline_mode<synchronous>, transform_indices = @transform_21, window_bounds = array<i64: 1, 64>}, {pipeline_mode = #tpu.pipeline_mode<synchronous>, transform_indices = @transform_22, window_bounds = array<i64: 1, 64>}, {pipeline_mode = #tpu.pipeline_mode<synchronous>, transform_indices = @transform_23, window_bounds = array<i64: 64, 64>}, {pipeline_mode = #tpu.pipeline_mode<synchronous>, transform_indices = @transform_24, window_bounds = array<i64: 1, 64>}, {pipeline_mode = #tpu.pipeline_mode<synchronous>, transform_indices = @transform_25, window_bounds = array<i64: 1, 64>}, {pipeline_mode = #tpu.pipeline_mode<synchronous>, transform_indices = @transform_26, window_bounds = array<i64: 1, 64>}, {pipeline_mode = #tpu.pipeline_mode<synchronous>, transform_indices = @transform_27, window_bounds = array<i64: 64, 256>}, {pipeline_mode = #tpu.pipeline_mode<synchronous>, transform_indices = @transform_28, window_bounds = array<i64: 1, 256>}, {pipeline_mode = #tpu.pipeline_mode<synchronous>, transform_indices = @transform_29, window_bounds = array<i64: 256, 64>}, {pipeline_mode = #tpu.pipeline_mode<synchronous>, transform_indices = @transform_30, window_bounds = array<i64: 1, 64>}, {pipeline_mode = #tpu.pipeline_mode<synchronous>, transform_indices = @transform_31, window_bounds = array<i64: 1, 64>}, {pipeline_mode = #tpu.pipeline_mode<synchronous>, transform_indices = @transform_32, window_bounds = array<i64: 1, 64>}, {transform_indices = @transform_33, window_bounds = array<i64: 1, 16, 64>}]} {
    %c0 = arith.constant 0 : index
    %c0_0 = arith.constant 0 : index
    %c0_1 = arith.constant 0 : index
    %0 = vector.load %arg1[%c0, %c0_0, %c0_1] : memref<1x16x64xf32, #tpu.memory_space<vmem>>, vector<1x16x64xf32>
    %1 = vector.shape_cast %0 : vector<1x16x64xf32> to vector<16x64xf32>
    %c0_2 = arith.constant 0 : index
    %c0_3 = arith.constant 0 : index
    %2 = vector.load %arg2[%c0_2, %c0_3] : memref<1x64xf32, #tpu.memory_space<vmem>>, vector<1x64xf32>
    %c0_4 = arith.constant 0 : index
    %c0_5 = arith.constant 0 : index
    %3 = vector.load %arg3[%c0_4, %c0_5] : memref<1x64xf32, #tpu.memory_space<vmem>>, vector<1x64xf32>
    %c0_6 = arith.constant 0 : index
    %c0_7 = arith.constant 0 : index
    %4 = vector.load %arg4[%c0_6, %c0_7] : memref<64x256xbf16, #tpu.memory_space<vmem>>, vector<64x256xbf16>
    %c0_8 = arith.constant 0 : index
    %c0_9 = arith.constant 0 : index
    %5 = vector.load %arg5[%c0_8, %c0_9] : memref<1x256xf32, #tpu.memory_space<vmem>>, vector<1x256xf32>
    %c0_10 = arith.constant 0 : index
    %c0_11 = arith.constant 0 : index
    %6 = vector.load %arg6[%c0_10, %c0_11] : memref<256x64xbf16, #tpu.memory_space<vmem>>, vector<256x64xbf16>
    %c0_12 = arith.constant 0 : index
    %c0_13 = arith.constant 0 : index
    %7 = vector.load %arg7[%c0_12, %c0_13] : memref<1x64xf32, #tpu.memory_space<vmem>>, vector<1x64xf32>
    %cst = arith.constant dense<0.000000e+00> : vector<16xf32>
    %8 = vector.multi_reduction <add>, %1, %cst [1] : vector<16x64xf32> to vector<16xf32>
    %9 = vector.shape_cast %8 : vector<16xf32> to vector<16x1xf32>
    %cst_14 = arith.constant 6.400000e+01 : f32
    %10 = vector.broadcast %cst_14 : f32 to vector<16x1xf32>
    %11 = arith.divf %9, %10 : vector<16x1xf32>
    %12 = vector.broadcast %11 : vector<16x1xf32> to vector<16x64xf32>
    %13 = arith.subf %1, %12 : vector<16x64xf32>
    %14 = arith.mulf %13, %13 : vector<16x64xf32>
    %cst_15 = arith.constant dense<0.000000e+00> : vector<16xf32>
    %15 = vector.multi_reduction <add>, %14, %cst_15 [1] : vector<16x64xf32> to vector<16xf32>
    %16 = vector.shape_cast %15 : vector<16xf32> to vector<16x1xf32>
    %cst_16 = arith.constant 6.400000e+01 : f32
    %17 = vector.broadcast %cst_16 : f32 to vector<16x1xf32>
    %18 = arith.divf %16, %17 : vector<16x1xf32>
    %19 = vector.broadcast %11 : vector<16x1xf32> to vector<16x64xf32>
    %20 = arith.subf %1, %19 : vector<16x64xf32>
    %cst_17 = arith.constant 9.99999974E-6 : f32
    %21 = vector.broadcast %cst_17 : f32 to vector<16x1xf32>
    %22 = arith.addf %18, %21 : vector<16x1xf32>
    %23 = math.rsqrt %22 : vector<16x1xf32>
    %24 = vector.broadcast %23 : vector<16x1xf32> to vector<16x64xf32>
    %25 = arith.mulf %20, %24 : vector<16x64xf32>
    %26 = vector.broadcast %2 : vector<1x64xf32> to vector<16x64xf32>
    %27 = arith.mulf %25, %26 : vector<16x64xf32>
    %28 = vector.broadcast %3 : vector<1x64xf32> to vector<16x64xf32>
    %29 = arith.addf %27, %28 : vector<16x64xf32>
    %30 = arith.truncf %29 : vector<16x64xf32> to vector<16x64xbf16>
    %cst_18 = arith.constant dense<0.000000e+00> : vector<16x256xf32>
    %31 = tpu.matmul %30, %4, %cst_18 {dimension_numbers = #tpu.dot_dimension_numbers<[1], [0], [0], [1], [0, 0, 1, 1], [], []>} : vector<16x64xbf16>, vector<64x256xbf16>, vector<16x256xf32> -> vector<16x256xf32>
    %32 = vector.broadcast %5 : vector<1x256xf32> to vector<16x256xf32>
    %33 = arith.addf %31, %32 : vector<16x256xf32>
    %34 = arith.negf %33 : vector<16x256xf32>
    %35 = math.exp %34 : vector<16x256xf32>
    %cst_19 = arith.constant 1.000000e+00 : f32
    %36 = vector.broadcast %cst_19 : f32 to vector<16x256xf32>
    %37 = arith.addf %36, %35 : vector<16x256xf32>
    %38 = arith.divf %36, %37 : vector<16x256xf32>
    %39 = arith.mulf %33, %38 : vector<16x256xf32>
    %40 = arith.truncf %39 : vector<16x256xf32> to vector<16x256xbf16>
    %cst_20 = arith.constant dense<0.000000e+00> : vector<16x64xf32>
    %41 = tpu.matmul %40, %6, %cst_20 {dimension_numbers = #tpu.dot_dimension_numbers<[1], [0], [0], [1], [0, 0, 1, 1], [], []>} : vector<16x256xbf16>, vector<256x64xbf16>, vector<16x64xf32> -> vector<16x64xf32>
    %42 = vector.broadcast %7 : vector<1x64xf32> to vector<16x64xf32>
    %43 = arith.addf %41, %42 : vector<16x64xf32>
    %cst_21 = arith.constant 5.000000e-01 : f32
    %44 = vector.broadcast %cst_21 : f32 to vector<16x64xf32>
    %45 = arith.mulf %44, %43 : vector<16x64xf32>
    %46 = arith.addf %1, %45 : vector<16x64xf32>
    %c0_22 = arith.constant 0 : index
    %c0_23 = arith.constant 0 : index
    %47 = vector.load %arg8[%c0_22, %c0_23] : memref<1x64xf32, #tpu.memory_space<vmem>>, vector<1x64xf32>
    %c0_24 = arith.constant 0 : index
    %c0_25 = arith.constant 0 : index
    %48 = vector.load %arg9[%c0_24, %c0_25] : memref<1x64xf32, #tpu.memory_space<vmem>>, vector<1x64xf32>
    %cst_26 = arith.constant dense<0.000000e+00> : vector<16xf32>
    %49 = vector.multi_reduction <add>, %46, %cst_26 [1] : vector<16x64xf32> to vector<16xf32>
    %50 = vector.shape_cast %49 : vector<16xf32> to vector<16x1xf32>
    %cst_27 = arith.constant 6.400000e+01 : f32
    %51 = vector.broadcast %cst_27 : f32 to vector<16x1xf32>
    %52 = arith.divf %50, %51 : vector<16x1xf32>
    %53 = vector.broadcast %52 : vector<16x1xf32> to vector<16x64xf32>
    %54 = arith.subf %46, %53 : vector<16x64xf32>
    %55 = arith.mulf %54, %54 : vector<16x64xf32>
    %cst_28 = arith.constant dense<0.000000e+00> : vector<16xf32>
    %56 = vector.multi_reduction <add>, %55, %cst_28 [1] : vector<16x64xf32> to vector<16xf32>
    %57 = vector.shape_cast %56 : vector<16xf32> to vector<16x1xf32>
    %cst_29 = arith.constant 6.400000e+01 : f32
    %58 = vector.broadcast %cst_29 : f32 to vector<16x1xf32>
    %59 = arith.divf %57, %58 : vector<16x1xf32>
    %60 = vector.broadcast %52 : vector<16x1xf32> to vector<16x64xf32>
    %61 = arith.subf %46, %60 : vector<16x64xf32>
    %cst_30 = arith.constant 9.99999974E-6 : f32
    %62 = vector.broadcast %cst_30 : f32 to vector<16x1xf32>
    %63 = arith.addf %59, %62 : vector<16x1xf32>
    %64 = math.rsqrt %63 : vector<16x1xf32>
    %65 = vector.broadcast %64 : vector<16x1xf32> to vector<16x64xf32>
    %66 = arith.mulf %61, %65 : vector<16x64xf32>
    %67 = vector.broadcast %47 : vector<1x64xf32> to vector<16x64xf32>
    %68 = arith.mulf %66, %67 : vector<16x64xf32>
    %69 = vector.broadcast %48 : vector<1x64xf32> to vector<16x64xf32>
    %70 = arith.addf %68, %69 : vector<16x64xf32>
    %71 = arith.truncf %70 : vector<16x64xf32> to vector<16x64xbf16>
    %c0_31 = arith.constant 0 : index
    %c0_32 = arith.constant 0 : index
    %72 = vector.load %arg10[%c0_31, %c0_32] : memref<64x192xbf16, #tpu.memory_space<vmem>>, vector<64x192xbf16>
    %cst_33 = arith.constant dense<0.000000e+00> : vector<16x192xf32>
    %73 = tpu.matmul %71, %72, %cst_33 {dimension_numbers = #tpu.dot_dimension_numbers<[1], [0], [0], [1], [0, 0, 1, 1], [], []>} : vector<16x64xbf16>, vector<64x192xbf16>, vector<16x192xf32> -> vector<16x192xf32>
    %c0_34 = arith.constant 0 : index
    %c0_35 = arith.constant 0 : index
    %74 = vector.load %arg11[%c0_34, %c0_35] : memref<1x192xf32, #tpu.memory_space<vmem>>, vector<1x192xf32>
    %75 = vector.broadcast %74 : vector<1x192xf32> to vector<16x192xf32>
    %76 = arith.addf %73, %75 : vector<16x192xf32>
    %77 = vector.extract_strided_slice %76 {offsets = [0, 0], sizes = [16, 64], strides = [1, 1]} : vector<16x192xf32> to vector<16x64xf32>
    %78 = vector.extract_strided_slice %76 {offsets = [0, 64], sizes = [16, 64], strides = [1, 1]} : vector<16x192xf32> to vector<16x64xf32>
    %79 = arith.truncf %78 : vector<16x64xf32> to vector<16x64xbf16>
    %80 = vector.extract_strided_slice %76 {offsets = [0, 128], sizes = [16, 64], strides = [1, 1]} : vector<16x192xf32> to vector<16x64xf32>
    %81 = arith.truncf %80 : vector<16x64xf32> to vector<16x64xbf16>
    %c0_36 = arith.constant 0 : index
    %c0_37 = arith.constant 0 : index
    %82 = vector.load %arg13[%c0_36, %c0_37] : memref<1x64xf32, #tpu.memory_space<vmem>>, vector<1x64xf32>
    %83 = vector.broadcast %82 : vector<1x64xf32> to vector<16x64xf32>
    %84 = arith.addf %77, %83 : vector<16x64xf32>
    %85 = arith.truncf %84 : vector<16x64xf32> to vector<16x64xbf16>
    %c0_38 = arith.constant 0 : index
    %c0_39 = arith.constant 0 : index
    %86 = vector.load %arg14[%c0_38, %c0_39] : memref<1x64xf32, #tpu.memory_space<vmem>>, vector<1x64xf32>
    %87 = vector.broadcast %86 : vector<1x64xf32> to vector<16x64xf32>
    %88 = arith.addf %77, %87 : vector<16x64xf32>
    %89 = arith.truncf %88 : vector<16x64xf32> to vector<16x64xbf16>
    %c0_40 = arith.constant 0 : index
    %c0_41 = arith.constant 0 : index
    %90 = vector.load %arg12[%c0_40, %c0_41] : memref<17x64xbf16, #tpu.memory_space<vmem>>, vector<17x64xbf16>
    %91 = vector.extract_strided_slice %85 {offsets = [0, 0], sizes = [16, 16], strides = [1, 1]} : vector<16x64xbf16> to vector<16x16xbf16>
    %92 = vector.extract_strided_slice %79 {offsets = [0, 0], sizes = [16, 16], strides = [1, 1]} : vector<16x64xbf16> to vector<16x16xbf16>
    %cst_42 = arith.constant dense<0.000000e+00> : vector<16x16xf32>
    %93 = tpu.matmul %91, %92, %cst_42 {dimension_numbers = #tpu.dot_dimension_numbers<[1], [1], [0], [0], [0, 0, 1, 0], [], []>} : vector<16x16xbf16>, vector<16x16xbf16>, vector<16x16xf32> -> vector<16x16xf32>
    %94 = vector.extract_strided_slice %89 {offsets = [0, 0], sizes = [16, 16], strides = [1, 1]} : vector<16x64xbf16> to vector<16x16xbf16>
    %95 = vector.extract_strided_slice %90 {offsets = [0, 0], sizes = [17, 16], strides = [1, 1]} : vector<17x64xbf16> to vector<17x16xbf16>
    %cst_43 = arith.constant dense<0.000000e+00> : vector<16x17xf32>
    %96 = tpu.matmul %94, %95, %cst_43 {dimension_numbers = #tpu.dot_dimension_numbers<[1], [1], [0], [0], [0, 0, 1, 0], [], []>} : vector<16x16xbf16>, vector<17x16xbf16>, vector<16x17xf32> -> vector<16x17xf32>
    %97 = vector.extract_strided_slice %96 {offsets = [1, 0], sizes = [15, 17], strides = [1, 1]} : vector<16x17xf32> to vector<15x17xf32>
    %98 = vector.extract_strided_slice %96 {offsets = [0, 0], sizes = [1, 17], strides = [1, 1]} : vector<16x17xf32> to vector<1x17xf32>
    %99 = tpu.concatenate %97, %98 in 0 : vector<15x17xf32>, vector<1x17xf32> -> vector<16x17xf32>
    %100 = tpu.concatenate %96, %99 in 1 : vector<16x17xf32>, vector<16x17xf32> -> vector<16x34xf32>
    %101 = vector.extract_strided_slice %100 {offsets = [0, 16], sizes = [1, 16], strides = [1, 1]} : vector<16x34xf32> to vector<1x16xf32>
    %102 = vector.extract_strided_slice %100 {offsets = [1, 15], sizes = [1, 16], strides = [1, 1]} : vector<16x34xf32> to vector<1x16xf32>
    %103 = vector.extract_strided_slice %100 {offsets = [2, 14], sizes = [1, 16], strides = [1, 1]} : vector<16x34xf32> to vector<1x16xf32>
    %104 = vector.extract_strided_slice %100 {offsets = [3, 13], sizes = [1, 16], strides = [1, 1]} : vector<16x34xf32> to vector<1x16xf32>
    %105 = vector.extract_strided_slice %100 {offsets = [4, 12], sizes = [1, 16], strides = [1, 1]} : vector<16x34xf32> to vector<1x16xf32>
    %106 = vector.extract_strided_slice %100 {offsets = [5, 11], sizes = [1, 16], strides = [1, 1]} : vector<16x34xf32> to vector<1x16xf32>
    %107 = vector.extract_strided_slice %100 {offsets = [6, 10], sizes = [1, 16], strides = [1, 1]} : vector<16x34xf32> to vector<1x16xf32>
    %108 = vector.extract_strided_slice %100 {offsets = [7, 9], sizes = [1, 16], strides = [1, 1]} : vector<16x34xf32> to vector<1x16xf32>
    %109 = vector.extract_strided_slice %100 {offsets = [8, 8], sizes = [1, 16], strides = [1, 1]} : vector<16x34xf32> to vector<1x16xf32>
    %110 = vector.extract_strided_slice %100 {offsets = [9, 7], sizes = [1, 16], strides = [1, 1]} : vector<16x34xf32> to vector<1x16xf32>
    %111 = vector.extract_strided_slice %100 {offsets = [10, 6], sizes = [1, 16], strides = [1, 1]} : vector<16x34xf32> to vector<1x16xf32>
    %112 = vector.extract_strided_slice %100 {offsets = [11, 5], sizes = [1, 16], strides = [1, 1]} : vector<16x34xf32> to vector<1x16xf32>
    %113 = vector.extract_strided_slice %100 {offsets = [12, 4], sizes = [1, 16], strides = [1, 1]} : vector<16x34xf32> to vector<1x16xf32>
    %114 = vector.extract_strided_slice %100 {offsets = [13, 3], sizes = [1, 16], strides = [1, 1]} : vector<16x34xf32> to vector<1x16xf32>
    %115 = vector.extract_strided_slice %100 {offsets = [14, 2], sizes = [1, 16], strides = [1, 1]} : vector<16x34xf32> to vector<1x16xf32>
    %116 = vector.extract_strided_slice %100 {offsets = [15, 1], sizes = [1, 16], strides = [1, 1]} : vector<16x34xf32> to vector<1x16xf32>
    %117 = tpu.concatenate %101, %102, %103, %104, %105, %106, %107, %108, %109, %110, %111, %112, %113, %114, %115, %116 in 0 : vector<1x16xf32>, vector<1x16xf32>, vector<1x16xf32>, vector<1x16xf32>, vector<1x16xf32>, vector<1x16xf32>, vector<1x16xf32>, vector<1x16xf32>, vector<1x16xf32>, vector<1x16xf32>, vector<1x16xf32>, vector<1x16xf32>, vector<1x16xf32>, vector<1x16xf32>, vector<1x16xf32>, vector<1x16xf32> -> vector<16x16xf32>
    %118 = arith.addf %93, %117 : vector<16x16xf32>
    %cst_44 = arith.constant dense<0xFF800000> : vector<16xf32>
    %119 = vector.multi_reduction <maximumf>, %118, %cst_44 [1] : vector<16x16xf32> to vector<16xf32>
    %120 = vector.shape_cast %119 : vector<16xf32> to vector<16x1xf32>
    %121 = vector.broadcast %120 : vector<16x1xf32> to vector<16x16xf32>
    %122 = arith.subf %118, %121 : vector<16x16xf32>
    %123 = math.exp %122 : vector<16x16xf32>
    %cst_45 = arith.constant dense<0.000000e+00> : vector<16xf32>
    %124 = vector.multi_reduction <add>, %123, %cst_45 [1] : vector<16x16xf32> to vector<16xf32>
    %125 = vector.shape_cast %124 : vector<16xf32> to vector<16x1xf32>
    %126 = tpu.reciprocal %125 {approx = true} : vector<16x1xf32> -> vector<16x1xf32>
    %127 = vector.broadcast %126 : vector<16x1xf32> to vector<16x16xf32>
    %128 = arith.mulf %123, %127 : vector<16x16xf32>
    %129 = arith.truncf %128 : vector<16x16xf32> to vector<16x16xbf16>
    %130 = vector.extract_strided_slice %81 {offsets = [0, 0], sizes = [16, 16], strides = [1, 1]} : vector<16x64xbf16> to vector<16x16xbf16>
    %cst_46 = arith.constant dense<0.000000e+00> : vector<16x16xf32>
    %131 = tpu.matmul %129, %130, %cst_46 {dimension_numbers = #tpu.dot_dimension_numbers<[1], [0], [0], [1], [0, 0, 1, 1], [], []>} : vector<16x16xbf16>, vector<16x16xbf16>, vector<16x16xf32> -> vector<16x16xf32>
    %132 = vector.extract_strided_slice %85 {offsets = [0, 16], sizes = [16, 16], strides = [1, 1]} : vector<16x64xbf16> to vector<16x16xbf16>
    %133 = vector.extract_strided_slice %79 {offsets = [0, 16], sizes = [16, 16], strides = [1, 1]} : vector<16x64xbf16> to vector<16x16xbf16>
    %cst_47 = arith.constant dense<0.000000e+00> : vector<16x16xf32>
    %134 = tpu.matmul %132, %133, %cst_47 {dimension_numbers = #tpu.dot_dimension_numbers<[1], [1], [0], [0], [0, 0, 1, 0], [], []>} : vector<16x16xbf16>, vector<16x16xbf16>, vector<16x16xf32> -> vector<16x16xf32>
    %135 = vector.extract_strided_slice %89 {offsets = [0, 16], sizes = [16, 16], strides = [1, 1]} : vector<16x64xbf16> to vector<16x16xbf16>
    %136 = vector.extract_strided_slice %90 {offsets = [0, 16], sizes = [17, 16], strides = [1, 1]} : vector<17x64xbf16> to vector<17x16xbf16>
    %cst_48 = arith.constant dense<0.000000e+00> : vector<16x17xf32>
    %137 = tpu.matmul %135, %136, %cst_48 {dimension_numbers = #tpu.dot_dimension_numbers<[1], [1], [0], [0], [0, 0, 1, 0], [], []>} : vector<16x16xbf16>, vector<17x16xbf16>, vector<16x17xf32> -> vector<16x17xf32>
    %138 = vector.extract_strided_slice %137 {offsets = [1, 0], sizes = [15, 17], strides = [1, 1]} : vector<16x17xf32> to vector<15x17xf32>
    %139 = vector.extract_strided_slice %137 {offsets = [0, 0], sizes = [1, 17], strides = [1, 1]} : vector<16x17xf32> to vector<1x17xf32>
    %140 = tpu.concatenate %138, %139 in 0 : vector<15x17xf32>, vector<1x17xf32> -> vector<16x17xf32>
    %141 = tpu.concatenate %137, %140 in 1 : vector<16x17xf32>, vector<16x17xf32> -> vector<16x34xf32>
    %142 = vector.extract_strided_slice %141 {offsets = [0, 16], sizes = [1, 16], strides = [1, 1]} : vector<16x34xf32> to vector<1x16xf32>
    %143 = vector.extract_strided_slice %141 {offsets = [1, 15], sizes = [1, 16], strides = [1, 1]} : vector<16x34xf32> to vector<1x16xf32>
    %144 = vector.extract_strided_slice %141 {offsets = [2, 14], sizes = [1, 16], strides = [1, 1]} : vector<16x34xf32> to vector<1x16xf32>
    %145 = vector.extract_strided_slice %141 {offsets = [3, 13], sizes = [1, 16], strides = [1, 1]} : vector<16x34xf32> to vector<1x16xf32>
    %146 = vector.extract_strided_slice %141 {offsets = [4, 12], sizes = [1, 16], strides = [1, 1]} : vector<16x34xf32> to vector<1x16xf32>
    %147 = vector.extract_strided_slice %141 {offsets = [5, 11], sizes = [1, 16], strides = [1, 1]} : vector<16x34xf32> to vector<1x16xf32>
    %148 = vector.extract_strided_slice %141 {offsets = [6, 10], sizes = [1, 16], strides = [1, 1]} : vector<16x34xf32> to vector<1x16xf32>
    %149 = vector.extract_strided_slice %141 {offsets = [7, 9], sizes = [1, 16], strides = [1, 1]} : vector<16x34xf32> to vector<1x16xf32>
    %150 = vector.extract_strided_slice %141 {offsets = [8, 8], sizes = [1, 16], strides = [1, 1]} : vector<16x34xf32> to vector<1x16xf32>
    %151 = vector.extract_strided_slice %141 {offsets = [9, 7], sizes = [1, 16], strides = [1, 1]} : vector<16x34xf32> to vector<1x16xf32>
    %152 = vector.extract_strided_slice %141 {offsets = [10, 6], sizes = [1, 16], strides = [1, 1]} : vector<16x34xf32> to vector<1x16xf32>
    %153 = vector.extract_strided_slice %141 {offsets = [11, 5], sizes = [1, 16], strides = [1, 1]} : vector<16x34xf32> to vector<1x16xf32>
    %154 = vector.extract_strided_slice %141 {offsets = [12, 4], sizes = [1, 16], strides = [1, 1]} : vector<16x34xf32> to vector<1x16xf32>
    %155 = vector.extract_strided_slice %141 {offsets = [13, 3], sizes = [1, 16], strides = [1, 1]} : vector<16x34xf32> to vector<1x16xf32>
    %156 = vector.extract_strided_slice %141 {offsets = [14, 2], sizes = [1, 16], strides = [1, 1]} : vector<16x34xf32> to vector<1x16xf32>
    %157 = vector.extract_strided_slice %141 {offsets = [15, 1], sizes = [1, 16], strides = [1, 1]} : vector<16x34xf32> to vector<1x16xf32>
    %158 = tpu.concatenate %142, %143, %144, %145, %146, %147, %148, %149, %150, %151, %152, %153, %154, %155, %156, %157 in 0 : vector<1x16xf32>, vector<1x16xf32>, vector<1x16xf32>, vector<1x16xf32>, vector<1x16xf32>, vector<1x16xf32>, vector<1x16xf32>, vector<1x16xf32>, vector<1x16xf32>, vector<1x16xf32>, vector<1x16xf32>, vector<1x16xf32>, vector<1x16xf32>, vector<1x16xf32>, vector<1x16xf32>, vector<1x16xf32> -> vector<16x16xf32>
    %159 = arith.addf %134, %158 : vector<16x16xf32>
    %cst_49 = arith.constant dense<0xFF800000> : vector<16xf32>
    %160 = vector.multi_reduction <maximumf>, %159, %cst_49 [1] : vector<16x16xf32> to vector<16xf32>
    %161 = vector.shape_cast %160 : vector<16xf32> to vector<16x1xf32>
    %162 = vector.broadcast %161 : vector<16x1xf32> to vector<16x16xf32>
    %163 = arith.subf %159, %162 : vector<16x16xf32>
    %164 = math.exp %163 : vector<16x16xf32>
    %cst_50 = arith.constant dense<0.000000e+00> : vector<16xf32>
    %165 = vector.multi_reduction <add>, %164, %cst_50 [1] : vector<16x16xf32> to vector<16xf32>
    %166 = vector.shape_cast %165 : vector<16xf32> to vector<16x1xf32>
    %167 = tpu.reciprocal %166 {approx = true} : vector<16x1xf32> -> vector<16x1xf32>
    %168 = vector.broadcast %167 : vector<16x1xf32> to vector<16x16xf32>
    %169 = arith.mulf %164, %168 : vector<16x16xf32>
    %170 = arith.truncf %169 : vector<16x16xf32> to vector<16x16xbf16>
    %171 = vector.extract_strided_slice %81 {offsets = [0, 16], sizes = [16, 16], strides = [1, 1]} : vector<16x64xbf16> to vector<16x16xbf16>
    %cst_51 = arith.constant dense<0.000000e+00> : vector<16x16xf32>
    %172 = tpu.matmul %170, %171, %cst_51 {dimension_numbers = #tpu.dot_dimension_numbers<[1], [0], [0], [1], [0, 0, 1, 1], [], []>} : vector<16x16xbf16>, vector<16x16xbf16>, vector<16x16xf32> -> vector<16x16xf32>
    %173 = vector.extract_strided_slice %85 {offsets = [0, 32], sizes = [16, 16], strides = [1, 1]} : vector<16x64xbf16> to vector<16x16xbf16>
    %174 = vector.extract_strided_slice %79 {offsets = [0, 32], sizes = [16, 16], strides = [1, 1]} : vector<16x64xbf16> to vector<16x16xbf16>
    %cst_52 = arith.constant dense<0.000000e+00> : vector<16x16xf32>
    %175 = tpu.matmul %173, %174, %cst_52 {dimension_numbers = #tpu.dot_dimension_numbers<[1], [1], [0], [0], [0, 0, 1, 0], [], []>} : vector<16x16xbf16>, vector<16x16xbf16>, vector<16x16xf32> -> vector<16x16xf32>
    %176 = vector.extract_strided_slice %89 {offsets = [0, 32], sizes = [16, 16], strides = [1, 1]} : vector<16x64xbf16> to vector<16x16xbf16>
    %177 = vector.extract_strided_slice %90 {offsets = [0, 32], sizes = [17, 16], strides = [1, 1]} : vector<17x64xbf16> to vector<17x16xbf16>
    %cst_53 = arith.constant dense<0.000000e+00> : vector<16x17xf32>
    %178 = tpu.matmul %176, %177, %cst_53 {dimension_numbers = #tpu.dot_dimension_numbers<[1], [1], [0], [0], [0, 0, 1, 0], [], []>} : vector<16x16xbf16>, vector<17x16xbf16>, vector<16x17xf32> -> vector<16x17xf32>
    %179 = vector.extract_strided_slice %178 {offsets = [1, 0], sizes = [15, 17], strides = [1, 1]} : vector<16x17xf32> to vector<15x17xf32>
    %180 = vector.extract_strided_slice %178 {offsets = [0, 0], sizes = [1, 17], strides = [1, 1]} : vector<16x17xf32> to vector<1x17xf32>
    %181 = tpu.concatenate %179, %180 in 0 : vector<15x17xf32>, vector<1x17xf32> -> vector<16x17xf32>
    %182 = tpu.concatenate %178, %181 in 1 : vector<16x17xf32>, vector<16x17xf32> -> vector<16x34xf32>
    %183 = vector.extract_strided_slice %182 {offsets = [0, 16], sizes = [1, 16], strides = [1, 1]} : vector<16x34xf32> to vector<1x16xf32>
    %184 = vector.extract_strided_slice %182 {offsets = [1, 15], sizes = [1, 16], strides = [1, 1]} : vector<16x34xf32> to vector<1x16xf32>
    %185 = vector.extract_strided_slice %182 {offsets = [2, 14], sizes = [1, 16], strides = [1, 1]} : vector<16x34xf32> to vector<1x16xf32>
    %186 = vector.extract_strided_slice %182 {offsets = [3, 13], sizes = [1, 16], strides = [1, 1]} : vector<16x34xf32> to vector<1x16xf32>
    %187 = vector.extract_strided_slice %182 {offsets = [4, 12], sizes = [1, 16], strides = [1, 1]} : vector<16x34xf32> to vector<1x16xf32>
    %188 = vector.extract_strided_slice %182 {offsets = [5, 11], sizes = [1, 16], strides = [1, 1]} : vector<16x34xf32> to vector<1x16xf32>
    %189 = vector.extract_strided_slice %182 {offsets = [6, 10], sizes = [1, 16], strides = [1, 1]} : vector<16x34xf32> to vector<1x16xf32>
    %190 = vector.extract_strided_slice %182 {offsets = [7, 9], sizes = [1, 16], strides = [1, 1]} : vector<16x34xf32> to vector<1x16xf32>
    %191 = vector.extract_strided_slice %182 {offsets = [8, 8], sizes = [1, 16], strides = [1, 1]} : vector<16x34xf32> to vector<1x16xf32>
    %192 = vector.extract_strided_slice %182 {offsets = [9, 7], sizes = [1, 16], strides = [1, 1]} : vector<16x34xf32> to vector<1x16xf32>
    %193 = vector.extract_strided_slice %182 {offsets = [10, 6], sizes = [1, 16], strides = [1, 1]} : vector<16x34xf32> to vector<1x16xf32>
    %194 = vector.extract_strided_slice %182 {offsets = [11, 5], sizes = [1, 16], strides = [1, 1]} : vector<16x34xf32> to vector<1x16xf32>
    %195 = vector.extract_strided_slice %182 {offsets = [12, 4], sizes = [1, 16], strides = [1, 1]} : vector<16x34xf32> to vector<1x16xf32>
    %196 = vector.extract_strided_slice %182 {offsets = [13, 3], sizes = [1, 16], strides = [1, 1]} : vector<16x34xf32> to vector<1x16xf32>
    %197 = vector.extract_strided_slice %182 {offsets = [14, 2], sizes = [1, 16], strides = [1, 1]} : vector<16x34xf32> to vector<1x16xf32>
    %198 = vector.extract_strided_slice %182 {offsets = [15, 1], sizes = [1, 16], strides = [1, 1]} : vector<16x34xf32> to vector<1x16xf32>
    %199 = tpu.concatenate %183, %184, %185, %186, %187, %188, %189, %190, %191, %192, %193, %194, %195, %196, %197, %198 in 0 : vector<1x16xf32>, vector<1x16xf32>, vector<1x16xf32>, vector<1x16xf32>, vector<1x16xf32>, vector<1x16xf32>, vector<1x16xf32>, vector<1x16xf32>, vector<1x16xf32>, vector<1x16xf32>, vector<1x16xf32>, vector<1x16xf32>, vector<1x16xf32>, vector<1x16xf32>, vector<1x16xf32>, vector<1x16xf32> -> vector<16x16xf32>
    %200 = arith.addf %175, %199 : vector<16x16xf32>
    %cst_54 = arith.constant dense<0xFF800000> : vector<16xf32>
    %201 = vector.multi_reduction <maximumf>, %200, %cst_54 [1] : vector<16x16xf32> to vector<16xf32>
    %202 = vector.shape_cast %201 : vector<16xf32> to vector<16x1xf32>
    %203 = vector.broadcast %202 : vector<16x1xf32> to vector<16x16xf32>
    %204 = arith.subf %200, %203 : vector<16x16xf32>
    %205 = math.exp %204 : vector<16x16xf32>
    %cst_55 = arith.constant dense<0.000000e+00> : vector<16xf32>
    %206 = vector.multi_reduction <add>, %205, %cst_55 [1] : vector<16x16xf32> to vector<16xf32>
    %207 = vector.shape_cast %206 : vector<16xf32> to vector<16x1xf32>
    %208 = tpu.reciprocal %207 {approx = true} : vector<16x1xf32> -> vector<16x1xf32>
    %209 = vector.broadcast %208 : vector<16x1xf32> to vector<16x16xf32>
    %210 = arith.mulf %205, %209 : vector<16x16xf32>
    %211 = arith.truncf %210 : vector<16x16xf32> to vector<16x16xbf16>
    %212 = vector.extract_strided_slice %81 {offsets = [0, 32], sizes = [16, 16], strides = [1, 1]} : vector<16x64xbf16> to vector<16x16xbf16>
    %cst_56 = arith.constant dense<0.000000e+00> : vector<16x16xf32>
    %213 = tpu.matmul %211, %212, %cst_56 {dimension_numbers = #tpu.dot_dimension_numbers<[1], [0], [0], [1], [0, 0, 1, 1], [], []>} : vector<16x16xbf16>, vector<16x16xbf16>, vector<16x16xf32> -> vector<16x16xf32>
    %214 = vector.extract_strided_slice %85 {offsets = [0, 48], sizes = [16, 16], strides = [1, 1]} : vector<16x64xbf16> to vector<16x16xbf16>
    %215 = vector.extract_strided_slice %79 {offsets = [0, 48], sizes = [16, 16], strides = [1, 1]} : vector<16x64xbf16> to vector<16x16xbf16>
    %cst_57 = arith.constant dense<0.000000e+00> : vector<16x16xf32>
    %216 = tpu.matmul %214, %215, %cst_57 {dimension_numbers = #tpu.dot_dimension_numbers<[1], [1], [0], [0], [0, 0, 1, 0], [], []>} : vector<16x16xbf16>, vector<16x16xbf16>, vector<16x16xf32> -> vector<16x16xf32>
    %217 = vector.extract_strided_slice %89 {offsets = [0, 48], sizes = [16, 16], strides = [1, 1]} : vector<16x64xbf16> to vector<16x16xbf16>
    %218 = vector.extract_strided_slice %90 {offsets = [0, 48], sizes = [17, 16], strides = [1, 1]} : vector<17x64xbf16> to vector<17x16xbf16>
    %cst_58 = arith.constant dense<0.000000e+00> : vector<16x17xf32>
    %219 = tpu.matmul %217, %218, %cst_58 {dimension_numbers = #tpu.dot_dimension_numbers<[1], [1], [0], [0], [0, 0, 1, 0], [], []>} : vector<16x16xbf16>, vector<17x16xbf16>, vector<16x17xf32> -> vector<16x17xf32>
    %220 = vector.extract_strided_slice %219 {offsets = [1, 0], sizes = [15, 17], strides = [1, 1]} : vector<16x17xf32> to vector<15x17xf32>
    %221 = vector.extract_strided_slice %219 {offsets = [0, 0], sizes = [1, 17], strides = [1, 1]} : vector<16x17xf32> to vector<1x17xf32>
    %222 = tpu.concatenate %220, %221 in 0 : vector<15x17xf32>, vector<1x17xf32> -> vector<16x17xf32>
    %223 = tpu.concatenate %219, %222 in 1 : vector<16x17xf32>, vector<16x17xf32> -> vector<16x34xf32>
    %224 = vector.extract_strided_slice %223 {offsets = [0, 16], sizes = [1, 16], strides = [1, 1]} : vector<16x34xf32> to vector<1x16xf32>
    %225 = vector.extract_strided_slice %223 {offsets = [1, 15], sizes = [1, 16], strides = [1, 1]} : vector<16x34xf32> to vector<1x16xf32>
    %226 = vector.extract_strided_slice %223 {offsets = [2, 14], sizes = [1, 16], strides = [1, 1]} : vector<16x34xf32> to vector<1x16xf32>
    %227 = vector.extract_strided_slice %223 {offsets = [3, 13], sizes = [1, 16], strides = [1, 1]} : vector<16x34xf32> to vector<1x16xf32>
    %228 = vector.extract_strided_slice %223 {offsets = [4, 12], sizes = [1, 16], strides = [1, 1]} : vector<16x34xf32> to vector<1x16xf32>
    %229 = vector.extract_strided_slice %223 {offsets = [5, 11], sizes = [1, 16], strides = [1, 1]} : vector<16x34xf32> to vector<1x16xf32>
    %230 = vector.extract_strided_slice %223 {offsets = [6, 10], sizes = [1, 16], strides = [1, 1]} : vector<16x34xf32> to vector<1x16xf32>
    %231 = vector.extract_strided_slice %223 {offsets = [7, 9], sizes = [1, 16], strides = [1, 1]} : vector<16x34xf32> to vector<1x16xf32>
    %232 = vector.extract_strided_slice %223 {offsets = [8, 8], sizes = [1, 16], strides = [1, 1]} : vector<16x34xf32> to vector<1x16xf32>
    %233 = vector.extract_strided_slice %223 {offsets = [9, 7], sizes = [1, 16], strides = [1, 1]} : vector<16x34xf32> to vector<1x16xf32>
    %234 = vector.extract_strided_slice %223 {offsets = [10, 6], sizes = [1, 16], strides = [1, 1]} : vector<16x34xf32> to vector<1x16xf32>
    %235 = vector.extract_strided_slice %223 {offsets = [11, 5], sizes = [1, 16], strides = [1, 1]} : vector<16x34xf32> to vector<1x16xf32>
    %236 = vector.extract_strided_slice %223 {offsets = [12, 4], sizes = [1, 16], strides = [1, 1]} : vector<16x34xf32> to vector<1x16xf32>
    %237 = vector.extract_strided_slice %223 {offsets = [13, 3], sizes = [1, 16], strides = [1, 1]} : vector<16x34xf32> to vector<1x16xf32>
    %238 = vector.extract_strided_slice %223 {offsets = [14, 2], sizes = [1, 16], strides = [1, 1]} : vector<16x34xf32> to vector<1x16xf32>
    %239 = vector.extract_strided_slice %223 {offsets = [15, 1], sizes = [1, 16], strides = [1, 1]} : vector<16x34xf32> to vector<1x16xf32>
    %240 = tpu.concatenate %224, %225, %226, %227, %228, %229, %230, %231, %232, %233, %234, %235, %236, %237, %238, %239 in 0 : vector<1x16xf32>, vector<1x16xf32>, vector<1x16xf32>, vector<1x16xf32>, vector<1x16xf32>, vector<1x16xf32>, vector<1x16xf32>, vector<1x16xf32>, vector<1x16xf32>, vector<1x16xf32>, vector<1x16xf32>, vector<1x16xf32>, vector<1x16xf32>, vector<1x16xf32>, vector<1x16xf32>, vector<1x16xf32> -> vector<16x16xf32>
    %241 = arith.addf %216, %240 : vector<16x16xf32>
    %cst_59 = arith.constant dense<0xFF800000> : vector<16xf32>
    %242 = vector.multi_reduction <maximumf>, %241, %cst_59 [1] : vector<16x16xf32> to vector<16xf32>
    %243 = vector.shape_cast %242 : vector<16xf32> to vector<16x1xf32>
    %244 = vector.broadcast %243 : vector<16x1xf32> to vector<16x16xf32>
    %245 = arith.subf %241, %244 : vector<16x16xf32>
    %246 = math.exp %245 : vector<16x16xf32>
    %cst_60 = arith.constant dense<0.000000e+00> : vector<16xf32>
    %247 = vector.multi_reduction <add>, %246, %cst_60 [1] : vector<16x16xf32> to vector<16xf32>
    %248 = vector.shape_cast %247 : vector<16xf32> to vector<16x1xf32>
    %249 = tpu.reciprocal %248 {approx = true} : vector<16x1xf32> -> vector<16x1xf32>
    %250 = vector.broadcast %249 : vector<16x1xf32> to vector<16x16xf32>
    %251 = arith.mulf %246, %250 : vector<16x16xf32>
    %252 = arith.truncf %251 : vector<16x16xf32> to vector<16x16xbf16>
    %253 = vector.extract_strided_slice %81 {offsets = [0, 48], sizes = [16, 16], strides = [1, 1]} : vector<16x64xbf16> to vector<16x16xbf16>
    %cst_61 = arith.constant dense<0.000000e+00> : vector<16x16xf32>
    %254 = tpu.matmul %252, %253, %cst_61 {dimension_numbers = #tpu.dot_dimension_numbers<[1], [0], [0], [1], [0, 0, 1, 1], [], []>} : vector<16x16xbf16>, vector<16x16xbf16>, vector<16x16xf32> -> vector<16x16xf32>
    %255 = tpu.concatenate %131, %172, %213, %254 in 1 : vector<16x16xf32>, vector<16x16xf32>, vector<16x16xf32>, vector<16x16xf32> -> vector<16x64xf32>
    %256 = arith.truncf %255 : vector<16x64xf32> to vector<16x64xbf16>
    %c0_62 = arith.constant 0 : index
    %c0_63 = arith.constant 0 : index
    %257 = vector.load %arg15[%c0_62, %c0_63] : memref<64x64xbf16, #tpu.memory_space<vmem>>, vector<64x64xbf16>
    %cst_64 = arith.constant dense<0.000000e+00> : vector<16x64xf32>
    %258 = tpu.matmul %256, %257, %cst_64 {dimension_numbers = #tpu.dot_dimension_numbers<[1], [0], [0], [1], [0, 0, 1, 1], [], []>} : vector<16x64xbf16>, vector<64x64xbf16>, vector<16x64xf32> -> vector<16x64xf32>
    %c0_65 = arith.constant 0 : index
    %c0_66 = arith.constant 0 : index
    %259 = vector.load %arg16[%c0_65, %c0_66] : memref<1x64xf32, #tpu.memory_space<vmem>>, vector<1x64xf32>
    %260 = vector.broadcast %259 : vector<1x64xf32> to vector<16x64xf32>
    %261 = arith.addf %258, %260 : vector<16x64xf32>
    %262 = arith.addf %261, %46 : vector<16x64xf32>
    %c0_67 = arith.constant 0 : index
    %c0_68 = arith.constant 0 : index
    %263 = vector.load %arg17[%c0_67, %c0_68] : memref<1x64xf32, #tpu.memory_space<vmem>>, vector<1x64xf32>
    %c0_69 = arith.constant 0 : index
    %c0_70 = arith.constant 0 : index
    %264 = vector.load %arg18[%c0_69, %c0_70] : memref<1x64xf32, #tpu.memory_space<vmem>>, vector<1x64xf32>
    %cst_71 = arith.constant dense<0.000000e+00> : vector<16xf32>
    %265 = vector.multi_reduction <add>, %262, %cst_71 [1] : vector<16x64xf32> to vector<16xf32>
    %266 = vector.shape_cast %265 : vector<16xf32> to vector<16x1xf32>
    %cst_72 = arith.constant 6.400000e+01 : f32
    %267 = vector.broadcast %cst_72 : f32 to vector<16x1xf32>
    %268 = arith.divf %266, %267 : vector<16x1xf32>
    %269 = vector.broadcast %268 : vector<16x1xf32> to vector<16x64xf32>
    %270 = arith.subf %262, %269 : vector<16x64xf32>
    %271 = arith.mulf %270, %270 : vector<16x64xf32>
    %cst_73 = arith.constant dense<0.000000e+00> : vector<16xf32>
    %272 = vector.multi_reduction <add>, %271, %cst_73 [1] : vector<16x64xf32> to vector<16xf32>
    %273 = vector.shape_cast %272 : vector<16xf32> to vector<16x1xf32>
    %cst_74 = arith.constant 6.400000e+01 : f32
    %274 = vector.broadcast %cst_74 : f32 to vector<16x1xf32>
    %275 = arith.divf %273, %274 : vector<16x1xf32>
    %276 = vector.broadcast %268 : vector<16x1xf32> to vector<16x64xf32>
    %277 = arith.subf %262, %276 : vector<16x64xf32>
    %cst_75 = arith.constant 9.99999974E-6 : f32
    %278 = vector.broadcast %cst_75 : f32 to vector<16x1xf32>
    %279 = arith.addf %275, %278 : vector<16x1xf32>
    %280 = math.rsqrt %279 : vector<16x1xf32>
    %281 = vector.broadcast %280 : vector<16x1xf32> to vector<16x64xf32>
    %282 = arith.mulf %277, %281 : vector<16x64xf32>
    %283 = vector.broadcast %263 : vector<1x64xf32> to vector<16x64xf32>
    %284 = arith.mulf %282, %283 : vector<16x64xf32>
    %285 = vector.broadcast %264 : vector<1x64xf32> to vector<16x64xf32>
    %286 = arith.addf %284, %285 : vector<16x64xf32>
    %287 = arith.truncf %286 : vector<16x64xf32> to vector<16x64xbf16>
    %c0_76 = arith.constant 0 : index
    %c0_77 = arith.constant 0 : index
    %288 = vector.load %arg19[%c0_76, %c0_77] : memref<64x128xbf16, #tpu.memory_space<vmem>>, vector<64x128xbf16>
    %cst_78 = arith.constant dense<0.000000e+00> : vector<16x128xf32>
    %289 = tpu.matmul %287, %288, %cst_78 {dimension_numbers = #tpu.dot_dimension_numbers<[1], [0], [0], [1], [0, 0, 1, 1], [], []>} : vector<16x64xbf16>, vector<64x128xbf16>, vector<16x128xf32> -> vector<16x128xf32>
    %c0_79 = arith.constant 0 : index
    %c0_80 = arith.constant 0 : index
    %290 = vector.load %arg20[%c0_79, %c0_80] : memref<1x128xf32, #tpu.memory_space<vmem>>, vector<1x128xf32>
    %291 = vector.broadcast %290 : vector<1x128xf32> to vector<16x128xf32>
    %292 = arith.addf %289, %291 : vector<16x128xf32>
    %293 = vector.extract_strided_slice %292 {offsets = [0, 0], sizes = [16, 64], strides = [1, 1]} : vector<16x128xf32> to vector<16x64xf32>
    %294 = vector.extract_strided_slice %292 {offsets = [0, 64], sizes = [16, 64], strides = [1, 1]} : vector<16x128xf32> to vector<16x64xf32>
    %295 = arith.negf %294 : vector<16x64xf32>
    %296 = math.exp %295 : vector<16x64xf32>
    %cst_81 = arith.constant 1.000000e+00 : f32
    %297 = vector.broadcast %cst_81 : f32 to vector<16x64xf32>
    %298 = arith.addf %297, %296 : vector<16x64xf32>
    %299 = arith.divf %297, %298 : vector<16x64xf32>
    %300 = arith.mulf %293, %299 : vector<16x64xf32>
    %cst_82 = arith.constant 0.000000e+00 : f32
    %301 = vector.broadcast %cst_82 : f32 to vector<7x64xf32>
    %302 = tpu.concatenate %301, %300, %301 in 0 : vector<7x64xf32>, vector<16x64xf32>, vector<7x64xf32> -> vector<30x64xf32>
    %c0_83 = arith.constant 0 : index
    %c0_84 = arith.constant 0 : index
    %303 = vector.load %arg21[%c0_83, %c0_84] : memref<15x64xf32, #tpu.memory_space<vmem>>, vector<15x64xf32>
    %cst_85 = arith.constant 0.000000e+00 : f32
    %304 = vector.broadcast %cst_85 : f32 to vector<16x64xf32>
    %305 = vector.extract_strided_slice %302 {offsets = [0, 0], sizes = [16, 64], strides = [1, 1]} : vector<30x64xf32> to vector<16x64xf32>
    %306 = vector.extract_strided_slice %303 {offsets = [0, 0], sizes = [1, 64], strides = [1, 1]} : vector<15x64xf32> to vector<1x64xf32>
    %307 = vector.broadcast %306 : vector<1x64xf32> to vector<16x64xf32>
    %308 = arith.mulf %305, %307 : vector<16x64xf32>
    %309 = arith.addf %304, %308 : vector<16x64xf32>
    %310 = vector.extract_strided_slice %302 {offsets = [1, 0], sizes = [16, 64], strides = [1, 1]} : vector<30x64xf32> to vector<16x64xf32>
    %311 = vector.extract_strided_slice %303 {offsets = [1, 0], sizes = [1, 64], strides = [1, 1]} : vector<15x64xf32> to vector<1x64xf32>
    %312 = vector.broadcast %311 : vector<1x64xf32> to vector<16x64xf32>
    %313 = arith.mulf %310, %312 : vector<16x64xf32>
    %314 = arith.addf %309, %313 : vector<16x64xf32>
    %315 = vector.extract_strided_slice %302 {offsets = [2, 0], sizes = [16, 64], strides = [1, 1]} : vector<30x64xf32> to vector<16x64xf32>
    %316 = vector.extract_strided_slice %303 {offsets = [2, 0], sizes = [1, 64], strides = [1, 1]} : vector<15x64xf32> to vector<1x64xf32>
    %317 = vector.broadcast %316 : vector<1x64xf32> to vector<16x64xf32>
    %318 = arith.mulf %315, %317 : vector<16x64xf32>
    %319 = arith.addf %314, %318 : vector<16x64xf32>
    %320 = vector.extract_strided_slice %302 {offsets = [3, 0], sizes = [16, 64], strides = [1, 1]} : vector<30x64xf32> to vector<16x64xf32>
    %321 = vector.extract_strided_slice %303 {offsets = [3, 0], sizes = [1, 64], strides = [1, 1]} : vector<15x64xf32> to vector<1x64xf32>
    %322 = vector.broadcast %321 : vector<1x64xf32> to vector<16x64xf32>
    %323 = arith.mulf %320, %322 : vector<16x64xf32>
    %324 = arith.addf %319, %323 : vector<16x64xf32>
    %325 = vector.extract_strided_slice %302 {offsets = [4, 0], sizes = [16, 64], strides = [1, 1]} : vector<30x64xf32> to vector<16x64xf32>
    %326 = vector.extract_strided_slice %303 {offsets = [4, 0], sizes = [1, 64], strides = [1, 1]} : vector<15x64xf32> to vector<1x64xf32>
    %327 = vector.broadcast %326 : vector<1x64xf32> to vector<16x64xf32>
    %328 = arith.mulf %325, %327 : vector<16x64xf32>
    %329 = arith.addf %324, %328 : vector<16x64xf32>
    %330 = vector.extract_strided_slice %302 {offsets = [5, 0], sizes = [16, 64], strides = [1, 1]} : vector<30x64xf32> to vector<16x64xf32>
    %331 = vector.extract_strided_slice %303 {offsets = [5, 0], sizes = [1, 64], strides = [1, 1]} : vector<15x64xf32> to vector<1x64xf32>
    %332 = vector.broadcast %331 : vector<1x64xf32> to vector<16x64xf32>
    %333 = arith.mulf %330, %332 : vector<16x64xf32>
    %334 = arith.addf %329, %333 : vector<16x64xf32>
    %335 = vector.extract_strided_slice %302 {offsets = [6, 0], sizes = [16, 64], strides = [1, 1]} : vector<30x64xf32> to vector<16x64xf32>
    %336 = vector.extract_strided_slice %303 {offsets = [6, 0], sizes = [1, 64], strides = [1, 1]} : vector<15x64xf32> to vector<1x64xf32>
    %337 = vector.broadcast %336 : vector<1x64xf32> to vector<16x64xf32>
    %338 = arith.mulf %335, %337 : vector<16x64xf32>
    %339 = arith.addf %334, %338 : vector<16x64xf32>
    %340 = vector.extract_strided_slice %302 {offsets = [7, 0], sizes = [16, 64], strides = [1, 1]} : vector<30x64xf32> to vector<16x64xf32>
    %341 = vector.extract_strided_slice %303 {offsets = [7, 0], sizes = [1, 64], strides = [1, 1]} : vector<15x64xf32> to vector<1x64xf32>
    %342 = vector.broadcast %341 : vector<1x64xf32> to vector<16x64xf32>
    %343 = arith.mulf %340, %342 : vector<16x64xf32>
    %344 = arith.addf %339, %343 : vector<16x64xf32>
    %345 = vector.extract_strided_slice %302 {offsets = [8, 0], sizes = [16, 64], strides = [1, 1]} : vector<30x64xf32> to vector<16x64xf32>
    %346 = vector.extract_strided_slice %303 {offsets = [8, 0], sizes = [1, 64], strides = [1, 1]} : vector<15x64xf32> to vector<1x64xf32>
    %347 = vector.broadcast %346 : vector<1x64xf32> to vector<16x64xf32>
    %348 = arith.mulf %345, %347 : vector<16x64xf32>
    %349 = arith.addf %344, %348 : vector<16x64xf32>
    %350 = vector.extract_strided_slice %302 {offsets = [9, 0], sizes = [16, 64], strides = [1, 1]} : vector<30x64xf32> to vector<16x64xf32>
    %351 = vector.extract_strided_slice %303 {offsets = [9, 0], sizes = [1, 64], strides = [1, 1]} : vector<15x64xf32> to vector<1x64xf32>
    %352 = vector.broadcast %351 : vector<1x64xf32> to vector<16x64xf32>
    %353 = arith.mulf %350, %352 : vector<16x64xf32>
    %354 = arith.addf %349, %353 : vector<16x64xf32>
    %355 = vector.extract_strided_slice %302 {offsets = [10, 0], sizes = [16, 64], strides = [1, 1]} : vector<30x64xf32> to vector<16x64xf32>
    %356 = vector.extract_strided_slice %303 {offsets = [10, 0], sizes = [1, 64], strides = [1, 1]} : vector<15x64xf32> to vector<1x64xf32>
    %357 = vector.broadcast %356 : vector<1x64xf32> to vector<16x64xf32>
    %358 = arith.mulf %355, %357 : vector<16x64xf32>
    %359 = arith.addf %354, %358 : vector<16x64xf32>
    %360 = vector.extract_strided_slice %302 {offsets = [11, 0], sizes = [16, 64], strides = [1, 1]} : vector<30x64xf32> to vector<16x64xf32>
    %361 = vector.extract_strided_slice %303 {offsets = [11, 0], sizes = [1, 64], strides = [1, 1]} : vector<15x64xf32> to vector<1x64xf32>
    %362 = vector.broadcast %361 : vector<1x64xf32> to vector<16x64xf32>
    %363 = arith.mulf %360, %362 : vector<16x64xf32>
    %364 = arith.addf %359, %363 : vector<16x64xf32>
    %365 = vector.extract_strided_slice %302 {offsets = [12, 0], sizes = [16, 64], strides = [1, 1]} : vector<30x64xf32> to vector<16x64xf32>
    %366 = vector.extract_strided_slice %303 {offsets = [12, 0], sizes = [1, 64], strides = [1, 1]} : vector<15x64xf32> to vector<1x64xf32>
    %367 = vector.broadcast %366 : vector<1x64xf32> to vector<16x64xf32>
    %368 = arith.mulf %365, %367 : vector<16x64xf32>
    %369 = arith.addf %364, %368 : vector<16x64xf32>
    %370 = vector.extract_strided_slice %302 {offsets = [13, 0], sizes = [16, 64], strides = [1, 1]} : vector<30x64xf32> to vector<16x64xf32>
    %371 = vector.extract_strided_slice %303 {offsets = [13, 0], sizes = [1, 64], strides = [1, 1]} : vector<15x64xf32> to vector<1x64xf32>
    %372 = vector.broadcast %371 : vector<1x64xf32> to vector<16x64xf32>
    %373 = arith.mulf %370, %372 : vector<16x64xf32>
    %374 = arith.addf %369, %373 : vector<16x64xf32>
    %375 = vector.extract_strided_slice %302 {offsets = [14, 0], sizes = [16, 64], strides = [1, 1]} : vector<30x64xf32> to vector<16x64xf32>
    %376 = vector.extract_strided_slice %303 {offsets = [14, 0], sizes = [1, 64], strides = [1, 1]} : vector<15x64xf32> to vector<1x64xf32>
    %377 = vector.broadcast %376 : vector<1x64xf32> to vector<16x64xf32>
    %378 = arith.mulf %375, %377 : vector<16x64xf32>
    %379 = arith.addf %374, %378 : vector<16x64xf32>
    %c0_86 = arith.constant 0 : index
    %c0_87 = arith.constant 0 : index
    %380 = vector.load %arg22[%c0_86, %c0_87] : memref<1x64xf32, #tpu.memory_space<vmem>>, vector<1x64xf32>
    %381 = vector.broadcast %380 : vector<1x64xf32> to vector<16x64xf32>
    %382 = arith.mulf %379, %381 : vector<16x64xf32>
    %c0_88 = arith.constant 0 : index
    %c0_89 = arith.constant 0 : index
    %383 = vector.load %arg23[%c0_88, %c0_89] : memref<1x64xf32, #tpu.memory_space<vmem>>, vector<1x64xf32>
    %384 = vector.broadcast %383 : vector<1x64xf32> to vector<16x64xf32>
    %385 = arith.addf %382, %384 : vector<16x64xf32>
    %386 = arith.negf %385 : vector<16x64xf32>
    %387 = math.exp %386 : vector<16x64xf32>
    %cst_90 = arith.constant 1.000000e+00 : f32
    %388 = vector.broadcast %cst_90 : f32 to vector<16x64xf32>
    %389 = arith.addf %388, %387 : vector<16x64xf32>
    %390 = arith.divf %388, %389 : vector<16x64xf32>
    %391 = arith.mulf %385, %390 : vector<16x64xf32>
    %392 = arith.truncf %391 : vector<16x64xf32> to vector<16x64xbf16>
    %c0_91 = arith.constant 0 : index
    %c0_92 = arith.constant 0 : index
    %393 = vector.load %arg24[%c0_91, %c0_92] : memref<64x64xbf16, #tpu.memory_space<vmem>>, vector<64x64xbf16>
    %cst_93 = arith.constant dense<0.000000e+00> : vector<16x64xf32>
    %394 = tpu.matmul %392, %393, %cst_93 {dimension_numbers = #tpu.dot_dimension_numbers<[1], [0], [0], [1], [0, 0, 1, 1], [], []>} : vector<16x64xbf16>, vector<64x64xbf16>, vector<16x64xf32> -> vector<16x64xf32>
    %395 = arith.addf %262, %394 : vector<16x64xf32>
    %c0_94 = arith.constant 0 : index
    %c0_95 = arith.constant 0 : index
    %396 = vector.load %arg25[%c0_94, %c0_95] : memref<1x64xf32, #tpu.memory_space<vmem>>, vector<1x64xf32>
    %397 = vector.broadcast %396 : vector<1x64xf32> to vector<16x64xf32>
    %398 = arith.addf %395, %397 : vector<16x64xf32>
    %c0_96 = arith.constant 0 : index
    %c0_97 = arith.constant 0 : index
    %399 = vector.load %arg26[%c0_96, %c0_97] : memref<1x64xf32, #tpu.memory_space<vmem>>, vector<1x64xf32>
    %c0_98 = arith.constant 0 : index
    %c0_99 = arith.constant 0 : index
    %400 = vector.load %arg27[%c0_98, %c0_99] : memref<1x64xf32, #tpu.memory_space<vmem>>, vector<1x64xf32>
    %c0_100 = arith.constant 0 : index
    %c0_101 = arith.constant 0 : index
    %401 = vector.load %arg28[%c0_100, %c0_101] : memref<64x256xbf16, #tpu.memory_space<vmem>>, vector<64x256xbf16>
    %c0_102 = arith.constant 0 : index
    %c0_103 = arith.constant 0 : index
    %402 = vector.load %arg29[%c0_102, %c0_103] : memref<1x256xf32, #tpu.memory_space<vmem>>, vector<1x256xf32>
    %c0_104 = arith.constant 0 : index
    %c0_105 = arith.constant 0 : index
    %403 = vector.load %arg30[%c0_104, %c0_105] : memref<256x64xbf16, #tpu.memory_space<vmem>>, vector<256x64xbf16>
    %c0_106 = arith.constant 0 : index
    %c0_107 = arith.constant 0 : index
    %404 = vector.load %arg31[%c0_106, %c0_107] : memref<1x64xf32, #tpu.memory_space<vmem>>, vector<1x64xf32>
    %cst_108 = arith.constant dense<0.000000e+00> : vector<16xf32>
    %405 = vector.multi_reduction <add>, %398, %cst_108 [1] : vector<16x64xf32> to vector<16xf32>
    %406 = vector.shape_cast %405 : vector<16xf32> to vector<16x1xf32>
    %cst_109 = arith.constant 6.400000e+01 : f32
    %407 = vector.broadcast %cst_109 : f32 to vector<16x1xf32>
    %408 = arith.divf %406, %407 : vector<16x1xf32>
    %409 = vector.broadcast %408 : vector<16x1xf32> to vector<16x64xf32>
    %410 = arith.subf %398, %409 : vector<16x64xf32>
    %411 = arith.mulf %410, %410 : vector<16x64xf32>
    %cst_110 = arith.constant dense<0.000000e+00> : vector<16xf32>
    %412 = vector.multi_reduction <add>, %411, %cst_110 [1] : vector<16x64xf32> to vector<16xf32>
    %413 = vector.shape_cast %412 : vector<16xf32> to vector<16x1xf32>
    %cst_111 = arith.constant 6.400000e+01 : f32
    %414 = vector.broadcast %cst_111 : f32 to vector<16x1xf32>
    %415 = arith.divf %413, %414 : vector<16x1xf32>
    %416 = vector.broadcast %408 : vector<16x1xf32> to vector<16x64xf32>
    %417 = arith.subf %398, %416 : vector<16x64xf32>
    %cst_112 = arith.constant 9.99999974E-6 : f32
    %418 = vector.broadcast %cst_112 : f32 to vector<16x1xf32>
    %419 = arith.addf %415, %418 : vector<16x1xf32>
    %420 = math.rsqrt %419 : vector<16x1xf32>
    %421 = vector.broadcast %420 : vector<16x1xf32> to vector<16x64xf32>
    %422 = arith.mulf %417, %421 : vector<16x64xf32>
    %423 = vector.broadcast %399 : vector<1x64xf32> to vector<16x64xf32>
    %424 = arith.mulf %422, %423 : vector<16x64xf32>
    %425 = vector.broadcast %400 : vector<1x64xf32> to vector<16x64xf32>
    %426 = arith.addf %424, %425 : vector<16x64xf32>
    %427 = arith.truncf %426 : vector<16x64xf32> to vector<16x64xbf16>
    %cst_113 = arith.constant dense<0.000000e+00> : vector<16x256xf32>
    %428 = tpu.matmul %427, %401, %cst_113 {dimension_numbers = #tpu.dot_dimension_numbers<[1], [0], [0], [1], [0, 0, 1, 1], [], []>} : vector<16x64xbf16>, vector<64x256xbf16>, vector<16x256xf32> -> vector<16x256xf32>
    %429 = vector.broadcast %402 : vector<1x256xf32> to vector<16x256xf32>
    %430 = arith.addf %428, %429 : vector<16x256xf32>
    %431 = arith.negf %430 : vector<16x256xf32>
    %432 = math.exp %431 : vector<16x256xf32>
    %cst_114 = arith.constant 1.000000e+00 : f32
    %433 = vector.broadcast %cst_114 : f32 to vector<16x256xf32>
    %434 = arith.addf %433, %432 : vector<16x256xf32>
    %435 = arith.divf %433, %434 : vector<16x256xf32>
    %436 = arith.mulf %430, %435 : vector<16x256xf32>
    %437 = arith.truncf %436 : vector<16x256xf32> to vector<16x256xbf16>
    %cst_115 = arith.constant dense<0.000000e+00> : vector<16x64xf32>
    %438 = tpu.matmul %437, %403, %cst_115 {dimension_numbers = #tpu.dot_dimension_numbers<[1], [0], [0], [1], [0, 0, 1, 1], [], []>} : vector<16x256xbf16>, vector<256x64xbf16>, vector<16x64xf32> -> vector<16x64xf32>
    %439 = vector.broadcast %404 : vector<1x64xf32> to vector<16x64xf32>
    %440 = arith.addf %438, %439 : vector<16x64xf32>
    %cst_116 = arith.constant 5.000000e-01 : f32
    %441 = vector.broadcast %cst_116 : f32 to vector<16x64xf32>
    %442 = arith.mulf %441, %440 : vector<16x64xf32>
    %443 = arith.addf %398, %442 : vector<16x64xf32>
    %c0_117 = arith.constant 0 : index
    %c0_118 = arith.constant 0 : index
    %444 = vector.load %arg32[%c0_117, %c0_118] : memref<1x64xf32, #tpu.memory_space<vmem>>, vector<1x64xf32>
    %c0_119 = arith.constant 0 : index
    %c0_120 = arith.constant 0 : index
    %445 = vector.load %arg33[%c0_119, %c0_120] : memref<1x64xf32, #tpu.memory_space<vmem>>, vector<1x64xf32>
    %cst_121 = arith.constant dense<0.000000e+00> : vector<16xf32>
    %446 = vector.multi_reduction <add>, %443, %cst_121 [1] : vector<16x64xf32> to vector<16xf32>
    %447 = vector.shape_cast %446 : vector<16xf32> to vector<16x1xf32>
    %cst_122 = arith.constant 6.400000e+01 : f32
    %448 = vector.broadcast %cst_122 : f32 to vector<16x1xf32>
    %449 = arith.divf %447, %448 : vector<16x1xf32>
    %450 = vector.broadcast %449 : vector<16x1xf32> to vector<16x64xf32>
    %451 = arith.subf %443, %450 : vector<16x64xf32>
    %452 = arith.mulf %451, %451 : vector<16x64xf32>
    %cst_123 = arith.constant dense<0.000000e+00> : vector<16xf32>
    %453 = vector.multi_reduction <add>, %452, %cst_123 [1] : vector<16x64xf32> to vector<16xf32>
    %454 = vector.shape_cast %453 : vector<16xf32> to vector<16x1xf32>
    %cst_124 = arith.constant 6.400000e+01 : f32
    %455 = vector.broadcast %cst_124 : f32 to vector<16x1xf32>
    %456 = arith.divf %454, %455 : vector<16x1xf32>
    %457 = vector.broadcast %449 : vector<16x1xf32> to vector<16x64xf32>
    %458 = arith.subf %443, %457 : vector<16x64xf32>
    %cst_125 = arith.constant 9.99999974E-6 : f32
    %459 = vector.broadcast %cst_125 : f32 to vector<16x1xf32>
    %460 = arith.addf %456, %459 : vector<16x1xf32>
    %461 = math.rsqrt %460 : vector<16x1xf32>
    %462 = vector.broadcast %461 : vector<16x1xf32> to vector<16x64xf32>
    %463 = arith.mulf %458, %462 : vector<16x64xf32>
    %464 = vector.broadcast %444 : vector<1x64xf32> to vector<16x64xf32>
    %465 = arith.mulf %463, %464 : vector<16x64xf32>
    %466 = vector.broadcast %445 : vector<1x64xf32> to vector<16x64xf32>
    %467 = arith.addf %465, %466 : vector<16x64xf32>
    %c0_126 = arith.constant 0 : index
    %c0_127 = arith.constant 0 : index
    %c0_128 = arith.constant 0 : index
    %468 = vector.load %arg34[%c0_126, %c0_127, %c0_128] : memref<1x16x64xf32, #tpu.memory_space<vmem>>, vector<1x16x64xf32>
    %469 = vector.shape_cast %468 : vector<1x16x64xf32> to vector<16x64xf32>
    %470 = vector.shape_cast %467 : vector<16x64xf32> to vector<1x16x64xf32>
    tpu.vector_store %arg34[%c0_126, %c0_127, %c0_128], %470 {strides = array<i32>} : memref<1x16x64xf32, #tpu.memory_space<vmem>>, vector<1x16x64xf32>,
    return
  }
  func.func @transform_0(%arg0: i32) -> (i32, i32, i32) {
    %c0_i32 = arith.constant 0 : i32
    %c0_i32_0 = arith.constant 0 : i32
    %c0_i32_1 = arith.constant 0 : i32
    return %arg0, %c0_i32, %c0_i32_0 : i32, i32, i32
  }
  func.func @transform_1(%arg0: i32) -> (i32, i32) {
    %c0_i32 = arith.constant 0 : i32
    %c0_i32_0 = arith.constant 0 : i32
    %c0_i32_1 = arith.constant 0 : i32
    return %c0_i32, %c0_i32_0 : i32, i32
  }
  func.func @transform_2(%arg0: i32) -> (i32, i32) {
    %c0_i32 = arith.constant 0 : i32
    %c0_i32_0 = arith.constant 0 : i32
    %c0_i32_1 = arith.constant 0 : i32
    return %c0_i32, %c0_i32_0 : i32, i32
  }
  func.func @transform_3(%arg0: i32) -> (i32, i32) {
    %c0_i32 = arith.constant 0 : i32
    %c0_i32_0 = arith.constant 0 : i32
    %c0_i32_1 = arith.constant 0 : i32
    return %c0_i32, %c0_i32_0 : i32, i32
  }
  func.func @transform_4(%arg0: i32) -> (i32, i32) {
    %c0_i32 = arith.constant 0 : i32
    %c0_i32_0 = arith.constant 0 : i32
    %c0_i32_1 = arith.constant 0 : i32
    return %c0_i32, %c0_i32_0 : i32, i32
  }
  func.func @transform_5(%arg0: i32) -> (i32, i32) {
    %c0_i32 = arith.constant 0 : i32
    %c0_i32_0 = arith.constant 0 : i32
    %c0_i32_1 = arith.constant 0 : i32
    return %c0_i32, %c0_i32_0 : i32, i32
  }
  func.func @transform_6(%arg0: i32) -> (i32, i32) {
    %c0_i32 = arith.constant 0 : i32
    %c0_i32_0 = arith.constant 0 : i32
    %c0_i32_1 = arith.constant 0 : i32
    return %c0_i32, %c0_i32_0 : i32, i32
  }
  func.func @transform_7(%arg0: i32) -> (i32, i32) {
    %c0_i32 = arith.constant 0 : i32
    %c0_i32_0 = arith.constant 0 : i32
    %c0_i32_1 = arith.constant 0 : i32
    return %c0_i32, %c0_i32_0 : i32, i32
  }
  func.func @transform_8(%arg0: i32) -> (i32, i32) {
    %c0_i32 = arith.constant 0 : i32
    %c0_i32_0 = arith.constant 0 : i32
    %c0_i32_1 = arith.constant 0 : i32
    return %c0_i32, %c0_i32_0 : i32, i32
  }
  func.func @transform_9(%arg0: i32) -> (i32, i32) {
    %c0_i32 = arith.constant 0 : i32
    %c0_i32_0 = arith.constant 0 : i32
    %c0_i32_1 = arith.constant 0 : i32
    return %c0_i32, %c0_i32_0 : i32, i32
  }
  func.func @transform_10(%arg0: i32) -> (i32, i32) {
    %c0_i32 = arith.constant 0 : i32
    %c0_i32_0 = arith.constant 0 : i32
    %c0_i32_1 = arith.constant 0 : i32
    return %c0_i32, %c0_i32_0 : i32, i32
  }
  func.func @transform_11(%arg0: i32) -> (i32, i32) {
    %c0_i32 = arith.constant 0 : i32
    %c0_i32_0 = arith.constant 0 : i32
    %c0_i32_1 = arith.constant 0 : i32
    return %c0_i32, %c0_i32_0 : i32, i32
  }
  func.func @transform_12(%arg0: i32) -> (i32, i32) {
    %c0_i32 = arith.constant 0 : i32
    %c0_i32_0 = arith.constant 0 : i32
    %c0_i32_1 = arith.constant 0 : i32
    return %c0_i32, %c0_i32_0 : i32, i32
  }
  func.func @transform_13(%arg0: i32) -> (i32, i32) {
    %c0_i32 = arith.constant 0 : i32
    %c0_i32_0 = arith.constant 0 : i32
    %c0_i32_1 = arith.constant 0 : i32
    return %c0_i32, %c0_i32_0 : i32, i32
  }
  func.func @transform_14(%arg0: i32) -> (i32, i32) {
    %c0_i32 = arith.constant 0 : i32
    %c0_i32_0 = arith.constant 0 : i32
    %c0_i32_1 = arith.constant 0 : i32
    return %c0_i32, %c0_i32_0 : i32, i32
  }
  func.func @transform_15(%arg0: i32) -> (i32, i32) {
    %c0_i32 = arith.constant 0 : i32
    %c0_i32_0 = arith.constant 0 : i32
    %c0_i32_1 = arith.constant 0 : i32
    return %c0_i32, %c0_i32_0 : i32, i32
  }
  func.func @transform_16(%arg0: i32) -> (i32, i32) {
    %c0_i32 = arith.constant 0 : i32
    %c0_i32_0 = arith.constant 0 : i32
    %c0_i32_1 = arith.constant 0 : i32
    return %c0_i32, %c0_i32_0 : i32, i32
  }
  func.func @transform_17(%arg0: i32) -> (i32, i32) {
    %c0_i32 = arith.constant 0 : i32
    %c0_i32_0 = arith.constant 0 : i32
    %c0_i32_1 = arith.constant 0 : i32
    return %c0_i32, %c0_i32_0 : i32, i32
  }
  func.func @transform_18(%arg0: i32) -> (i32, i32) {
    %c0_i32 = arith.constant 0 : i32
    %c0_i32_0 = arith.constant 0 : i32
    %c0_i32_1 = arith.constant 0 : i32
    return %c0_i32, %c0_i32_0 : i32, i32
  }
  func.func @transform_19(%arg0: i32) -> (i32, i32) {
    %c0_i32 = arith.constant 0 : i32
    %c0_i32_0 = arith.constant 0 : i32
    %c0_i32_1 = arith.constant 0 : i32
    return %c0_i32, %c0_i32_0 : i32, i32
  }
  func.func @transform_20(%arg0: i32) -> (i32, i32) {
    %c0_i32 = arith.constant 0 : i32
    %c0_i32_0 = arith.constant 0 : i32
    %c0_i32_1 = arith.constant 0 : i32
    return %c0_i32, %c0_i32_0 : i32, i32
  }
  func.func @transform_21(%arg0: i32) -> (i32, i32) {
    %c0_i32 = arith.constant 0 : i32
    %c0_i32_0 = arith.constant 0 : i32
    %c0_i32_1 = arith.constant 0 : i32
    return %c0_i32, %c0_i32_0 : i32, i32
  }
  func.func @transform_22(%arg0: i32) -> (i32, i32) {
    %c0_i32 = arith.constant 0 : i32
    %c0_i32_0 = arith.constant 0 : i32
    %c0_i32_1 = arith.constant 0 : i32
    return %c0_i32, %c0_i32_0 : i32, i32
  }
  func.func @transform_23(%arg0: i32) -> (i32, i32) {
    %c0_i32 = arith.constant 0 : i32
    %c0_i32_0 = arith.constant 0 : i32
    %c0_i32_1 = arith.constant 0 : i32
    return %c0_i32, %c0_i32_0 : i32, i32
  }
  func.func @transform_24(%arg0: i32) -> (i32, i32) {
    %c0_i32 = arith.constant 0 : i32
    %c0_i32_0 = arith.constant 0 : i32
    %c0_i32_1 = arith.constant 0 : i32
    return %c0_i32, %c0_i32_0 : i32, i32
  }
  func.func @transform_25(%arg0: i32) -> (i32, i32) {
    %c0_i32 = arith.constant 0 : i32
    %c0_i32_0 = arith.constant 0 : i32
    %c0_i32_1 = arith.constant 0 : i32
    return %c0_i32, %c0_i32_0 : i32, i32
  }
  func.func @transform_26(%arg0: i32) -> (i32, i32) {
    %c0_i32 = arith.constant 0 : i32
    %c0_i32_0 = arith.constant 0 : i32
    %c0_i32_1 = arith.constant 0 : i32
    return %c0_i32, %c0_i32_0 : i32, i32
  }
  func.func @transform_27(%arg0: i32) -> (i32, i32) {
    %c0_i32 = arith.constant 0 : i32
    %c0_i32_0 = arith.constant 0 : i32
    %c0_i32_1 = arith.constant 0 : i32
    return %c0_i32, %c0_i32_0 : i32, i32
  }
  func.func @transform_28(%arg0: i32) -> (i32, i32) {
    %c0_i32 = arith.constant 0 : i32
    %c0_i32_0 = arith.constant 0 : i32
    %c0_i32_1 = arith.constant 0 : i32
    return %c0_i32, %c0_i32_0 : i32, i32
  }
  func.func @transform_29(%arg0: i32) -> (i32, i32) {
    %c0_i32 = arith.constant 0 : i32
    %c0_i32_0 = arith.constant 0 : i32
    %c0_i32_1 = arith.constant 0 : i32
    return %c0_i32, %c0_i32_0 : i32, i32
  }
  func.func @transform_30(%arg0: i32) -> (i32, i32) {
    %c0_i32 = arith.constant 0 : i32
    %c0_i32_0 = arith.constant 0 : i32
    %c0_i32_1 = arith.constant 0 : i32
    return %c0_i32, %c0_i32_0 : i32, i32
  }
  func.func @transform_31(%arg0: i32) -> (i32, i32) {
    %c0_i32 = arith.constant 0 : i32
    %c0_i32_0 = arith.constant 0 : i32
    %c0_i32_1 = arith.constant 0 : i32
    return %c0_i32, %c0_i32_0 : i32, i32
  }
  func.func @transform_32(%arg0: i32) -> (i32, i32) {
    %c0_i32 = arith.constant 0 : i32
    %c0_i32_0 = arith.constant 0 : i32
    %c0_i32_1 = arith.constant 0 : i32
    return %c0_i32, %c0_i32_0 : i32, i32
  }
  func.func @transform_33(%arg0: i32) -> (i32, i32, i32) {
    %c0_i32 = arith.constant 0 : i32
    %c0_i32_0 = arith.constant 0 : i32
    %c0_i32_1 = arith.constant 0 : i32
    return %arg0, %c0_i32, %c0_i32_0 : i32, i32, i32
  }
}

</mosaic_0001>

<llo_original>
// kernel: conformer_block_forward.1
$region0: #{conformer_block_forward.1}
  #allocation0 [shape = 'u32[]', space=smem, size = 0x4, offset = 0x4, fixed_abs, tag = 'smem constant byte address 0x4 - core index']
  #allocation1 [shape = 'u32[144,128]{1,0:T(1,128)}', space=vmem, size = 0x12000, scoped, tag = 'internal scratch']
  %s0 = inlined_call_operand.smem [shape: u32[34], index: -1, kind: input, shape index: {}]
  %s1 = sld [smem:[%s0]]
  %s2 = scalar_lea.smem %s0, 1
  %s3 = sld [smem:[%s2]]
  %s4 = scalar_lea.smem %s0, 2
  %s5 = sld [smem:[%s4]]
  %s6 = scalar_lea.smem %s0, 3
  %s7 = sld [smem:[%s6]]
  %s8 = scalar_lea.smem %s0, 4
  %s9 = sld [smem:[%s8]]
  %s10 = scalar_lea.smem %s0, 5
  %s11 = sld [smem:[%s10]]
  %s12 = scalar_lea.smem %s0, 6
  %s13 = sld [smem:[%s12]]
  %s14 = scalar_lea.smem %s0, 7
  %s15 = sld [smem:[%s14]]
  %s16 = scalar_lea.smem %s0, 8
  %s17 = sld [smem:[%s16]]
  %s18 = scalar_lea.smem %s0, 9
  %s19 = sld [smem:[%s18]]
  %s20 = scalar_lea.smem %s0, 10
  %s21 = sld [smem:[%s20]]
  %s22 = scalar_lea.smem %s0, 11
  %s23 = sld [smem:[%s22]]
  %s24 = scalar_lea.smem %s0, 12
  %s25 = sld [smem:[%s24]]
  %s26 = scalar_lea.smem %s0, 13
  %s27 = sld [smem:[%s26]]
  %s28 = scalar_lea.smem %s0, 14
  %s29 = sld [smem:[%s28]]
  %s30 = scalar_lea.smem %s0, 15
  %s31 = sld [smem:[%s30]]
  %s32 = scalar_lea.smem %s0, 16
  %s33 = sld [smem:[%s32]]
  %s34 = scalar_lea.smem %s0, 17
  %s35 = sld [smem:[%s34]]
  %s36 = scalar_lea.smem %s0, 18
  %s37 = sld [smem:[%s36]]
  %s38 = scalar_lea.smem %s0, 19
  %s39 = sld [smem:[%s38]]
  %s40 = scalar_lea.smem %s0, 20
  %s41 = sld [smem:[%s40]]
  %s42 = scalar_lea.smem %s0, 21
  %s43 = sld [smem:[%s42]]
  %s44 = scalar_lea.smem %s0, 22
  %s45 = sld [smem:[%s44]]
  %s46 = scalar_lea.smem %s0, 23
  %s47 = sld [smem:[%s46]]
  %s48 = scalar_lea.smem %s0, 24
  %s49 = sld [smem:[%s48]]
  %s50 = scalar_lea.smem %s0, 25
  %s51 = sld [smem:[%s50]]
  %s52 = scalar_lea.smem %s0, 26
  %s53 = sld [smem:[%s52]]
  %s54 = scalar_lea.smem %s0, 27
  %s55 = sld [smem:[%s54]]
  %s56 = scalar_lea.smem %s0, 28
  %s57 = sld [smem:[%s56]]
  %s58 = scalar_lea.smem %s0, 29
  %s59 = sld [smem:[%s58]]
  %s60 = scalar_lea.smem %s0, 30
  %s61 = sld [smem:[%s60]]
  %s62 = scalar_lea.smem %s0, 31
  %s63 = sld [smem:[%s62]]
  %s64 = scalar_lea.smem %s0, 32
  %s65 = sld [smem:[%s64]]
  %s66 = scalar_lea.smem %s0, 33
  %s67 = sld [smem:[%s66]]
  %s68 = sld [smem:[#allocation0]]
  $region165: #{conformer_block_forward.1} parent=0
    _
  %s70 = ssub.s32 1, %s68
  %s71 = scalar_select 0, %s70, %s68
  $region1: #{conformer_block_forward.1} parent=0
    #allocation2 [shape = 'u8[16384]{0}', space=vmem, size = 0x4000, scoped, tag = 'output window, operand 0']
    #allocation3 [shape = 's32[2]{0}', space=sflag, size = 0x8, scoped, tag = 'scoped memory for conformer_block_forward.1']
    %72 = vsyncpa [#allocation3], 0
    %s73 = scalar_lea.sflag [#allocation3], 1
    %74 = vsyncpa %s73, 0
    loop: start=0, step=1, limit=4
    $region2: #{conformer_block_forward.1} parent=1 // loop_pre_header
      _
    $region3: #{conformer_block_forward.1} parent=1 // loop_header
      %s76 = sphi 0, %s80
      %p77 = scmp.ge.s32.totalorder %s76, 4
      %s86 = sphi 0, %s88
      %s89 = sphi 0, %s86
      %s90 = sphi 0, %s89
      %s106 = sphi 0, %s90
      %s110 = sphi 0, %s110
      %s112 = sphi 0, %s110
      %s113 = sphi 0, %s112
      %s127 = sphi 0, %s113
      %s131 = sphi 0, %s131
      %s133 = sphi 0, %s131
      %s134 = sphi 0, %s133
      %s148 = sphi 0, %s134
      %s152 = sphi 0, %s152
      %s154 = sphi 0, %s152
      %s155 = sphi 0, %s154
      %s169 = sphi 0, %s155
      %s173 = sphi 0, %s173
      %s175 = sphi 0, %s173
      %s176 = sphi 0, %s175
      %s190 = sphi 0, %s176
      %s194 = sphi 0, %s194
      %s196 = sphi 0, %s194
      %s197 = sphi 0, %s196
      %s211 = sphi 0, %s197
      %s215 = sphi 0, %s215
      %s217 = sphi 0, %s215
      %s218 = sphi 0, %s217
      %s232 = sphi 0, %s218
      %s236 = sphi 0, %s236
      %s238 = sphi 0, %s236
      %s239 = sphi 0, %s238
      %s253 = sphi 0, %s239
      %s257 = sphi 0, %s257
      %s259 = sphi 0, %s257
      %s260 = sphi 0, %s259
      %s274 = sphi 0, %s260
      %s278 = sphi 0, %s278
      %s280 = sphi 0, %s278
      %s281 = sphi 0, %s280
      %s295 = sphi 0, %s281
      %s299 = sphi 0, %s299
      %s301 = sphi 0, %s299
      %s302 = sphi 0, %s301
      %s316 = sphi 0, %s302
      %s320 = sphi 0, %s320
      %s322 = sphi 0, %s320
      %s323 = sphi 0, %s322
      %s337 = sphi 0, %s323
      %s341 = sphi 0, %s341
      %s343 = sphi 0, %s341
      %s344 = sphi 0, %s343
      %s358 = sphi 0, %s344
      %s362 = sphi 0, %s362
      %s364 = sphi 0, %s362
      %s365 = sphi 0, %s364
      %s379 = sphi 0, %s365
      %s383 = sphi 0, %s383
      %s385 = sphi 0, %s383
      %s386 = sphi 0, %s385
      %s400 = sphi 0, %s386
      %s404 = sphi 0, %s404
      %s406 = sphi 0, %s404
      %s407 = sphi 0, %s406
      %s421 = sphi 0, %s407
      %s425 = sphi 0, %s425
      %s427 = sphi 0, %s425
      %s428 = sphi 0, %s427
      %s442 = sphi 0, %s428
      %s446 = sphi 0, %s446
      %s448 = sphi 0, %s446
      %s449 = sphi 0, %s448
      %s463 = sphi 0, %s449
      %s467 = sphi 0, %s467
      %s469 = sphi 0, %s467
      %s470 = sphi 0, %s469
      %s484 = sphi 0, %s470
      %s488 = sphi 0, %s488
      %s490 = sphi 0, %s488
      %s491 = sphi 0, %s490
      %s505 = sphi 0, %s491
      %s509 = sphi 0, %s509
      %s511 = sphi 0, %s509
      %s512 = sphi 0, %s511
      %s526 = sphi 0, %s512
      %s530 = sphi 0, %s530
      %s532 = sphi 0, %s530
      %s533 = sphi 0, %s532
      %s547 = sphi 0, %s533
      %s551 = sphi 0, %s551
      %s553 = sphi 0, %s551
      %s554 = sphi 0, %s553
      %s568 = sphi 0, %s554
      %s572 = sphi 0, %s572
      %s574 = sphi 0, %s572
      %s575 = sphi 0, %s574
      %s589 = sphi 0, %s575
      %s593 = sphi 0, %s593
      %s595 = sphi 0, %s593
      %s596 = sphi 0, %s595
      %s610 = sphi 0, %s596
      %s614 = sphi 0, %s614
      %s616 = sphi 0, %s614
      %s617 = sphi 0, %s616
      %s631 = sphi 0, %s617
      %s635 = sphi 0, %s635
      %s637 = sphi 0, %s635
      %s638 = sphi 0, %s637
      %s652 = sphi 0, %s638
      %s656 = sphi 0, %s656
      %s658 = sphi 0, %s656
      %s659 = sphi 0, %s658
      %s673 = sphi 0, %s659
      %s677 = sphi 0, %s677
      %s679 = sphi 0, %s677
      %s680 = sphi 0, %s679
      %s694 = sphi 0, %s680
      %s698 = sphi 0, %s698
      %s700 = sphi 0, %s698
      %s701 = sphi 0, %s700
      %s715 = sphi 0, %s701
      %s719 = sphi 0, %s719
      %s721 = sphi 0, %s719
      %s722 = sphi 0, %s721
      %s736 = sphi 0, %s722
      %s740 = sphi 0, %s740
      %s742 = sphi 0, %s740
      %s743 = sphi 0, %s742
      %s757 = sphi 0, %s743
      %s761 = sphi 0, %s761
      %s763 = sphi 0, %s761
      %s764 = sphi 0, %s763
      %s778 = sphi 0, %s764
      %s784 = sphi 0, %s786
      %s787 = sphi 0, %s784
      %s788 = sphi 0, %s787
      %s804 = sphi 0, %s788
    $region4: #{conformer_block_forward.1} parent=1 // loop_header_branch
      %79 = sbr.rel (%p77) target = $region8
    $region5: #{conformer_block_forward.1} parent=1 // loop_body
      %s81 = ssub.s32 %s76, 1
      %s82 = ssub.s32 %s76, 2
      %s83 = sadd.s32 %s76, 1
      %s84 = ssub.s32 %s76, %s83
      %p85 = scmp.eq.s32.totalorder %s84, 0
      %s87 = sadd.s32 %s86, 1
      %s88 = scalar_select %p85, %s86, %s87
      %p91 = pneg %p85
      %p92 = scmp.eq.s32.totalorder %s76, 1
      %p93 = por %p91, %p92
      %p94 = scmp.ne.s32.totalorder %s86, %s89
      %p95 = scmp.eq.s32.totalorder %s76, 0
      %p96 = por %p94, %p95
      %p97 = scmp.ne.s32.totalorder %s86, %s89
      %p98 = scmp.eq.s32.totalorder %s81, 1
      %p99 = por %p97, %p98
      %p100 = scmp.ne.s32.totalorder %s89, %s90
      %p101 = scmp.eq.s32.totalorder %s81, 0
      %p102 = por %p100, %p101
      %p103 = scmp.ne.s32.totalorder %s89, %s90
      %p104 = scmp.eq.s32.totalorder %s82, 1
      %p105 = por %p103, %p104
      %p107 = scmp.ne.s32.totalorder %s90, %s106
      %p108 = scmp.eq.s32.totalorder %s82, 0
      %p109 = por %p107, %p108
      %s111 = sadd.s32 %s110, 1
      %p114 = scmp.eq.s32.totalorder %s76, 1
      %p115 = scmp.ne.s32.totalorder %s110, %s112
      %p116 = scmp.eq.s32.totalorder %s76, 0
      %p117 = por %p115, %p116
      %p118 = scmp.ne.s32.totalorder %s110, %s112
      %p119 = scmp.eq.s32.totalorder %s81, 1
      %p120 = por %p118, %p119
      %p121 = scmp.ne.s32.totalorder %s112, %s113
      %p122 = scmp.eq.s32.totalorder %s81, 0
      %p123 = por %p121, %p122
      %p124 = scmp.ne.s32.totalorder %s112, %s113
      %p125 = scmp.eq.s32.totalorder %s82, 1
      %p126 = por %p124, %p125
      %p128 = scmp.ne.s32.totalorder %s113, %s127
      %p129 = scmp.eq.s32.totalorder %s82, 0
      %p130 = por %p128, %p129
      %s132 = sadd.s32 %s131, 1
      %p135 = scmp.eq.s32.totalorder %s76, 1
      %p136 = scmp.ne.s32.totalorder %s131, %s133
      %p137 = scmp.eq.s32.totalorder %s76, 0
      %p138 = por %p136, %p137
      %p139 = scmp.ne.s32.totalorder %s131, %s133
      %p140 = scmp.eq.s32.totalorder %s81, 1
      %p141 = por %p139, %p140
      %p142 = scmp.ne.s32.totalorder %s133, %s134
      %p143 = scmp.eq.s32.totalorder %s81, 0
      %p144 = por %p142, %p143
      %p145 = scmp.ne.s32.totalorder %s133, %s134
      %p146 = scmp.eq.s32.totalorder %s82, 1
      %p147 = por %p145, %p146
      %p149 = scmp.ne.s32.totalorder %s134, %s148
      %p150 = scmp.eq.s32.totalorder %s82, 0
      %p151 = por %p149, %p150
      %s153 = sadd.s32 %s152, 1
      %p156 = scmp.eq.s32.totalorder %s76, 1
      %p157 = scmp.ne.s32.totalorder %s152, %s154
      %p158 = scmp.eq.s32.totalorder %s76, 0
      %p159 = por %p157, %p158
      %p160 = scmp.ne.s32.totalorder %s152, %s154
      %p161 = scmp.eq.s32.totalorder %s81, 1
      %p162 = por %p160, %p161
      %p163 = scmp.ne.s32.totalorder %s154, %s155
      %p164 = scmp.eq.s32.totalorder %s81, 0
      %p165 = por %p163, %p164
      %p166 = scmp.ne.s32.totalorder %s154, %s155
      %p167 = scmp.eq.s32.totalorder %s82, 1
      %p168 = por %p166, %p167
      %p170 = scmp.ne.s32.totalorder %s155, %s169
      %p171 = scmp.eq.s32.totalorder %s82, 0
      %p172 = por %p170, %p171
      %s174 = sadd.s32 %s173, 1
      %p177 = scmp.eq.s32.totalorder %s76, 1
      %p178 = scmp.ne.s32.totalorder %s173, %s175
      %p179 = scmp.eq.s32.totalorder %s76, 0
      %p180 = por %p178, %p179
      %p181 = scmp.ne.s32.totalorder %s173, %s175
      %p182 = scmp.eq.s32.totalorder %s81, 1
      %p183 = por %p181, %p182
      %p184 = scmp.ne.s32.totalorder %s175, %s176
      %p185 = scmp.eq.s32.totalorder %s81, 0
      %p186 = por %p184, %p185
      %p187 = scmp.ne.s32.totalorder %s175, %s176
      %p188 = scmp.eq.s32.totalorder %s82, 1
      %p189 = por %p187, %p188
      %p191 = scmp.ne.s32.totalorder %s176, %s190
      %p192 = scmp.eq.s32.totalorder %s82, 0
      %p193 = por %p191, %p192
      %s195 = sadd.s32 %s194, 1
      %p198 = scmp.eq.s32.totalorder %s76, 1
      %p199 = scmp.ne.s32.totalorder %s194, %s196
      %p200 = scmp.eq.s32.totalorder %s76, 0
      %p201 = por %p199, %p200
      %p202 = scmp.ne.s32.totalorder %s194, %s196
      %p203 = scmp.eq.s32.totalorder %s81, 1
      %p204 = por %p202, %p203
      %p205 = scmp.ne.s32.totalorder %s196, %s197
      %p206 = scmp.eq.s32.totalorder %s81, 0
      %p207 = por %p205, %p206
      %p208 = scmp.ne.s32.totalorder %s196, %s197
      %p209 = scmp.eq.s32.totalorder %s82, 1
      %p210 = por %p208, %p209
      %p212 = scmp.ne.s32.totalorder %s197, %s211
      %p213 = scmp.eq.s32.totalorder %s82, 0
      %p214 = por %p212, %p213
      %s216 = sadd.s32 %s215, 1
      %p219 = scmp.eq.s32.totalorder %s76, 1
      %p220 = scmp.ne.s32.totalorder %s215, %s217
      %p221 = scmp.eq.s32.totalorder %s76, 0
      %p222 = por %p220, %p221
      %p223 = scmp.ne.s32.totalorder %s215, %s217
      %p224 = scmp.eq.s32.totalorder %s81, 1
      %p225 = por %p223, %p224
      %p226 = scmp.ne.s32.totalorder %s217, %s218
      %p227 = scmp.eq.s32.totalorder %s81, 0
      %p228 = por %p226, %p227
      %p229 = scmp.ne.s32.totalorder %s217, %s218
      %p230 = scmp.eq.s32.totalorder %s82, 1
      %p231 = por %p229, %p230
      %p233 = scmp.ne.s32.totalorder %s218, %s232
      %p234 = scmp.eq.s32.totalorder %s82, 0
      %p235 = por %p233, %p234
      %s237 = sadd.s32 %s236, 1
      %p240 = scmp.eq.s32.totalorder %s76, 1
      %p241 = scmp.ne.s32.totalorder %s236, %s238
      %p242 = scmp.eq.s32.totalorder %s76, 0
      %p243 = por %p241, %p242
      %p244 = scmp.ne.s32.totalorder %s236, %s238
      %p245 = scmp.eq.s32.totalorder %s81, 1
      %p246 = por %p244, %p245
      %p247 = scmp.ne.s32.totalorder %s238, %s239
      %p248 = scmp.eq.s32.totalorder %s81, 0
      %p249 = por %p247, %p248
      %p250 = scmp.ne.s32.totalorder %s238, %s239
      %p251 = scmp.eq.s32.totalorder %s82, 1
      %p252 = por %p250, %p251
      %p254 = scmp.ne.s32.totalorder %s239, %s253
      %p255 = scmp.eq.s32.totalorder %s82, 0
      %p256 = por %p254, %p255
      %s258 = sadd.s32 %s257, 1
      %p261 = scmp.eq.s32.totalorder %s76, 1
      %p262 = scmp.ne.s32.totalorder %s257, %s259
      %p263 = scmp.eq.s32.totalorder %s76, 0
      %p264 = por %p262, %p263
      %p265 = scmp.ne.s32.totalorder %s257, %s259
      %p266 = scmp.eq.s32.totalorder %s81, 1
      %p267 = por %p265, %p266
      %p268 = scmp.ne.s32.totalorder %s259, %s260
      %p269 = scmp.eq.s32.totalorder %s81, 0
      %p270 = por %p268, %p269
      %p271 = scmp.ne.s32.totalorder %s259, %s260
      %p272 = scmp.eq.s32.totalorder %s82, 1
      %p273 = por %p271, %p272
      %p275 = scmp.ne.s32.totalorder %s260, %s274
      %p276 = scmp.eq.s32.totalorder %s82, 0
      %p277 = por %p275, %p276
      %s279 = sadd.s32 %s278, 1
      %p282 = scmp.eq.s32.totalorder %s76, 1
      %p283 = scmp.ne.s32.totalorder %s278, %s280
      %p284 = scmp.eq.s32.totalorder %s76, 0
      %p285 = por %p283, %p284
      %p286 = scmp.ne.s32.totalorder %s278, %s280
      %p287 = scmp.eq.s32.totalorder %s81, 1
      %p288 = por %p286, %p287
      %p289 = scmp.ne.s32.totalorder %s280, %s281
      %p290 = scmp.eq.s32.totalorder %s81, 0
      %p291 = por %p289, %p290
      %p292 = scmp.ne.s32.totalorder %s280, %s281
      %p293 = scmp.eq.s32.totalorder %s82, 1
      %p294 = por %p292, %p293
      %p296 = scmp.ne.s32.totalorder %s281, %s295
      %p297 = scmp.eq.s32.totalorder %s82, 0
      %p298 = por %p296, %p297
      %s300 = sadd.s32 %s299, 1
      %p303 = scmp.eq.s32.totalorder %s76, 1
      %p304 = scmp.ne.s32.totalorder %s299, %s301
      %p305 = scmp.eq.s32.totalorder %s76, 0
      %p306 = por %p304, %p305
      %p307 = scmp.ne.s32.totalorder %s299, %s301
      %p308 = scmp.eq.s32.totalorder %s81, 1
      %p309 = por %p307, %p308
      %p310 = scmp.ne.s32.totalorder %s301, %s302
      %p311 = scmp.eq.s32.totalorder %s81, 0
      %p312 = por %p310, %p311
      %p313 = scmp.ne.s32.totalorder %s301, %s302
      %p314 = scmp.eq.s32.totalorder %s82, 1
      %p315 = por %p313, %p314
      %p317 = scmp.ne.s32.totalorder %s302, %s316
      %p318 = scmp.eq.s32.totalorder %s82, 0
      %p319 = por %p317, %p318
      %s321 = sadd.s32 %s320, 1
      %p324 = scmp.eq.s32.totalorder %s76, 1
      %p325 = scmp.ne.s32.totalorder %s320, %s322
      %p326 = scmp.eq.s32.totalorder %s76, 0
      %p327 = por %p325, %p326
      %p328 = scmp.ne.s32.totalorder %s320, %s322
      %p329 = scmp.eq.s32.totalorder %s81, 1
      %p330 = por %p328, %p329
      %p331 = scmp.ne.s32.totalorder %s322, %s323
      %p332 = scmp.eq.s32.totalorder %s81, 0
      %p333 = por %p331, %p332
      %p334 = scmp.ne.s32.totalorder %s322, %s323
      %p335 = scmp.eq.s32.totalorder %s82, 1
      %p336 = por %p334, %p335
      %p338 = scmp.ne.s32.totalorder %s323, %s337
      %p339 = scmp.eq.s32.totalorder %s82, 0
      %p340 = por %p338, %p339
      %s342 = sadd.s32 %s341, 1
      %p345 = scmp.eq.s32.totalorder %s76, 1
      %p346 = scmp.ne.s32.totalorder %s341, %s343
      %p347 = scmp.eq.s32.totalorder %s76, 0
      %p348 = por %p346, %p347
      %p349 = scmp.ne.s32.totalorder %s341, %s343
      %p350 = scmp.eq.s32.totalorder %s81, 1
      %p351 = por %p349, %p350
      %p352 = scmp.ne.s32.totalorder %s343, %s344
      %p353 = scmp.eq.s32.totalorder %s81, 0
      %p354 = por %p352, %p353
      %p355 = scmp.ne.s32.totalorder %s343, %s344
      %p356 = scmp.eq.s32.totalorder %s82, 1
      %p357 = por %p355, %p356
      %p359 = scmp.ne.s32.totalorder %s344, %s358
      %p360 = scmp.eq.s32.totalorder %s82, 0
      %p361 = por %p359, %p360
      %s363 = sadd.s32 %s362, 1
      %p366 = scmp.eq.s32.totalorder %s76, 1
      %p367 = scmp.ne.s32.totalorder %s362, %s364
      %p368 = scmp.eq.s32.totalorder %s76, 0
      %p369 = por %p367, %p368
      %p370 = scmp.ne.s32.totalorder %s362, %s364
      %p371 = scmp.eq.s32.totalorder %s81, 1
      %p372 = por %p370, %p371
      %p373 = scmp.ne.s32.totalorder %s364, %s365
      %p374 = scmp.eq.s32.totalorder %s81, 0
      %p375 = por %p373, %p374
      %p376 = scmp.ne.s32.totalorder %s364, %s365
      %p377 = scmp.eq.s32.totalorder %s82, 1
      %p378 = por %p376, %p377
      %p380 = scmp.ne.s32.totalorder %s365, %s379
      %p381 = scmp.eq.s32.totalorder %s82, 0
      %p382 = por %p380, %p381
      %s384 = sadd.s32 %s383, 1
      %p387 = scmp.eq.s32.totalorder %s76, 1
      %p388 = scmp.ne.s32.totalorder %s383, %s385
      %p389 = scmp.eq.s32.totalorder %s76, 0
      %p390 = por %p388, %p389
      %p391 = scmp.ne.s32.totalorder %s383, %s385
      %p392 = scmp.eq.s32.totalorder %s81, 1
      %p393 = por %p391, %p392
      %p394 = scmp.ne.s32.totalorder %s385, %s386
      %p395 = scmp.eq.s32.totalorder %s81, 0
      %p396 = por %p394, %p395
      %p397 = scmp.ne.s32.totalorder %s385, %s386
      %p398 = scmp.eq.s32.totalorder %s82, 1
      %p399 = por %p397, %p398
      %p401 = scmp.ne.s32.totalorder %s386, %s400
      %p402 = scmp.eq.s32.totalorder %s82, 0
      %p403 = por %p401, %p402
      %s405 = sadd.s32 %s404, 1
      %p408 = scmp.eq.s32.totalorder %s76, 1
      %p409 = scmp.ne.s32.totalorder %s404, %s406
      %p410 = scmp.eq.s32.totalorder %s76, 0
      %p411 = por %p409, %p410
      %p412 = scmp.ne.s32.totalorder %s404, %s406
      %p413 = scmp.eq.s32.totalorder %s81, 1
      %p414 = por %p412, %p413
      %p415 = scmp.ne.s32.totalorder %s406, %s407
      %p416 = scmp.eq.s32.totalorder %s81, 0
      %p417 = por %p415, %p416
      %p418 = scmp.ne.s32.totalorder %s406, %s407
      %p419 = scmp.eq.s32.totalorder %s82, 1
      %p420 = por %p418, %p419
      %p422 = scmp.ne.s32.totalorder %s407, %s421
      %p423 = scmp.eq.s32.totalorder %s82, 0
      %p424 = por %p422, %p423
      %s426 = sadd.s32 %s425, 1
      %p429 = scmp.eq.s32.totalorder %s76, 1
      %p430 = scmp.ne.s32.totalorder %s425, %s427
      %p431 = scmp.eq.s32.totalorder %s76, 0
      %p432 = por %p430, %p431
      %p433 = scmp.ne.s32.totalorder %s425, %s427
      %p434 = scmp.eq.s32.totalorder %s81, 1
      %p435 = por %p433, %p434
      %p436 = scmp.ne.s32.totalorder %s427, %s428
      %p437 = scmp.eq.s32.totalorder %s81, 0
      %p438 = por %p436, %p437
      %p439 = scmp.ne.s32.totalorder %s427, %s428
      %p440 = scmp.eq.s32.totalorder %s82, 1
      %p441 = por %p439, %p440
      %p443 = scmp.ne.s32.totalorder %s428, %s442
      %p444 = scmp.eq.s32.totalorder %s82, 0
      %p445 = por %p443, %p444
      %s447 = sadd.s32 %s446, 1
      %p450 = scmp.eq.s32.totalorder %s76, 1
      %p451 = scmp.ne.s32.totalorder %s446, %s448
      %p452 = scmp.eq.s32.totalorder %s76, 0
      %p453 = por %p451, %p452
      %p454 = scmp.ne.s32.totalorder %s446, %s448
      %p455 = scmp.eq.s32.totalorder %s81, 1
      %p456 = por %p454, %p455
      %p457 = scmp.ne.s32.totalorder %s448, %s449
      %p458 = scmp.eq.s32.totalorder %s81, 0
      %p459 = por %p457, %p458
      %p460 = scmp.ne.s32.totalorder %s448, %s449
      %p461 = scmp.eq.s32.totalorder %s82, 1
      %p462 = por %p460, %p461
      %p464 = scmp.ne.s32.totalorder %s449, %s463
      %p465 = scmp.eq.s32.totalorder %s82, 0
      %p466 = por %p464, %p465
      %s468 = sadd.s32 %s467, 1
      %p471 = scmp.eq.s32.totalorder %s76, 1
      %p472 = scmp.ne.s32.totalorder %s467, %s469
      %p473 = scmp.eq.s32.totalorder %s76, 0
      %p474 = por %p472, %p473
      %p475 = scmp.ne.s32.totalorder %s467, %s469
      %p476 = scmp.eq.s32.totalorder %s81, 1
      %p477 = por %p475, %p476
      %p478 = scmp.ne.s32.totalorder %s469, %s470
      %p479 = scmp.eq.s32.totalorder %s81, 0
      %p480 = por %p478, %p479
      %p481 = scmp.ne.s32.totalorder %s469, %s470
      %p482 = scmp.eq.s32.totalorder %s82, 1
      %p483 = por %p481, %p482
      %p485 = scmp.ne.s32.totalorder %s470, %s484
      %p486 = scmp.eq.s32.totalorder %s82, 0
      %p487 = por %p485, %p486
      %s489 = sadd.s32 %s488, 1
      %p492 = scmp.eq.s32.totalorder %s76, 1
      %p493 = scmp.ne.s32.totalorder %s488, %s490
      %p494 = scmp.eq.s32.totalorder %s76, 0
      %p495 = por %p493, %p494
      %p496 = scmp.ne.s32.totalorder %s488, %s490
      %p497 = scmp.eq.s32.totalorder %s81, 1
      %p498 = por %p496, %p497
      %p499 = scmp.ne.s32.totalorder %s490, %s491
      %p500 = scmp.eq.s32.totalorder %s81, 0
      %p501 = por %p499, %p500
      %p502 = scmp.ne.s32.totalorder %s490, %s491
      %p503 = scmp.eq.s32.totalorder %s82, 1
      %p504 = por %p502, %p503
      %p506 = scmp.ne.s32.totalorder %s491, %s505
      %p507 = scmp.eq.s32.totalorder %s82, 0
      %p508 = por %p506, %p507
      %s510 = sadd.s32 %s509, 1
      %p513 = scmp.eq.s32.totalorder %s76, 1
      %p514 = scmp.ne.s32.totalorder %s509, %s511
      %p515 = scmp.eq.s32.totalorder %s76, 0
      %p516 = por %p514, %p515
      %p517 = scmp.ne.s32.totalorder %s509, %s511
      %p518 = scmp.eq.s32.totalorder %s81, 1
      %p519 = por %p517, %p518
      %p520 = scmp.ne.s32.totalorder %s511, %s512
      %p521 = scmp.eq.s32.totalorder %s81, 0
      %p522 = por %p520, %p521
      %p523 = scmp.ne.s32.totalorder %s511, %s512
      %p524 = scmp.eq.s32.totalorder %s82, 1
      %p525 = por %p523, %p524
      %p527 = scmp.ne.s32.totalorder %s512, %s526
      %p528 = scmp.eq.s32.totalorder %s82, 0
      %p529 = por %p527, %p528
      %s531 = sadd.s32 %s530, 1
      %p534 = scmp.eq.s32.totalorder %s76, 1
      %p535 = scmp.ne.s32.totalorder %s530, %s532
      %p536 = scmp.eq.s32.totalorder %s76, 0
      %p537 = por %p535, %p536
      %p538 = scmp.ne.s32.totalorder %s530, %s532
      %p539 = scmp.eq.s32.totalorder %s81, 1
      %p540 = por %p538, %p539
      %p541 = scmp.ne.s32.totalorder %s532, %s533
      %p542 = scmp.eq.s32.totalorder %s81, 0
      %p543 = por %p541, %p542
      %p544 = scmp.ne.s32.totalorder %s532, %s533
      %p545 = scmp.eq.s32.totalorder %s82, 1
      %p546 = por %p544, %p545
      %p548 = scmp.ne.s32.totalorder %s533, %s547
      %p549 = scmp.eq.s32.totalorder %s82, 0
      %p550 = por %p548, %p549
      %s552 = sadd.s32 %s551, 1
      %p555 = scmp.eq.s32.totalorder %s76, 1
      %p556 = scmp.ne.s32.totalorder %s551, %s553
      %p557 = scmp.eq.s32.totalorder %s76, 0
      %p558 = por %p556, %p557
      %p559 = scmp.ne.s32.totalorder %s551, %s553
      %p560 = scmp.eq.s32.totalorder %s81, 1
      %p561 = por %p559, %p560
      %p562 = scmp.ne.s32.totalorder %s553, %s554
      %p563 = scmp.eq.s32.totalorder %s81, 0
      %p564 = por %p562, %p563
      %p565 = scmp.ne.s32.totalorder %s553, %s554
      %p566 = scmp.eq.s32.totalorder %s82, 1
      %p567 = por %p565, %p566
      %p569 = scmp.ne.s32.totalorder %s554, %s568
      %p570 = scmp.eq.s32.totalorder %s82, 0
      %p571 = por %p569, %p570
      %s573 = sadd.s32 %s572, 1
      %p576 = scmp.eq.s32.totalorder %s76, 1
      %p577 = scmp.ne.s32.totalorder %s572, %s574
      %p578 = scmp.eq.s32.totalorder %s76, 0
      %p579 = por %p577, %p578
      %p580 = scmp.ne.s32.totalorder %s572, %s574
      %p581 = scmp.eq.s32.totalorder %s81, 1
      %p582 = por %p580, %p581
      %p583 = scmp.ne.s32.totalorder %s574, %s575
      %p584 = scmp.eq.s32.totalorder %s81, 0
      %p585 = por %p583, %p584
      %p586 = scmp.ne.s32.totalorder %s574, %s575
      %p587 = scmp.eq.s32.totalorder %s82, 1
      %p588 = por %p586, %p587
      %p590 = scmp.ne.s32.totalorder %s575, %s589
      %p591 = scmp.eq.s32.totalorder %s82, 0
      %p592 = por %p590, %p591
      %s594 = sadd.s32 %s593, 1
      %p597 = scmp.eq.s32.totalorder %s76, 1
      %p598 = scmp.ne.s32.totalorder %s593, %s595
      %p599 = scmp.eq.s32.totalorder %s76, 0
      %p600 = por %p598, %p599
      %p601 = scmp.ne.s32.totalorder %s593, %s595
      %p602 = scmp.eq.s32.totalorder %s81, 1
      %p603 = por %p601, %p602
      %p604 = scmp.ne.s32.totalorder %s595, %s596
      %p605 = scmp.eq.s32.totalorder %s81, 0
      %p606 = por %p604, %p605
      %p607 = scmp.ne.s32.totalorder %s595, %s596
      %p608 = scmp.eq.s32.totalorder %s82, 1
      %p609 = por %p607, %p608
      %p611 = scmp.ne.s32.totalorder %s596, %s610
      %p612 = scmp.eq.s32.totalorder %s82, 0
      %p613 = por %p611, %p612
      %s615 = sadd.s32 %s614, 1
      %p618 = scmp.eq.s32.totalorder %s76, 1
      %p619 = scmp.ne.s32.totalorder %s614, %s616
      %p620 = scmp.eq.s32.totalorder %s76, 0
      %p621 = por %p619, %p620
      %p622 = scmp.ne.s32.totalorder %s614, %s616
      %p623 = scmp.eq.s32.totalorder %s81, 1
      %p624 = por %p622, %p623
      %p625 = scmp.ne.s32.totalorder %s616, %s617
      %p626 = scmp.eq.s32.totalorder %s81, 0
      %p627 = por %p625, %p626
      %p628 = scmp.ne.s32.totalorder %s616, %s617
      %p629 = scmp.eq.s32.totalorder %s82, 1
      %p630 = por %p628, %p629
      %p632 = scmp.ne.s32.totalorder %s617, %s631
      %p633 = scmp.eq.s32.totalorder %s82, 0
      %p634 = por %p632, %p633
      %s636 = sadd.s32 %s635, 1
      %p639 = scmp.eq.s32.totalorder %s76, 1
      %p640 = scmp.ne.s32.totalorder %s635, %s637
      %p641 = scmp.eq.s32.totalorder %s76, 0
      %p642 = por %p640, %p641
      %p643 = scmp.ne.s32.totalorder %s635, %s637
      %p644 = scmp.eq.s32.totalorder %s81, 1
      %p645 = por %p643, %p644
      %p646 = scmp.ne.s32.totalorder %s637, %s638
      %p647 = scmp.eq.s32.totalorder %s81, 0
      %p648 = por %p646, %p647
      %p649 = scmp.ne.s32.totalorder %s637, %s638
      %p650 = scmp.eq.s32.totalorder %s82, 1
      %p651 = por %p649, %p650
      %p653 = scmp.ne.s32.totalorder %s638, %s652
      %p654 = scmp.eq.s32.totalorder %s82, 0
      %p655 = por %p653, %p654
      %s657 = sadd.s32 %s656, 1
      %p660 = scmp.eq.s32.totalorder %s76, 1
      %p661 = scmp.ne.s32.totalorder %s656, %s658
      %p662 = scmp.eq.s32.totalorder %s76, 0
      %p663 = por %p661, %p662
      %p664 = scmp.ne.s32.totalorder %s656, %s658
      %p665 = scmp.eq.s32.totalorder %s81, 1
      %p666 = por %p664, %p665
      %p667 = scmp.ne.s32.totalorder %s658, %s659
      %p668 = scmp.eq.s32.totalorder %s81, 0
      %p669 = por %p667, %p668
      %p670 = scmp.ne.s32.totalorder %s658, %s659
      %p671 = scmp.eq.s32.totalorder %s82, 1
      %p672 = por %p670, %p671
      %p674 = scmp.ne.s32.totalorder %s659, %s673
      %p675 = scmp.eq.s32.totalorder %s82, 0
      %p676 = por %p674, %p675
      %s678 = sadd.s32 %s677, 1
      %p681 = scmp.eq.s32.totalorder %s76, 1
      %p682 = scmp.ne.s32.totalorder %s677, %s679
      %p683 = scmp.eq.s32.totalorder %s76, 0
      %p684 = por %p682, %p683
      %p685 = scmp.ne.s32.totalorder %s677, %s679
      %p686 = scmp.eq.s32.totalorder %s81, 1
      %p687 = por %p685, %p686
      %p688 = scmp.ne.s32.totalorder %s679, %s680
      %p689 = scmp.eq.s32.totalorder %s81, 0
      %p690 = por %p688, %p689
      %p691 = scmp.ne.s32.totalorder %s679, %s680
      %p692 = scmp.eq.s32.totalorder %s82, 1
      %p693 = por %p691, %p692
      %p695 = scmp.ne.s32.totalorder %s680, %s694
      %p696 = scmp.eq.s32.totalorder %s82, 0
      %p697 = por %p695, %p696
      %s699 = sadd.s32 %s698, 1
      %p702 = scmp.eq.s32.totalorder %s76, 1
      %p703 = scmp.ne.s32.totalorder %s698, %s700
      %p704 = scmp.eq.s32.totalorder %s76, 0
      %p705 = por %p703, %p704
      %p706 = scmp.ne.s32.totalorder %s698, %s700
      %p707 = scmp.eq.s32.totalorder %s81, 1
      %p708 = por %p706, %p707
      %p709 = scmp.ne.s32.totalorder %s700, %s701
      %p710 = scmp.eq.s32.totalorder %s81, 0
      %p711 = por %p709, %p710
      %p712 = scmp.ne.s32.totalorder %s700, %s701
      %p713 = scmp.eq.s32.totalorder %s82, 1
      %p714 = por %p712, %p713
      %p716 = scmp.ne.s32.totalorder %s701, %s715
      %p717 = scmp.eq.s32.totalorder %s82, 0
      %p718 = por %p716, %p717
      %s720 = sadd.s32 %s719, 1
      %p723 = scmp.eq.s32.totalorder %s76, 1
      %p724 = scmp.ne.s32.totalorder %s719, %s721
      %p725 = scmp.eq.s32.totalorder %s76, 0
      %p726 = por %p724, %p725
      %p727 = scmp.ne.s32.totalorder %s719, %s721
      %p728 = scmp.eq.s32.totalorder %s81, 1
      %p729 = por %p727, %p728
      %p730 = scmp.ne.s32.totalorder %s721, %s722
      %p731 = scmp.eq.s32.totalorder %s81, 0
      %p732 = por %p730, %p731
      %p733 = scmp.ne.s32.totalorder %s721, %s722
      %p734 = scmp.eq.s32.totalorder %s82, 1
      %p735 = por %p733, %p734
      %p737 = scmp.ne.s32.totalorder %s722, %s736
      %p738 = scmp.eq.s32.totalorder %s82, 0
      %p739 = por %p737, %p738
      %s741 = sadd.s32 %s740, 1
      %p744 = scmp.eq.s32.totalorder %s76, 1
      %p745 = scmp.ne.s32.totalorder %s740, %s742
      %p746 = scmp.eq.s32.totalorder %s76, 0
      %p747 = por %p745, %p746
      %p748 = scmp.ne.s32.totalorder %s740, %s742
      %p749 = scmp.eq.s32.totalorder %s81, 1
      %p750 = por %p748, %p749
      %p751 = scmp.ne.s32.totalorder %s742, %s743
      %p752 = scmp.eq.s32.totalorder %s81, 0
      %p753 = por %p751, %p752
      %p754 = scmp.ne.s32.totalorder %s742, %s743
      %p755 = scmp.eq.s32.totalorder %s82, 1
      %p756 = por %p754, %p755
      %p758 = scmp.ne.s32.totalorder %s743, %s757
      %p759 = scmp.eq.s32.totalorder %s82, 0
      %p760 = por %p758, %p759
      %s762 = sadd.s32 %s761, 1
      %p765 = scmp.eq.s32.totalorder %s76, 1
      %p766 = scmp.ne.s32.totalorder %s761, %s763
      %p767 = scmp.eq.s32.totalorder %s76, 0
      %p768 = por %p766, %p767
      %p769 = scmp.ne.s32.totalorder %s761, %s763
      %p770 = scmp.eq.s32.totalorder %s81, 1
      %p771 = por %p769, %p770
      %p772 = scmp.ne.s32.totalorder %s763, %s764
      %p773 = scmp.eq.s32.totalorder %s81, 0
      %p774 = por %p772, %p773
      %p775 = scmp.ne.s32.totalorder %s763, %s764
      %p776 = scmp.eq.s32.totalorder %s82, 1
      %p777 = por %p775, %p776
      %p779 = scmp.ne.s32.totalorder %s764, %s778
      %p780 = scmp.eq.s32.totalorder %s82, 0
      %p781 = por %p779, %p780
      %s782 = ssub.s32 %s76, %s83
      %p783 = scmp.eq.s32.totalorder %s782, 0
      %s785 = sadd.s32 %s784, 1
      %s786 = scalar_select %p783, %s784, %s785
      %p789 = pneg %p783
      %p790 = scmp.eq.s32.totalorder %s76, 1
      %p791 = por %p789, %p790
      %p792 = scmp.ne.s32.totalorder %s784, %s787
      %p793 = scmp.eq.s32.totalorder %s76, 0
      %p794 = por %p792, %p793
      %p795 = scmp.ne.s32.totalorder %s784, %s787
      %p796 = scmp.eq.s32.totalorder %s81, 1
      %p797 = por %p795, %p796
      %p798 = scmp.ne.s32.totalorder %s787, %s788
      %p799 = scmp.eq.s32.totalorder %s81, 0
      %p800 = por %p798, %p799
      %p801 = scmp.ne.s32.totalorder %s787, %s788
      %p802 = scmp.eq.s32.totalorder %s82, 1
      %p803 = por %p801, %p802
      %p805 = scmp.ne.s32.totalorder %s788, %s804
      %p806 = scmp.eq.s32.totalorder %s82, 0
      %p807 = por %p805, %p806
      %p808 = scmp.le.s32.totalorder 1, %s76
      %p809 = scmp.lt.s32.totalorder %s76, 3
      %p810 = pnand %p808, %p809
      %p811 = pneg %p810
      // Predicated region
      $region9: #{conformer_block_forward.1} parent=5 // pred_check
        _
      $region10: #{conformer_block_forward.1} parent=5 // pred_check_branch
        %813 = sbr.rel (%p810) target = $region12
      $region11: #{conformer_block_forward.1} parent=5 // pred_region
        %s814 = ssub.s32 %s76, 1
        // Predicated region
        $region13: #{conformer_block_forward.1} parent=11 // pred_check
          %p815 = pneg %p123
        $region14: #{conformer_block_forward.1} parent=11 // pred_check_branch
          %817 = sbr.rel (%p815) target = $region16
        $region15: #{conformer_block_forward.1} parent=11 // pred_region
          _
        $region16: #{conformer_block_forward.1} parent=11 // pred_fallthru
          _
        // Predicated region
        $region17: #{conformer_block_forward.1} parent=11 // pred_check
          %p818 = pneg %p144
        $region18: #{conformer_block_forward.1} parent=11 // pred_check_branch
          %820 = sbr.rel (%p818) target = $region20
        $region19: #{conformer_block_forward.1} parent=11 // pred_region
          _
        $region20: #{conformer_block_forward.1} parent=11 // pred_fallthru
          _
        // Predicated region
        $region21: #{conformer_block_forward.1} parent=11 // pred_check
          %p821 = pneg %p165
        $region22: #{conformer_block_forward.1} parent=11 // pred_check_branch
          %823 = sbr.rel (%p821) target = $region24
        $region23: #{conformer_block_forward.1} parent=11 // pred_region
          _
        $region24: #{conformer_block_forward.1} parent=11 // pred_fallthru
          _
        // Predicated region
        $region25: #{conformer_block_forward.1} parent=11 // pred_check
          %p824 = pneg %p186
        $region26: #{conformer_block_forward.1} parent=11 // pred_check_branch
          %826 = sbr.rel (%p824) target = $region28
        $region27: #{conformer_block_forward.1} parent=11 // pred_region
          _
        $region28: #{conformer_block_forward.1} parent=11 // pred_fallthru
          _
        // Predicated region
        $region29: #{conformer_block_forward.1} parent=11 // pred_check
          %p827 = pneg %p207
        $region30: #{conformer_block_forward.1} parent=11 // pred_check_branch
          %829 = sbr.rel (%p827) target = $region32
        $region31: #{conformer_block_forward.1} parent=11 // pred_region
          _
        $region32: #{conformer_block_forward.1} parent=11 // pred_fallthru
          _
        // Predicated region
        $region33: #{conformer_block_forward.1} parent=11 // pred_check
          %p830 = pneg %p228
        $region34: #{conformer_block_forward.1} parent=11 // pred_check_branch
          %832 = sbr.rel (%p830) target = $region36
        $region35: #{conformer_block_forward.1} parent=11 // pred_region
          _
        $region36: #{conformer_block_forward.1} parent=11 // pred_fallthru
          _
        // Predicated region
        $region37: #{conformer_block_forward.1} parent=11 // pred_check
          %p833 = pneg %p249
        $region38: #{conformer_block_forward.1} parent=11 // pred_check_branch
          %835 = sbr.rel (%p833) target = $region40
        $region39: #{conformer_block_forward.1} parent=11 // pred_region
          _
        $region40: #{conformer_block_forward.1} parent=11 // pred_fallthru
          _
        // Predicated region
        $region41: #{conformer_block_forward.1} parent=11 // pred_check
          %p836 = pneg %p270
        $region42: #{conformer_block_forward.1} parent=11 // pred_check_branch
          %838 = sbr.rel (%p836) target = $region44
        $region43: #{conformer_block_forward.1} parent=11 // pred_region
          _
        $region44: #{conformer_block_forward.1} parent=11 // pred_fallthru
          _
        // Predicated region
        $region45: #{conformer_block_forward.1} parent=11 // pred_check
          %p839 = pneg %p291
        $region46: #{conformer_block_forward.1} parent=11 // pred_check_branch
          %841 = sbr.rel (%p839) target = $region48
        $region47: #{conformer_block_forward.1} parent=11 // pred_region
          _
        $region48: #{conformer_block_forward.1} parent=11 // pred_fallthru
          _
        // Predicated region
        $region49: #{conformer_block_forward.1} parent=11 // pred_check
          %p842 = pneg %p312
        $region50: #{conformer_block_forward.1} parent=11 // pred_check_branch
          %844 = sbr.rel (%p842) target = $region52
        $region51: #{conformer_block_forward.1} parent=11 // pred_region
          _
        $region52: #{conformer_block_forward.1} parent=11 // pred_fallthru
          _
        // Predicated region
        $region53: #{conformer_block_forward.1} parent=11 // pred_check
          %p845 = pneg %p333
        $region54: #{conformer_block_forward.1} parent=11 // pred_check_branch
          %847 = sbr.rel (%p845) target = $region56
        $region55: #{conformer_block_forward.1} parent=11 // pred_region
          _
        $region56: #{conformer_block_forward.1} parent=11 // pred_fallthru
          _
        // Predicated region
        $region57: #{conformer_block_forward.1} parent=11 // pred_check
          %p848 = pneg %p354
        $region58: #{conformer_block_forward.1} parent=11 // pred_check_branch
          %850 = sbr.rel (%p848) target = $region60
        $region59: #{conformer_block_forward.1} parent=11 // pred_region
          _
        $region60: #{conformer_block_forward.1} parent=11 // pred_fallthru
          _
        // Predicated region
        $region61: #{conformer_block_forward.1} parent=11 // pred_check
          %p851 = pneg %p375
        $region62: #{conformer_block_forward.1} parent=11 // pred_check_branch
          %853 = sbr.rel (%p851) target = $region64
        $region63: #{conformer_block_forward.1} parent=11 // pred_region
          _
        $region64: #{conformer_block_forward.1} parent=11 // pred_fallthru
          _
        // Predicated region
        $region65: #{conformer_block_forward.1} parent=11 // pred_check
          %p854 = pneg %p396
        $region66: #{conformer_block_forward.1} parent=11 // pred_check_branch
          %856 = sbr.rel (%p854) target = $region68
        $region67: #{conformer_block_forward.1} parent=11 // pred_region
          _
        $region68: #{conformer_block_forward.1} parent=11 // pred_fallthru
          _
        // Predicated region
        $region69: #{conformer_block_forward.1} parent=11 // pred_check
          %p857 = pneg %p417
        $region70: #{conformer_block_forward.1} parent=11 // pred_check_branch
          %859 = sbr.rel (%p857) target = $region72
        $region71: #{conformer_block_forward.1} parent=11 // pred_region
          _
        $region72: #{conformer_block_forward.1} parent=11 // pred_fallthru
          _
        // Predicated region
        $region73: #{conformer_block_forward.1} parent=11 // pred_check
          %p860 = pneg %p438
        $region74: #{conformer_block_forward.1} parent=11 // pred_check_branch
          %862 = sbr.rel (%p860) target = $region76
        $region75: #{conformer_block_forward.1} parent=11 // pred_region
          _
        $region76: #{conformer_block_forward.1} parent=11 // pred_fallthru
          _
        // Predicated region
        $region77: #{conformer_block_forward.1} parent=11 // pred_check
          %p863 = pneg %p459
        $region78: #{conformer_block_forward.1} parent=11 // pred_check_branch
          %865 = sbr.rel (%p863) target = $region80
        $region79: #{conformer_block_forward.1} parent=11 // pred_region
          _
        $region80: #{conformer_block_forward.1} parent=11 // pred_fallthru
          _
        // Predicated region
        $region81: #{conformer_block_forward.1} parent=11 // pred_check
          %p866 = pneg %p480
        $region82: #{conformer_block_forward.1} parent=11 // pred_check_branch
          %868 = sbr.rel (%p866) target = $region84
        $region83: #{conformer_block_forward.1} parent=11 // pred_region
          _
        $region84: #{conformer_block_forward.1} parent=11 // pred_fallthru
          _
        // Predicated region
        $region85: #{conformer_block_forward.1} parent=11 // pred_check
          %p869 = pneg %p501
        $region86: #{conformer_block_forward.1} parent=11 // pred_check_branch
          %871 = sbr.rel (%p869) target = $region88
        $region87: #{conformer_block_forward.1} parent=11 // pred_region
          _
        $region88: #{conformer_block_forward.1} parent=11 // pred_fallthru
          _
        // Predicated region
        $region89: #{conformer_block_forward.1} parent=11 // pred_check
          %p872 = pneg %p522
        $region90: #{conformer_block_forward.1} parent=11 // pred_check_branch
          %874 = sbr.rel (%p872) target = $region92
        $region91: #{conformer_block_forward.1} parent=11 // pred_region
          _
        $region92: #{conformer_block_forward.1} parent=11 // pred_fallthru
          _
        // Predicated region
        $region93: #{conformer_block_forward.1} parent=11 // pred_check
          %p875 = pneg %p543
        $region94: #{conformer_block_forward.1} parent=11 // pred_check_branch
          %877 = sbr.rel (%p875) target = $region96
        $region95: #{conformer_block_forward.1} parent=11 // pred_region
          _
        $region96: #{conformer_block_forward.1} parent=11 // pred_fallthru
          _
        // Predicated region
        $region97: #{conformer_block_forward.1} parent=11 // pred_check
          %p878 = pneg %p564
        $region98: #{conformer_block_forward.1} parent=11 // pred_check_branch
          %880 = sbr.rel (%p878) target = $region100
        $region99: #{conformer_block_forward.1} parent=11 // pred_region
          _
        $region100: #{conformer_block_forward.1} parent=11 // pred_fallthru
          _
        // Predicated region
        $region101: #{conformer_block_forward.1} parent=11 // pred_check
          %p881 = pneg %p585
        $region102: #{conformer_block_forward.1} parent=11 // pred_check_branch
          %883 = sbr.rel (%p881) target = $region104
        $region103: #{conformer_block_forward.1} parent=11 // pred_region
          _
        $region104: #{conformer_block_forward.1} parent=11 // pred_fallthru
          _
        // Predicated region
        $region105: #{conformer_block_forward.1} parent=11 // pred_check
          %p884 = pneg %p606
        $region106: #{conformer_block_forward.1} parent=11 // pred_check_branch
          %886 = sbr.rel (%p884) target = $region108
        $region107: #{conformer_block_forward.1} parent=11 // pred_region
          _
        $region108: #{conformer_block_forward.1} parent=11 // pred_fallthru
          _
        // Predicated region
        $region109: #{conformer_block_forward.1} parent=11 // pred_check
          %p887 = pneg %p627
        $region110: #{conformer_block_forward.1} parent=11 // pred_check_branch
          %889 = sbr.rel (%p887) target = $region112
        $region111: #{conformer_block_forward.1} parent=11 // pred_region
          _
        $region112: #{conformer_block_forward.1} parent=11 // pred_fallthru
          _
        // Predicated region
        $region113: #{conformer_block_forward.1} parent=11 // pred_check
          %p890 = pneg %p648
        $region114: #{conformer_block_forward.1} parent=11 // pred_check_branch
          %892 = sbr.rel (%p890) target = $region116
        $region115: #{conformer_block_forward.1} parent=11 // pred_region
          _
        $region116: #{conformer_block_forward.1} parent=11 // pred_fallthru
          _
        // Predicated region
        $region117: #{conformer_block_forward.1} parent=11 // pred_check
          %p893 = pneg %p669
        $region118: #{conformer_block_forward.1} parent=11 // pred_check_branch
          %895 = sbr.rel (%p893) target = $region120
        $region119: #{conformer_block_forward.1} parent=11 // pred_region
          _
        $region120: #{conformer_block_forward.1} parent=11 // pred_fallthru
          _
        // Predicated region
        $region121: #{conformer_block_forward.1} parent=11 // pred_check
          %p896 = pneg %p690
        $region122: #{conformer_block_forward.1} parent=11 // pred_check_branch
          %898 = sbr.rel (%p896) target = $region124
        $region123: #{conformer_block_forward.1} parent=11 // pred_region
          _
        $region124: #{conformer_block_forward.1} parent=11 // pred_fallthru
          _
        // Predicated region
        $region125: #{conformer_block_forward.1} parent=11 // pred_check
          %p899 = pneg %p711
        $region126: #{conformer_block_forward.1} parent=11 // pred_check_branch
          %901 = sbr.rel (%p899) target = $region128
        $region127: #{conformer_block_forward.1} parent=11 // pred_region
          _
        $region128: #{conformer_block_forward.1} parent=11 // pred_fallthru
          _
        // Predicated region
        $region129: #{conformer_block_forward.1} parent=11 // pred_check
          %p902 = pneg %p732
        $region130: #{conformer_block_forward.1} parent=11 // pred_check_branch
          %904 = sbr.rel (%p902) target = $region132
        $region131: #{conformer_block_forward.1} parent=11 // pred_region
          _
        $region132: #{conformer_block_forward.1} parent=11 // pred_fallthru
          _
        // Predicated region
        $region133: #{conformer_block_forward.1} parent=11 // pred_check
          %p905 = pneg %p753
        $region134: #{conformer_block_forward.1} parent=11 // pred_check_branch
          %907 = sbr.rel (%p905) target = $region136
        $region135: #{conformer_block_forward.1} parent=11 // pred_region
          _
        $region136: #{conformer_block_forward.1} parent=11 // pred_fallthru
          _
        // Predicated region
        $region137: #{conformer_block_forward.1} parent=11 // pred_check
          %p908 = pneg %p774
        $region138: #{conformer_block_forward.1} parent=11 // pred_check_branch
          %910 = sbr.rel (%p908) target = $region140
        $region139: #{conformer_block_forward.1} parent=11 // pred_region
          _
        $region140: #{conformer_block_forward.1} parent=11 // pred_fallthru
          _
      $region12: #{conformer_block_forward.1} parent=5 // pred_fallthru
        _
      %p911 = scmp.lt.s32.totalorder %s76, 2
      // Predicated region
      $region141: #{conformer_block_forward.1} parent=5 // pred_check
        %p912 = pneg %p911
      $region142: #{conformer_block_forward.1} parent=5 // pred_check_branch
        %914 = sbr.rel (%p912) target = $region144
      $region143: #{conformer_block_forward.1} parent=5 // pred_region
        // Predicated region
        $region145: #{conformer_block_forward.1} parent=143 // pred_check
          %p915 = pneg %p96
        $region146: #{conformer_block_forward.1} parent=143 // pred_check_branch
          %917 = sbr.rel (%p915) target = $region148
        $region147: #{conformer_block_forward.1} parent=143 // pred_region
          %p918 = scmp.lt.s32.totalorder %s76, 1
          %s919 = scalar_select %p918, %s76, 1
          %s920 = smul.addr %s919, 2
          %s921 = smul.addr %s920, 8
          %s922 = scalar_lea.vmem %s1, %s921
        $region148: #{conformer_block_forward.1} parent=143 // pred_fallthru
          _
      $region144: #{conformer_block_forward.1} parent=5 // pred_fallthru
        _
      %p923 = scmp.le.s32.totalorder 1, %s76
      %p924 = scmp.lt.s32.totalorder %s76, 3
      %p925 = pnand %p923, %p924
      %p926 = pneg %p925
      // Predicated region
      $region149: #{conformer_block_forward.1} parent=5 // pred_check
        _
      $region150: #{conformer_block_forward.1} parent=5 // pred_check_branch
        %928 = sbr.rel (%p925) target = $region152
      $region151: #{conformer_block_forward.1} parent=5 // pred_region
        %s929 = ssub.s32 %s76, 1
        %p930 = scmp.lt.s32.totalorder %s81, 1
        %s931 = scalar_select %p930, %s81, 1
        %s932 = smul.addr %s931, 2
        %s933 = smul.addr %s932, 8
        %s934 = scalar_lea.vmem %s1, %s933
        %p935 = pneg %p102
        %p936 = pneg %p99
        %p937 = pneg %p123
        %p938 = pneg %p120
        %p939 = pneg %p144
        %p940 = pneg %p141
        %p941 = pneg %p165
        %p942 = pneg %p162
        %p943 = pneg %p186
        %p944 = pneg %p183
        %p945 = pneg %p207
        %p946 = pneg %p204
        %p947 = pneg %p228
        %p948 = pneg %p225
        %p949 = pneg %p249
        %p950 = pneg %p246
        %p951 = pneg %p270
        %p952 = pneg %p267
        %p953 = pneg %p291
        %p954 = pneg %p288
        %p955 = pneg %p312
        %p956 = pneg %p309
        %p957 = pneg %p333
        %p958 = pneg %p330
        %p959 = pneg %p354
        %p960 = pneg %p351
        %p961 = pneg %p375
        %p962 = pneg %p372
        %p963 = pneg %p396
        %p964 = pneg %p393
        %p965 = pneg %p417
        %p966 = pneg %p414
        %p967 = pneg %p438
        %p968 = pneg %p435
        %p969 = pneg %p459
        %p970 = pneg %p456
        %p971 = pneg %p480
        %p972 = pneg %p477
        %p973 = pneg %p501
        %p974 = pneg %p498
        %p975 = pneg %p522
        %p976 = pneg %p519
        %p977 = pneg %p543
        %p978 = pneg %p540
        %p979 = pneg %p564
        %p980 = pneg %p561
        %p981 = pneg %p585
        %p982 = pneg %p582
        %p983 = pneg %p606
        %p984 = pneg %p603
        %p985 = pneg %p627
        %p986 = pneg %p624
        %p987 = pneg %p648
        %p988 = pneg %p645
        %p989 = pneg %p669
        %p990 = pneg %p666
        %p991 = pneg %p690
        %p992 = pneg %p687
        %p993 = pneg %p711
        %p994 = pneg %p708
        %p995 = pneg %p732
        %p996 = pneg %p729
        %p997 = pneg %p753
        %p998 = pneg %p750
        %p999 = pneg %p774
        %p1000 = pneg %p771
        %p1001 = pneg %p800
        %p1002 = pneg %p797
        %s1003 = sand.u32 %s787, 1
        %s1004 = scalar_lea.sflag [#allocation3], %s1003
        %s1005 = sand.u32 %s787, 1
        %s1006 = smul.addr %s1005, 16
        %s1007 = scalar_lea.vmem [#allocation2], %s1006
        %p1008 = scmp.lt.s32.totalorder %s81, 1
        %s1009 = scalar_select %p1008, %s81, 1
        %s1010 = smul.addr %s1009, 2
        %s1011 = smul.addr %s1010, 8
        %s1012 = scalar_lea.vmem %s1, %s1011
        %v1014 = vld [vmem:[%s1012] sm:$0xff]
        %v1015 = vld [vmem:[%s1012 + $0x8] sm:$0xff]
        %v1016 = vld [vmem:[%s3] sm:$0x1]
        %v1017 = vld [vmem:[%s5] sm:$0x1]
        %v1018 = vld [vmem:[%s7] sm:$0xff]
        %v1019 = vld [vmem:[%s7 + $0x8] sm:$0xff]
        %v1020 = vld [vmem:[%s7 + $0x10] sm:$0xff]
        %v1021 = vld [vmem:[%s7 + $0x18] sm:$0xff]
        %v1022 = vld [vmem:[%s7 + $0x20] sm:$0xff]
        %v1023 = vld [vmem:[%s7 + $0x28] sm:$0xff]
        %v1024 = vld [vmem:[%s7 + $0x30] sm:$0xff]
        %v1025 = vld [vmem:[%s7 + $0x38] sm:$0xff]
        %v1026 = vld [vmem:[%s9] sm:$0x3]
        %v1027 = vld [vmem:[%s11] sm:$0xf]
        %v1028 = vld [vmem:[%s11 + $0x4] sm:$0xf]
        %v1029 = vld [vmem:[%s11 + $0x8] sm:$0xf]
        %v1030 = vld [vmem:[%s11 + $0xc] sm:$0xf]
        %v1031 = vld [vmem:[%s11 + $0x10] sm:$0xf]
        %v1032 = vld [vmem:[%s11 + $0x14] sm:$0xf]
        %v1033 = vld [vmem:[%s11 + $0x18] sm:$0xf]
        %v1034 = vld [vmem:[%s11 + $0x1c] sm:$0xf]
        %v1035 = vld [vmem:[%s11 + $0x20] sm:$0xf]
        %v1036 = vld [vmem:[%s11 + $0x24] sm:$0xf]
        %v1037 = vld [vmem:[%s11 + $0x28] sm:$0xf]
        %v1038 = vld [vmem:[%s11 + $0x2c] sm:$0xf]
        %v1039 = vld [vmem:[%s11 + $0x30] sm:$0xf]
        %v1040 = vld [vmem:[%s11 + $0x34] sm:$0xf]
        %v1041 = vld [vmem:[%s11 + $0x38] sm:$0xf]
        %v1042 = vld [vmem:[%s11 + $0x3c] sm:$0xf]
        %v1043 = vld [vmem:[%s11 + $0x40] sm:$0xf]
        %v1044 = vld [vmem:[%s11 + $0x44] sm:$0xf]
        %v1045 = vld [vmem:[%s11 + $0x48] sm:$0xf]
        %v1046 = vld [vmem:[%s11 + $0x4c] sm:$0xf]
        %v1047 = vld [vmem:[%s11 + $0x50] sm:$0xf]
        %v1048 = vld [vmem:[%s11 + $0x54] sm:$0xf]
        %v1049 = vld [vmem:[%s11 + $0x58] sm:$0xf]
        %v1050 = vld [vmem:[%s11 + $0x5c] sm:$0xf]
        %v1051 = vld [vmem:[%s11 + $0x60] sm:$0xf]
        %v1052 = vld [vmem:[%s11 + $0x64] sm:$0xf]
        %v1053 = vld [vmem:[%s11 + $0x68] sm:$0xf]
        %v1054 = vld [vmem:[%s11 + $0x6c] sm:$0xf]
        %v1055 = vld [vmem:[%s11 + $0x70] sm:$0xf]
        %v1056 = vld [vmem:[%s11 + $0x74] sm:$0xf]
        %v1057 = vld [vmem:[%s11 + $0x78] sm:$0xf]
        %v1058 = vld [vmem:[%s11 + $0x7c] sm:$0xf]
        %v1059 = vld [vmem:[%s13] sm:$0x1]
        %vm1060 = vcmask 523264
        %v1061 = vsel %vm1060, %v1014, 0.0
        %1062 = vadd.xlane.f32.xlu0 %v1061
        %v1063 = vpop.xlane.xlu0 %1062
        %v1064 = vsel %vm1060, %v1015, 0.0
        %1065 = vadd.xlane.f32.xlu0 %v1064
        %v1066 = vpop.xlane.xlu0 %1065
        %v1067 = vrcp.pop 64.0
        %v1068 = vmul.f32 %v1063, %v1067
        %v1069 = vmul.f32 %v1066, %v1067
        %v1070 = vsub.f32 %v1014, %v1068
        %v1071 = vsub.f32 %v1015, %v1069
        %v1072 = vmul.f32 %v1070, %v1070
        %v1073 = vmul.f32 %v1071, %v1071
        %v1074 = vsel %vm1060, %v1072, 0.0
        %1075 = vadd.xlane.f32.xlu0 %v1074
        %v1076 = vpop.xlane.xlu0 %1075
        %v1077 = vsel %vm1060, %v1073, 0.0
        %1078 = vadd.xlane.f32.xlu0 %v1077
        %v1079 = vpop.xlane.xlu0 %1078
        %v1080 = vmul.f32 %v1076, %v1067
        %v1081 = vmul.f32 %v1079, %v1067
        %v1082 = vadd.f32 %v1080, 1e-05
        %v1083 = vadd.f32 %v1081, 1e-05
        %v1084 = vrsqrt.pop %v1082
        %v1085 = vrsqrt.pop %v1083
        %v1086 = vmul.f32 %v1070, %v1084
        %v1087 = vmul.f32 %v1071, %v1085
        %v1089 = vlaneseq
        %v1090 = vshrl.u32 %v1089, 7
        %v1091 = vsub.s32 0, %v1090
        %v1092 = vrot.slane %v1016, %v1091
        %v1094 = vmul.f32 %v1086, %v1092
        %v1095 = vmul.f32 %v1087, %v1092
        %v1097 = vlaneseq
        %v1098 = vshrl.u32 %v1097, 7
        %v1099 = vsub.s32 0, %v1098
        %v1100 = vrot.slane %v1017, %v1099
        %v1102 = vadd.f32 %v1094, %v1100
        %v1103 = vadd.f32 %v1095, %v1100
        %v1104 = vpack.c.bf16 %v1103, %v1102
        %v1106 = vlaneseq
        %v1107 = vshrl.u32 %v1106, 7
        %v1108 = vsub.s32 0, %v1107
        %v1109 = vrot.slane %v1026, %v1108
        %v1110 = vlaneseq
        %v1111 = vshrl.u32 %v1110, 7
        %v1112 = vsub.s32 1, %v1111
        %v1113 = vrot.slane %v1026, %v1112
        %v1124 = vunpack.c.l.b16 %v1018
        %v1125 = vunpack.c.h.b16 %v1018
        %v1126 = vunpack.c.l.b16 %v1019
        %v1127 = vunpack.c.h.b16 %v1019
        %v1128 = vunpack.c.l.b16 %v1020
        %v1129 = vunpack.c.h.b16 %v1020
        %v1130 = vunpack.c.l.b16 %v1021
        %v1131 = vunpack.c.h.b16 %v1021
        %v1132 = vunpack.c.l.b16 %v1022
        %v1133 = vunpack.c.h.b16 %v1022
        %v1134 = vunpack.c.l.b16 %v1023
        %v1135 = vunpack.c.h.b16 %v1023
        %v1136 = vunpack.c.l.b16 %v1024
        %v1137 = vunpack.c.h.b16 %v1024
        %v1138 = vunpack.c.l.b16 %v1025
        %v1139 = vunpack.c.h.b16 %v1025
        %v1140 = vpack.c.b16 %v1126, %v1124
        %v1141 = vpack.c.b16 %v1127, %v1125
        %v1142 = vpack.c.b16 %v1130, %v1128
        %v1143 = vpack.c.b16 %v1131, %v1129
        %v1144 = vpack.c.b16 %v1134, %v1132
        %v1145 = vpack.c.b16 %v1135, %v1133
        %v1146 = vpack.c.b16 %v1138, %v1136
        %v1147 = vpack.c.b16 %v1139, %v1137
        %v1157 = vsel %vm1060, %v1104, 0
        %1159 = vmatprep.subr.bf16.mxu0 %v1141
        %1160 = vmatpush1.bf16.msra.mxu0 %v1140
        %1161 = vmatprep.subr.bf16.mxu0 %v1143
        %1162 = vmatpush1.bf16.msra.mxu0 %v1142
        %1163 = vmatprep.subr.bf16.mxu0 %v1145
        %1164 = vmatpush1.bf16.msra.mxu0 %v1144
        %1165 = vmatprep.subr.bf16.mxu0 %v1147
        %1166 = vmatpush1.bf16.msra.mxu0 %v1146
        %1167 = vmatprep.subr.bf16.mxu0 0
        %1168 = vmatpush1.bf16.msra.mxu0 0
        %1169 = vmatprep.subr.bf16.mxu0 0
        %1170 = vmatpush1.bf16.msra.mxu0 0
        %1171 = vmatprep.subr.bf16.mxu0 0
        %1172 = vmatpush1.bf16.msra.mxu0 0
        %1173 = vmatprep.subr.bf16.mxu0 0
        %1174 = vmatpush1.bf16.msra.mxu0 0
        %1175 = vmatprep.subr.bf16.mxu0 0
        %1176 = vmatpush1.bf16.msra.mxu0 0
        %1177 = vmatprep.subr.bf16.mxu0 0
        %1178 = vmatpush1.bf16.msra.mxu0 0
        %1179 = vmatprep.subr.bf16.mxu0 0
        %1180 = vmatpush1.bf16.msra.mxu0 0
        %1181 = vmatprep.subr.bf16.mxu0 0
        %1182 = vmatpush1.bf16.msra.mxu0 0
        %1183 = vmatprep.subr.bf16.mxu0 0
        %1184 = vmatpush1.bf16.msra.mxu0 0
        %1185 = vmatprep.subr.bf16.mxu0 0
        %1186 = vmatpush1.bf16.msra.mxu0 0
        %1187 = vmatprep.subr.bf16.mxu0 0
        %1188 = vmatpush1.bf16.msra.mxu0 0
        %1189 = vmatprep.subr.bf16.mxu0 0
        %1190 = vmatpush1.bf16.msra.mxu0 0
        %1191 = vmatprep.mubr.bf16.mxu0 0
        %1192 = vmatmul.mubr.bf16.gmra.mrb[0].mxu0 %v1157
        %v1193 = vpop.f32.mrb[0].mxu0
        %v1194 = vadd.f32 %v1109, %v1193
        %v1195 = vpop.f32.mrb[0].mxu0
        %v1196 = vadd.f32 %v1113, %v1195
        %v1197 = vpop.f32.mrb[0].mxu0
        %v1198 = vadd.f32 %v1109, %v1197
        %v1199 = vpop.f32.mrb[0].mxu0
        %v1200 = vadd.f32 %v1113, %v1199
        %1201 = vdwg.mxu0
        %v1202 = vxor.u32 %v1194, 2147483648
        %v1203 = vxor.u32 %v1196, 2147483648
        %v1204 = vxor.u32 %v1198, 2147483648
        %v1205 = vxor.u32 %v1200, 2147483648
        %v1206 = vmul.f32 %v1202, 1.442695
        %v1207 = vpow.pop %v1206
        %v1208 = vmul.f32 %v1203, 1.442695
        %v1209 = vpow.pop %v1208
        %v1210 = vmul.f32 %v1204, 1.442695
        %v1211 = vpow.pop %v1210
        %v1212 = vmul.f32 %v1205, 1.442695
        %v1213 = vpow.pop %v1212
        %v1214 = vadd.f32 %v1207, 1.0
        %v1215 = vadd.f32 %v1209, 1.0
        %v1216 = vadd.f32 %v1211, 1.0
        %v1217 = vadd.f32 %v1213, 1.0
        %v1218 = vrcp.pop %v1214
        %v1219 = vmul.f32 1.0, %v1218
        %v1220 = vrcp.pop %v1215
        %v1221 = vmul.f32 1.0, %v1220
        %v1222 = vrcp.pop %v1216
        %v1223 = vmul.f32 1.0, %v1222
        %v1224 = vrcp.pop %v1217
        %v1225 = vmul.f32 1.0, %v1224
        %v1226 = vmul.f32 %v1194, %v1219
        %v1227 = vmul.f32 %v1196, %v1221
        %v1228 = vmul.f32 %v1198, %v1223
        %v1229 = vmul.f32 %v1200, %v1225
        %v1230 = vpack.c.bf16 %v1228, %v1226
        %v1231 = vpack.c.bf16 %v1229, %v1227
        %v1233 = vlaneseq
        %v1234 = vshrl.u32 %v1233, 7
        %v1235 = vsub.s32 0, %v1234
        %v1236 = vrot.slane %v1059, %v1235
        %v1270 = vunpack.c.l.b16 %v1027
        %v1271 = vunpack.c.l.b16 %v1028
        %v1272 = vunpack.c.l.b16 %v1029
        %v1273 = vunpack.c.l.b16 %v1030
        %v1274 = vunpack.c.l.b16 %v1031
        %v1275 = vunpack.c.l.b16 %v1032
        %v1276 = vunpack.c.l.b16 %v1033
        %v1277 = vunpack.c.l.b16 %v1034
        %v1278 = vunpack.c.l.b16 %v1035
        %v1279 = vunpack.c.l.b16 %v1036
        %v1280 = vunpack.c.l.b16 %v1037
        %v1281 = vunpack.c.l.b16 %v1038
        %v1282 = vunpack.c.l.b16 %v1039
        %v1283 = vunpack.c.l.b16 %v1040
        %v1284 = vunpack.c.l.b16 %v1041
        %v1285 = vunpack.c.l.b16 %v1042
        %v1286 = vunpack.c.l.b16 %v1043
        %v1287 = vunpack.c.l.b16 %v1044
        %v1288 = vunpack.c.l.b16 %v1045
        %v1289 = vunpack.c.l.b16 %v1046
        %v1290 = vunpack.c.l.b16 %v1047
        %v1291 = vunpack.c.l.b16 %v1048
        %v1292 = vunpack.c.l.b16 %v1049
        %v1293 = vunpack.c.l.b16 %v1050
        %v1294 = vunpack.c.l.b16 %v1051
        %v1295 = vunpack.c.l.b16 %v1052
        %v1296 = vunpack.c.l.b16 %v1053
        %v1297 = vunpack.c.l.b16 %v1054
        %v1298 = vunpack.c.l.b16 %v1055
        %v1299 = vunpack.c.l.b16 %v1056
        %v1300 = vunpack.c.l.b16 %v1057
        %v1301 = vunpack.c.l.b16 %v1058
        %v1302 = vpack.c.b16 %v1271, %v1270
        %v1303 = vpack.c.b16 %v1273, %v1272
        %v1304 = vpack.c.b16 %v1275, %v1274
        %v1305 = vpack.c.b16 %v1277, %v1276
        %v1306 = vpack.c.b16 %v1279, %v1278
        %v1307 = vpack.c.b16 %v1281, %v1280
        %v1308 = vpack.c.b16 %v1283, %v1282
        %v1309 = vpack.c.b16 %v1285, %v1284
        %v1310 = vpack.c.b16 %v1287, %v1286
        %v1311 = vpack.c.b16 %v1289, %v1288
        %v1312 = vpack.c.b16 %v1291, %v1290
        %v1313 = vpack.c.b16 %v1293, %v1292
        %v1314 = vpack.c.b16 %v1295, %v1294
        %v1315 = vpack.c.b16 %v1297, %v1296
        %v1316 = vpack.c.b16 %v1299, %v1298
        %v1317 = vpack.c.b16 %v1301, %v1300
        %1334 = vmatprep.subr.bf16.mxu0 0
        %1335 = vmatpush1.bf16.msra.mxu0 %v1302
        %1336 = vmatprep.subr.bf16.mxu0 0
        %1337 = vmatpush1.bf16.msra.mxu0 %v1303
        %1338 = vmatprep.subr.bf16.mxu0 0
        %1339 = vmatpush1.bf16.msra.mxu0 %v1304
        %1340 = vmatprep.subr.bf16.mxu0 0
        %1341 = vmatpush1.bf16.msra.mxu0 %v1305
        %1342 = vmatprep.subr.bf16.mxu0 0
        %1343 = vmatpush1.bf16.msra.mxu0 %v1306
        %1344 = vmatprep.subr.bf16.mxu0 0
        %1345 = vmatpush1.bf16.msra.mxu0 %v1307
        %1346 = vmatprep.subr.bf16.mxu0 0
        %1347 = vmatpush1.bf16.msra.mxu0 %v1308
        %1348 = vmatprep.subr.bf16.mxu0 0
        %1349 = vmatpush1.bf16.msra.mxu0 %v1309
        %1350 = vmatprep.subr.bf16.mxu0 0
        %1351 = vmatpush1.bf16.msra.mxu0 %v1310
        %1352 = vmatprep.subr.bf16.mxu0 0
        %1353 = vmatpush1.bf16.msra.mxu0 %v1311
        %1354 = vmatprep.subr.bf16.mxu0 0
        %1355 = vmatpush1.bf16.msra.mxu0 %v1312
        %1356 = vmatprep.subr.bf16.mxu0 0
        %1357 = vmatpush1.bf16.msra.mxu0 %v1313
        %1358 = vmatprep.subr.bf16.mxu0 0
        %1359 = vmatpush1.bf16.msra.mxu0 %v1314
        %1360 = vmatprep.subr.bf16.mxu0 0
        %1361 = vmatpush1.bf16.msra.mxu0 %v1315
        %1362 = vmatprep.subr.bf16.mxu0 0
        %1363 = vmatpush1.bf16.msra.mxu0 %v1316
        %1364 = vmatprep.subr.bf16.mxu0 0
        %1365 = vmatpush1.bf16.msra.mxu0 %v1317
        %1366 = vmatprep.mubr.bf16.mxu0 %v1231
        %1367 = vmatmul.mubr.bf16.gmra.mrb[0].mxu0 %v1230
        %v1368 = vpop.f32.mrb[0].mxu0
        %v1369 = vadd.f32 %v1236, %v1368
        %v1370 = vpop.f32.mrb[0].mxu0
        %v1371 = vpop.f32.mrb[0].mxu0
        %v1372 = vadd.f32 %v1236, %v1371
        %v1373 = vpop.f32.mrb[0].mxu0
        %1374 = vdwg.mxu0
        %v1375 = vmul.f32 %v1369, 0.5
        %v1376 = vmul.f32 %v1372, 0.5
        %v1377 = vadd.f32 %v1014, %v1375
        %v1378 = vadd.f32 %v1015, %v1376
        %v1379 = vld [vmem:[%s15] sm:$0x1]
        %v1380 = vld [vmem:[%s17] sm:$0x1]
        %v1381 = vsel %vm1060, %v1377, 0.0
        %1382 = vadd.xlane.f32.xlu0 %v1381
        %v1383 = vpop.xlane.xlu0 %1382
        %v1384 = vsel %vm1060, %v1378, 0.0
        %1385 = vadd.xlane.f32.xlu0 %v1384
        %v1386 = vpop.xlane.xlu0 %1385
        %v1387 = vmul.f32 %v1383, %v1067
        %v1388 = vmul.f32 %v1386, %v1067
        %v1389 = vsub.f32 %v1377, %v1387
        %v1390 = vsub.f32 %v1378, %v1388
        %v1391 = vmul.f32 %v1389, %v1389
        %v1392 = vmul.f32 %v1390, %v1390
        %v1393 = vsel %vm1060, %v1391, 0.0
        %1394 = vadd.xlane.f32.xlu0 %v1393
        %v1395 = vpop.xlane.xlu0 %1394
        %v1396 = vsel %vm1060, %v1392, 0.0
        %1397 = vadd.xlane.f32.xlu0 %v1396
        %v1398 = vpop.xlane.xlu0 %1397
        %v1399 = vmul.f32 %v1395, %v1067
        %v1400 = vmul.f32 %v1398, %v1067
        %v1401 = vadd.f32 %v1399, 1e-05
        %v1402 = vadd.f32 %v1400, 1e-05
        %v1403 = vrsqrt.pop %v1401
        %v1404 = vrsqrt.pop %v1402
        %v1405 = vmul.f32 %v1389, %v1403
        %v1406 = vmul.f32 %v1390, %v1404
        %v1408 = vlaneseq
        %v1409 = vshrl.u32 %v1408, 7
        %v1410 = vsub.s32 0, %v1409
        %v1411 = vrot.slane %v1379, %v1410
        %v1413 = vmul.f32 %v1405, %v1411
        %v1414 = vmul.f32 %v1406, %v1411
        %v1416 = vlaneseq
        %v1417 = vshrl.u32 %v1416, 7
        %v1418 = vsub.s32 0, %v1417
        %v1419 = vrot.slane %v1380, %v1418
        %v1421 = vadd.f32 %v1413, %v1419
        %v1422 = vadd.f32 %v1414, %v1419
        %v1423 = vpack.c.bf16 %v1422, %v1421
        %v1424 = vld [vmem:[%s19] sm:$0xff]
        %v1425 = vld [vmem:[%s19 + $0x8] sm:$0xff]
        %v1426 = vld [vmem:[%s19 + $0x10] sm:$0xff]
        %v1427 = vld [vmem:[%s19 + $0x18] sm:$0xff]
        %v1428 = vld [vmem:[%s19 + $0x20] sm:$0xff]
        %v1429 = vld [vmem:[%s19 + $0x28] sm:$0xff]
        %v1430 = vld [vmem:[%s19 + $0x30] sm:$0xff]
        %v1431 = vld [vmem:[%s19 + $0x38] sm:$0xff]
        %v1432 = vld [vmem:[%s21] sm:$0x3]
        %v1434 = vlaneseq
        %v1435 = vshrl.u32 %v1434, 7
        %v1436 = vsub.s32 0, %v1435
        %v1437 = vrot.slane %v1432, %v1436
        %v1438 = vlaneseq
        %v1439 = vshrl.u32 %v1438, 7
        %v1440 = vsub.s32 1, %v1439
        %v1441 = vrot.slane %v1432, %v1440
        %v1452 = vunpack.c.l.b16 %v1424
        %v1453 = vunpack.c.h.b16 %v1424
        %v1454 = vunpack.c.l.b16 %v1425
        %v1455 = vunpack.c.h.b16 %v1425
        %v1456 = vunpack.c.l.b16 %v1426
        %v1457 = vunpack.c.h.b16 %v1426
        %v1458 = vunpack.c.l.b16 %v1427
        %v1459 = vunpack.c.h.b16 %v1427
        %v1460 = vunpack.c.l.b16 %v1428
        %v1461 = vunpack.c.h.b16 %v1428
        %v1462 = vunpack.c.l.b16 %v1429
        %v1463 = vunpack.c.h.b16 %v1429
        %v1464 = vunpack.c.l.b16 %v1430
        %v1465 = vunpack.c.h.b16 %v1430
        %v1466 = vunpack.c.l.b16 %v1431
        %v1467 = vunpack.c.h.b16 %v1431
        %v1468 = vpack.c.b16 %v1454, %v1452
        %v1469 = vpack.c.b16 %v1455, %v1453
        %v1470 = vpack.c.b16 %v1458, %v1456
        %v1471 = vpack.c.b16 %v1459, %v1457
        %v1472 = vpack.c.b16 %v1462, %v1460
        %v1473 = vpack.c.b16 %v1463, %v1461
        %v1474 = vpack.c.b16 %v1466, %v1464
        %v1475 = vpack.c.b16 %v1467, %v1465
        %v1485 = vsel %vm1060, %v1423, 0
        %1487 = vmatprep.subr.bf16.mxu0 %v1469
        %1488 = vmatpush1.bf16.msra.mxu0 %v1468
        %1489 = vmatprep.subr.bf16.mxu0 %v1471
        %1490 = vmatpush1.bf16.msra.mxu0 %v1470
        %1491 = vmatprep.subr.bf16.mxu0 %v1473
        %1492 = vmatpush1.bf16.msra.mxu0 %v1472
        %1493 = vmatprep.subr.bf16.mxu0 %v1475
        %1494 = vmatpush1.bf16.msra.mxu0 %v1474
        %1495 = vmatprep.subr.bf16.mxu0 0
        %1496 = vmatpush1.bf16.msra.mxu0 0
        %1497 = vmatprep.subr.bf16.mxu0 0
        %1498 = vmatpush1.bf16.msra.mxu0 0
        %1499 = vmatprep.subr.bf16.mxu0 0
        %1500 = vmatpush1.bf16.msra.mxu0 0
        %1501 = vmatprep.subr.bf16.mxu0 0
        %1502 = vmatpush1.bf16.msra.mxu0 0
        %1503 = vmatprep.subr.bf16.mxu0 0
        %1504 = vmatpush1.bf16.msra.mxu0 0
        %1505 = vmatprep.subr.bf16.mxu0 0
        %1506 = vmatpush1.bf16.msra.mxu0 0
        %1507 = vmatprep.subr.bf16.mxu0 0
        %1508 = vmatpush1.bf16.msra.mxu0 0
        %1509 = vmatprep.subr.bf16.mxu0 0
        %1510 = vmatpush1.bf16.msra.mxu0 0
        %1511 = vmatprep.subr.bf16.mxu0 0
        %1512 = vmatpush1.bf16.msra.mxu0 0
        %1513 = vmatprep.subr.bf16.mxu0 0
        %1514 = vmatpush1.bf16.msra.mxu0 0
        %1515 = vmatprep.subr.bf16.mxu0 0
        %1516 = vmatpush1.bf16.msra.mxu0 0
        %1517 = vmatprep.subr.bf16.mxu0 0
        %1518 = vmatpush1.bf16.msra.mxu0 0
        %1519 = vmatprep.mubr.bf16.mxu0 0
        %1520 = vmatmul.mubr.bf16.gmra.mrb[0].mxu0 %v1485
        %v1521 = vpop.f32.mrb[0].mxu0
        %v1522 = vadd.f32 %v1437, %v1521
        %v1523 = vpop.f32.mrb[0].mxu0
        %v1524 = vadd.f32 %v1441, %v1523
        %v1525 = vpop.f32.mrb[0].mxu0
        %v1526 = vadd.f32 %v1437, %v1525
        %v1527 = vpop.f32.mrb[0].mxu0
        %v1528 = vadd.f32 %v1441, %v1527
        %1529 = vdwg.mxu0
        %v1530 = vpack.c.bf16 %v1526, %v1522
        %v1531 = vpack.c.bf16 %v1528, %v1524
        %v1532 = vld [vmem:[%s25] sm:$0x1]
        %v1534 = vlaneseq
        %v1535 = vshrl.u32 %v1534, 7
        %v1536 = vsub.s32 0, %v1535
        %v1537 = vrot.slane %v1532, %v1536
        %v1539 = vadd.f32 %v1522, %v1537
        %v1540 = vadd.f32 %v1526, %v1537
        %v1541 = vpack.c.bf16 %v1540, %v1539
        %v1542 = vld [vmem:[%s27] sm:$0x1]
        %v1544 = vlaneseq
        %v1545 = vshrl.u32 %v1544, 7
        %v1546 = vsub.s32 0, %v1545
        %v1547 = vrot.slane %v1542, %v1546
        %v1549 = vadd.f32 %v1522, %v1547
        %v1550 = vadd.f32 %v1526, %v1547
        %v1551 = vpack.c.bf16 %v1550, %v1549
        %v1552 = vld [vmem:[%s23] sm:$0xf]
        %v1553 = vld [vmem:[%s23 + $0x4] sm:$0xf]
        %v1554 = vld [vmem:[%s23 + $0x8] sm:$0x1]
        %v1558 = vunpack.c.l.b16 %v1552
        %v1559 = vunpack.c.l.b16 %v1553
        %v1560 = vunpack.c.l.b16 %v1554
        %v1561 = vpack.c.b16 %v1559, %v1558
        %v1562 = vpack.c.b16 %v1560, %v1560
        %vm1563 = vcmask 130048
        %v1565 = vsel %vm1563, %v1551, 0
        %v1568 = vsel %vm1563, %v1561, 0
        %v1571 = vsel %vm1563, %v1562, 0
        %1573 = vmatprep.subr.bf16.mxu0 0
        %1574 = vmatpush1.bf16.xpose.msra.mxu0 %v1568
        %1575 = vmatprep.subr.bf16.mxu0 0
        %1576 = vmatpush1.bf16.xpose.msra.mxu0 %v1571
        %1577 = vmatprep.subr.bf16.mxu0 0
        %1578 = vmatpush1.bf16.xpose.msra.mxu0 0
        %1579 = vmatprep.subr.bf16.mxu0 0
        %1580 = vmatpush1.bf16.xpose.msra.mxu0 0
        %1581 = vmatprep.subr.bf16.mxu0 0
        %1582 = vmatpush1.bf16.xpose.msra.mxu0 0
        %1583 = vmatprep.subr.bf16.mxu0 0
        %1584 = vmatpush1.bf16.xpose.msra.mxu0 0
        %1585 = vmatprep.subr.bf16.mxu0 0
        %1586 = vmatpush1.bf16.xpose.msra.mxu0 0
        %1587 = vmatprep.subr.bf16.mxu0 0
        %1588 = vmatpush1.bf16.xpose.msra.mxu0 0
        %1589 = vmatprep.subr.bf16.mxu0 0
        %1590 = vmatpush1.bf16.xpose.msra.mxu0 0
        %1591 = vmatprep.subr.bf16.mxu0 0
        %1592 = vmatpush1.bf16.xpose.msra.mxu0 0
        %1593 = vmatprep.subr.bf16.mxu0 0
        %1594 = vmatpush1.bf16.xpose.msra.mxu0 0
        %1595 = vmatprep.subr.bf16.mxu0 0
        %1596 = vmatpush1.bf16.xpose.msra.mxu0 0
        %1597 = vmatprep.subr.bf16.mxu0 0
        %1598 = vmatpush1.bf16.xpose.msra.mxu0 0
        %1599 = vmatprep.subr.bf16.mxu0 0
        %1600 = vmatpush1.bf16.xpose.msra.mxu0 0
        %1601 = vmatprep.subr.bf16.mxu0 0
        %1602 = vmatpush1.bf16.xpose.msra.mxu0 0
        %1603 = vmatprep.subr.bf16.mxu0 0
        %1604 = vmatpush1.bf16.xpose.msra.mxu0 0
        %1605 = vmatprep.mubr.bf16.mxu0 0
        %1606 = vmatmul.mubr.bf16.gmra.mrb[0].mxu0 %v1565
        %v1607 = vpop.f32.mrb[0].mxu0
        %v1608 = vadd.f32 0.0, %v1607
        %v1609 = vpop.f32.mrb[0].mxu0
        %v1610 = vpop.f32.mrb[0].mxu0
        %v1611 = vadd.f32 0.0, %v1610
        %v1612 = vpop.f32.mrb[0].mxu0
        %1613 = vdwg.mxu0
        %vm1616 = vcmask 1046528
        %v1617 = vrot.slane %v1608, 1
        %v1618 = vrot.slane %v1611, 1
        %v1619 = vsel %vm1616, %v1617, %v1618
        %v1622 = vsel %vm1616, %v1618, %v1617
        %1624 = vrot.lane.b32.xlu0 %v1619, 17
        %v1625 = vpop.permute.xlu0 %1624
        %1626 = vrot.lane.b32.xlu0 %v1622, 17
        %v1627 = vpop.permute.xlu0 %1626
        %vm1630 = vcmask 138240
        %v1631 = vsel %vm1630, %v1608, %v1625
        %v1632 = vsel %vm1630, %v1611, %v1627
        %1634 = vrot.lane.b32.xlu0 %v1631, 1
        %v1635 = vpop.permute.xlu0 %1634
        %1637 = vrot.lane.b32.xlu0 %v1631, 2
        %v1638 = vpop.permute.xlu0 %1637
        %1640 = vrot.lane.b32.xlu0 %v1631, 3
        %v1641 = vpop.permute.xlu0 %1640
        %1643 = vrot.lane.b32.xlu0 %v1631, 4
        %v1644 = vpop.permute.xlu0 %1643
        %1646 = vrot.lane.b32.xlu0 %v1631, 5
        %v1647 = vpop.permute.xlu0 %1646
        %1649 = vrot.lane.b32.xlu0 %v1631, 6
        %v1650 = vpop.permute.xlu0 %1649
        %1652 = vrot.lane.b32.xlu0 %v1631, 7
        %v1653 = vpop.permute.xlu0 %1652
        %1656 = vrot.lane.b32.xlu0 %v1632, 8
        %v1657 = vpop.permute.xlu0 %1656
        %1659 = vrot.lane.b32.xlu0 %v1632, 9
        %v1660 = vpop.permute.xlu0 %1659
        %1662 = vrot.lane.b32.xlu0 %v1632, 10
        %v1663 = vpop.permute.xlu0 %1662
        %1665 = vrot.lane.b32.xlu0 %v1632, 11
        %v1666 = vpop.permute.xlu0 %1665
        %1668 = vrot.lane.b32.xlu0 %v1632, 12
        %v1669 = vpop.permute.xlu0 %1668
        %1671 = vrot.lane.b32.xlu0 %v1632, 13
        %v1672 = vpop.permute.xlu0 %1671
        %1674 = vrot.lane.b32.xlu0 %v1632, 14
        %v1675 = vpop.permute.xlu0 %1674
        %1677 = vrot.lane.b32.xlu0 %v1632, 15
        %v1678 = vpop.permute.xlu0 %1677
        %vm1680 = vcmask 1040384
        %v1681 = vsel %vm1680, %v1631, %v1635
        %vm1682 = vcmask 1041408
        %v1683 = vsel %vm1682, %v1681, %v1638
        %vm1684 = vcmask 1042432
        %v1685 = vsel %vm1684, %v1683, %v1641
        %vm1686 = vcmask 1043456
        %v1687 = vsel %vm1686, %v1685, %v1644
        %vm1688 = vcmask 1044480
        %v1689 = vsel %vm1688, %v1687, %v1647
        %vm1690 = vcmask 1045504
        %v1691 = vsel %vm1690, %v1689, %v1650
        %v1692 = vsel %vm1616, %v1691, %v1653
        %v1693 = vsel %vm1680, %v1657, %v1660
        %v1694 = vsel %vm1682, %v1693, %v1663
        %v1695 = vsel %vm1684, %v1694, %v1666
        %v1696 = vsel %vm1686, %v1695, %v1669
        %v1697 = vsel %vm1688, %v1696, %v1672
        %v1698 = vsel %vm1690, %v1697, %v1675
        %v1699 = vsel %vm1616, %v1698, %v1678
        %1701 = vrot.lane.b32.xlu0 %v1530, 64
        %v1702 = vpop.permute.xlu0 %1701
        %1705 = vrot.lane.b32.xlu0 %v1692, 112
        %v1706 = vpop.permute.xlu0 %1705
        %1707 = vrot.lane.b32.xlu0 %v1699, 112
        %v1708 = vpop.permute.xlu0 %1707
        %v1712 = vsel %vm1563, %v1541, 0
        %v1715 = vsel %vm1563, %v1702, 0
        %1717 = vmatprep.subr.bf16.mxu0 0
        %1718 = vmatpush1.bf16.xpose.msra.mxu0 %v1715
        %1719 = vmatprep.subr.bf16.mxu0 0
        %1720 = vmatpush1.bf16.xpose.msra.mxu0 0
        %1721 = vmatprep.subr.bf16.mxu0 0
        %1722 = vmatpush1.bf16.xpose.msra.mxu0 0
        %1723 = vmatprep.subr.bf16.mxu0 0
        %1724 = vmatpush1.bf16.xpose.msra.mxu0 0
        %1725 = vmatprep.subr.bf16.mxu0 0
        %1726 = vmatpush1.bf16.xpose.msra.mxu0 0
        %1727 = vmatprep.subr.bf16.mxu0 0
        %1728 = vmatpush1.bf16.xpose.msra.mxu0 0
        %1729 = vmatprep.subr.bf16.mxu0 0
        %1730 = vmatpush1.bf16.xpose.msra.mxu0 0
        %1731 = vmatprep.subr.bf16.mxu0 0
        %1732 = vmatpush1.bf16.xpose.msra.mxu0 0
        %1733 = vmatprep.subr.bf16.mxu0 0
        %1734 = vmatpush1.bf16.xpose.msra.mxu0 0
        %1735 = vmatprep.subr.bf16.mxu0 0
        %1736 = vmatpush1.bf16.xpose.msra.mxu0 0
        %1737 = vmatprep.subr.bf16.mxu0 0
        %1738 = vmatpush1.bf16.xpose.msra.mxu0 0
        %1739 = vmatprep.subr.bf16.mxu0 0
        %1740 = vmatpush1.bf16.xpose.msra.mxu0 0
        %1741 = vmatprep.subr.bf16.mxu0 0
        %1742 = vmatpush1.bf16.xpose.msra.mxu0 0
        %1743 = vmatprep.subr.bf16.mxu0 0
        %1744 = vmatpush1.bf16.xpose.msra.mxu0 0
        %1745 = vmatprep.subr.bf16.mxu0 0
        %1746 = vmatpush1.bf16.xpose.msra.mxu0 0
        %1747 = vmatprep.subr.bf16.mxu0 0
        %1748 = vmatpush1.bf16.xpose.msra.mxu0 0
        %1749 = vmatprep.mubr.bf16.mxu0 0
        %1750 = vmatmul.mubr.bf16.gmra.mrb[0].mxu0 %v1712
        %v1751 = vpop.f32.mrb[0].mxu0
        %v1752 = vadd.f32 %v1706, %v1751
        %v1753 = vpop.f32.mrb[0].mxu0
        %v1754 = vpop.f32.mrb[0].mxu0
        %v1755 = vadd.f32 %v1708, %v1754
        %v1756 = vpop.f32.mrb[0].mxu0
        %1757 = vdwg.mxu0
        %v1758 = vsel %vm1563, %v1752, -inf
        %1759 = vmax.xlane.f32.xlu0 %v1758
        %v1760 = vpop.xlane.xlu0 %1759
        %v1761 = vsel %vm1563, %v1755, -inf
        %1762 = vmax.xlane.f32.xlu0 %v1761
        %v1763 = vpop.xlane.xlu0 %1762
        %v1764 = vsub.f32 %v1752, %v1760
        %v1765 = vsub.f32 %v1755, %v1763
        %v1766 = vmul.f32 %v1764, 1.442695
        %v1767 = vpow.pop %v1766
        %v1768 = vmul.f32 %v1765, 1.442695
        %v1769 = vpow.pop %v1768
        %v1770 = vsel %vm1563, %v1767, 0.0
        %1771 = vadd.xlane.f32.xlu0 %v1770
        %v1772 = vpop.xlane.xlu0 %1771
        %v1773 = vsel %vm1563, %v1769, 0.0
        %1774 = vadd.xlane.f32.xlu0 %v1773
        %v1775 = vpop.xlane.xlu0 %1774
        %v1776 = vrcp.pop %v1772
        %v1777 = vrcp.pop %v1775
        %v1778 = vmul.f32 %v1767, %v1776
        %v1779 = vmul.f32 %v1769, %v1777
        %v1780 = vpack.c.bf16 %v1779, %v1778
        %v1782 = vsel %vm1563, %v1780, 0
        %1784 = vmatprep.subr.bf16.mxu0 0
        %1785 = vmatpush1.bf16.msra.mxu0 %v1531
        %1786 = vmatprep.subr.bf16.mxu0 0
        %1787 = vmatpush1.bf16.msra.mxu0 0
        %1788 = vmatprep.subr.bf16.mxu0 0
        %1789 = vmatpush1.bf16.msra.mxu0 0
        %1790 = vmatprep.subr.bf16.mxu0 0
        %1791 = vmatpush1.bf16.msra.mxu0 0
        %1792 = vmatprep.subr.bf16.mxu0 0
        %1793 = vmatpush1.bf16.msra.mxu0 0
        %1794 = vmatprep.subr.bf16.mxu0 0
        %1795 = vmatpush1.bf16.msra.mxu0 0
        %1796 = vmatprep.subr.bf16.mxu0 0
        %1797 = vmatpush1.bf16.msra.mxu0 0
        %1798 = vmatprep.subr.bf16.mxu0 0
        %1799 = vmatpush1.bf16.msra.mxu0 0
        %1800 = vmatprep.subr.bf16.mxu0 0
        %1801 = vmatpush1.bf16.msra.mxu0 0
        %1802 = vmatprep.subr.bf16.mxu0 0
        %1803 = vmatpush1.bf16.msra.mxu0 0
        %1804 = vmatprep.subr.bf16.mxu0 0
        %1805 = vmatpush1.bf16.msra.mxu0 0
        %1806 = vmatprep.subr.bf16.mxu0 0
        %1807 = vmatpush1.bf16.msra.mxu0 0
        %1808 = vmatprep.subr.bf16.mxu0 0
        %1809 = vmatpush1.bf16.msra.mxu0 0
        %1810 = vmatprep.subr.bf16.mxu0 0
        %1811 = vmatpush1.bf16.msra.mxu0 0
        %1812 = vmatprep.subr.bf16.mxu0 0
        %1813 = vmatpush1.bf16.msra.mxu0 0
        %1814 = vmatprep.subr.bf16.mxu0 0
        %1815 = vmatpush1.bf16.msra.mxu0 0
        %1816 = vmatprep.mubr.bf16.mxu0 0
        %1817 = vmatmul.mubr.bf16.gmra.mrb[0].mxu0 %v1782
        %v1818 = vpop.f32.mrb[0].mxu0
        %v1819 = vadd.f32 0.0, %v1818
        %v1820 = vpop.f32.mrb[0].mxu0
        %v1821 = vpop.f32.mrb[0].mxu0
        %v1822 = vadd.f32 0.0, %v1821
        %v1823 = vpop.f32.mrb[0].mxu0
        %1824 = vdwg.mxu0
        %1826 = vrot.lane.b32.xlu0 %v1551, 112
        %v1827 = vpop.permute.xlu0 %1826
        %1828 = vrot.lane.b32.xlu0 %v1561, 112
        %v1829 = vpop.permute.xlu0 %1828
        %1830 = vrot.lane.b32.xlu0 %v1562, 112
        %v1831 = vpop.permute.xlu0 %1830
        %v1833 = vsel %vm1563, %v1827, 0
        %v1836 = vsel %vm1563, %v1829, 0
        %v1839 = vsel %vm1563, %v1831, 0
        %1841 = vmatprep.subr.bf16.mxu0 0
        %1842 = vmatpush1.bf16.xpose.msra.mxu0 %v1836
        %1843 = vmatprep.subr.bf16.mxu0 0
        %1844 = vmatpush1.bf16.xpose.msra.mxu0 %v1839
        %1845 = vmatprep.subr.bf16.mxu0 0
        %1846 = vmatpush1.bf16.xpose.msra.mxu0 0
        %1847 = vmatprep.subr.bf16.mxu0 0
        %1848 = vmatpush1.bf16.xpose.msra.mxu0 0
        %1849 = vmatprep.subr.bf16.mxu0 0
        %1850 = vmatpush1.bf16.xpose.msra.mxu0 0
        %1851 = vmatprep.subr.bf16.mxu0 0
        %1852 = vmatpush1.bf16.xpose.msra.mxu0 0
        %1853 = vmatprep.subr.bf16.mxu0 0
        %1854 = vmatpush1.bf16.xpose.msra.mxu0 0
        %1855 = vmatprep.subr.bf16.mxu0 0
        %1856 = vmatpush1.bf16.xpose.msra.mxu0 0
        %1857 = vmatprep.subr.bf16.mxu0 0
        %1858 = vmatpush1.bf16.xpose.msra.mxu0 0
        %1859 = vmatprep.subr.bf16.mxu0 0
        %1860 = vmatpush1.bf16.xpose.msra.mxu0 0
        %1861 = vmatprep.subr.bf16.mxu0 0
        %1862 = vmatpush1.bf16.xpose.msra.mxu0 0
        %1863 = vmatprep.subr.bf16.mxu0 0
        %1864 = vmatpush1.bf16.xpose.msra.mxu0 0
        %1865 = vmatprep.subr.bf16.mxu0 0
        %1866 = vmatpush1.bf16.xpose.msra.mxu0 0
        %1867 = vmatprep.subr.bf16.mxu0 0
        %1868 = vmatpush1.bf16.xpose.msra.mxu0 0
        %1869 = vmatprep.subr.bf16.mxu0 0
        %1870 = vmatpush1.bf16.xpose.msra.mxu0 0
        %1871 = vmatprep.subr.bf16.mxu0 0
        %1872 = vmatpush1.bf16.xpose.msra.mxu0 0
        %1873 = vmatprep.mubr.bf16.mxu0 0
        %1874 = vmatmul.mubr.bf16.gmra.mrb[0].mxu0 %v1833
        %v1875 = vpop.f32.mrb[0].mxu0
        %v1876 = vadd.f32 0.0, %v1875
        %v1877 = vpop.f32.mrb[0].mxu0
        %v1878 = vpop.f32.mrb[0].mxu0
        %v1879 = vadd.f32 0.0, %v1878
        %v1880 = vpop.f32.mrb[0].mxu0
        %1881 = vdwg.mxu0
        %v1884 = vrot.slane %v1876, 1
        %v1885 = vrot.slane %v1879, 1
        %v1886 = vsel %vm1616, %v1884, %v1885
        %v1889 = vsel %vm1616, %v1885, %v1884
        %1891 = vrot.lane.b32.xlu0 %v1886, 17
        %v1892 = vpop.permute.xlu0 %1891
        %1893 = vrot.lane.b32.xlu0 %v1889, 17
        %v1894 = vpop.permute.xlu0 %1893
        %v1897 = vsel %vm1630, %v1876, %v1892
        %v1898 = vsel %vm1630, %v1879, %v1894
        %1900 = vrot.lane.b32.xlu0 %v1897, 1
        %v1901 = vpop.permute.xlu0 %1900
        %1903 = vrot.lane.b32.xlu0 %v1897, 2
        %v1904 = vpop.permute.xlu0 %1903
        %1906 = vrot.lane.b32.xlu0 %v1897, 3
        %v1907 = vpop.permute.xlu0 %1906
        %1909 = vrot.lane.b32.xlu0 %v1897, 4
        %v1910 = vpop.permute.xlu0 %1909
        %1912 = vrot.lane.b32.xlu0 %v1897, 5
        %v1913 = vpop.permute.xlu0 %1912
        %1915 = vrot.lane.b32.xlu0 %v1897, 6
        %v1916 = vpop.permute.xlu0 %1915
        %1918 = vrot.lane.b32.xlu0 %v1897, 7
        %v1919 = vpop.permute.xlu0 %1918
        %1922 = vrot.lane.b32.xlu0 %v1898, 8
        %v1923 = vpop.permute.xlu0 %1922
        %1925 = vrot.lane.b32.xlu0 %v1898, 9
        %v1926 = vpop.permute.xlu0 %1925
        %1928 = vrot.lane.b32.xlu0 %v1898, 10
        %v1929 = vpop.permute.xlu0 %1928
        %1931 = vrot.lane.b32.xlu0 %v1898, 11
        %v1932 = vpop.permute.xlu0 %1931
        %1934 = vrot.lane.b32.xlu0 %v1898, 12
        %v1935 = vpop.permute.xlu0 %1934
        %1937 = vrot.lane.b32.xlu0 %v1898, 13
        %v1938 = vpop.permute.xlu0 %1937
        %1940 = vrot.lane.b32.xlu0 %v1898, 14
        %v1941 = vpop.permute.xlu0 %1940
        %1943 = vrot.lane.b32.xlu0 %v1898, 15
        %v1944 = vpop.permute.xlu0 %1943
        %v1946 = vsel %vm1680, %v1897, %v1901
        %v1947 = vsel %vm1682, %v1946, %v1904
        %v1948 = vsel %vm1684, %v1947, %v1907
        %v1949 = vsel %vm1686, %v1948, %v1910
        %v1950 = vsel %vm1688, %v1949, %v1913
        %v1951 = vsel %vm1690, %v1950, %v1916
        %v1952 = vsel %vm1616, %v1951, %v1919
        %v1953 = vsel %vm1680, %v1923, %v1926
        %v1954 = vsel %vm1682, %v1953, %v1929
        %v1955 = vsel %vm1684, %v1954, %v1932
        %v1956 = vsel %vm1686, %v1955, %v1935
        %v1957 = vsel %vm1688, %v1956, %v1938
        %v1958 = vsel %vm1690, %v1957, %v1941
        %v1959 = vsel %vm1616, %v1958, %v1944
        %1961 = vrot.lane.b32.xlu0 %v1541, 112
        %v1962 = vpop.permute.xlu0 %1961
        %1963 = vrot.lane.b32.xlu0 %v1530, 48
        %v1964 = vpop.permute.xlu0 %1963
        %1967 = vrot.lane.b32.xlu0 %v1952, 112
        %v1968 = vpop.permute.xlu0 %1967
        %1969 = vrot.lane.b32.xlu0 %v1959, 112
        %v1970 = vpop.permute.xlu0 %1969
        %v1974 = vsel %vm1563, %v1962, 0
        %v1977 = vsel %vm1563, %v1964, 0
        %1979 = vmatprep.subr.bf16.mxu0 0
        %1980 = vmatpush1.bf16.xpose.msra.mxu0 %v1977
        %1981 = vmatprep.subr.bf16.mxu0 0
        %1982 = vmatpush1.bf16.xpose.msra.mxu0 0
        %1983 = vmatprep.subr.bf16.mxu0 0
        %1984 = vmatpush1.bf16.xpose.msra.mxu0 0
        %1985 = vmatprep.subr.bf16.mxu0 0
        %1986 = vmatpush1.bf16.xpose.msra.mxu0 0
        %1987 = vmatprep.subr.bf16.mxu0 0
        %1988 = vmatpush1.bf16.xpose.msra.mxu0 0
        %1989 = vmatprep.subr.bf16.mxu0 0
        %1990 = vmatpush1.bf16.xpose.msra.mxu0 0
        %1991 = vmatprep.subr.bf16.mxu0 0
        %1992 = vmatpush1.bf16.xpose.msra.mxu0 0
        %1993 = vmatprep.subr.bf16.mxu0 0
        %1994 = vmatpush1.bf16.xpose.msra.mxu0 0
        %1995 = vmatprep.subr.bf16.mxu0 0
        %1996 = vmatpush1.bf16.xpose.msra.mxu0 0
        %1997 = vmatprep.subr.bf16.mxu0 0
        %1998 = vmatpush1.bf16.xpose.msra.mxu0 0
        %1999 = vmatprep.subr.bf16.mxu0 0
        %2000 = vmatpush1.bf16.xpose.msra.mxu0 0
        %2001 = vmatprep.subr.bf16.mxu0 0
        %2002 = vmatpush1.bf16.xpose.msra.mxu0 0
        %2003 = vmatprep.subr.bf16.mxu0 0
        %2004 = vmatpush1.bf16.xpose.msra.mxu0 0
        %2005 = vmatprep.subr.bf16.mxu0 0
        %2006 = vmatpush1.bf16.xpose.msra.mxu0 0
        %2007 = vmatprep.subr.bf16.mxu0 0
        %2008 = vmatpush1.bf16.xpose.msra.mxu0 0
        %2009 = vmatprep.subr.bf16.mxu0 0
        %2010 = vmatpush1.bf16.xpose.msra.mxu0 0
        %2011 = vmatprep.mubr.bf16.mxu0 0
        %2012 = vmatmul.mubr.bf16.gmra.mrb[0].mxu0 %v1974
        %v2013 = vpop.f32.mrb[0].mxu0
        %v2014 = vadd.f32 %v1968, %v2013
        %v2015 = vpop.f32.mrb[0].mxu0
        %v2016 = vpop.f32.mrb[0].mxu0
        %v2017 = vadd.f32 %v1970, %v2016
        %v2018 = vpop.f32.mrb[0].mxu0
        %2019 = vdwg.mxu0
        %v2020 = vsel %vm1563, %v2014, -inf
        %2021 = vmax.xlane.f32.xlu0 %v2020
        %v2022 = vpop.xlane.xlu0 %2021
        %v2023 = vsel %vm1563, %v2017, -inf
        %2024 = vmax.xlane.f32.xlu0 %v2023
        %v2025 = vpop.xlane.xlu0 %2024
        %v2026 = vsub.f32 %v2014, %v2022
        %v2027 = vsub.f32 %v2017, %v2025
        %v2028 = vmul.f32 %v2026, 1.442695
        %v2029 = vpow.pop %v2028
        %v2030 = vmul.f32 %v2027, 1.442695
        %v2031 = vpow.pop %v2030
        %v2032 = vsel %vm1563, %v2029, 0.0
        %2033 = vadd.xlane.f32.xlu0 %v2032
        %v2034 = vpop.xlane.xlu0 %2033
        %v2035 = vsel %vm1563, %v2031, 0.0
        %2036 = vadd.xlane.f32.xlu0 %v2035
        %v2037 = vpop.xlane.xlu0 %2036
        %v2038 = vrcp.pop %v2034
        %v2039 = vrcp.pop %v2037
        %v2040 = vmul.f32 %v2029, %v2038
        %v2041 = vmul.f32 %v2031, %v2039
        %v2042 = vpack.c.bf16 %v2041, %v2040
        %2044 = vrot.lane.b32.xlu0 %v1531, 112
        %v2045 = vpop.permute.xlu0 %2044
        %v2048 = vsel %vm1563, %v2042, 0
        %2050 = vmatprep.subr.bf16.mxu0 0
        %2051 = vmatpush1.bf16.msra.mxu0 %v2045
        %2052 = vmatprep.subr.bf16.mxu0 0
        %2053 = vmatpush1.bf16.msra.mxu0 0
        %2054 = vmatprep.subr.bf16.mxu0 0
        %2055 = vmatpush1.bf16.msra.mxu0 0
        %2056 = vmatprep.subr.bf16.mxu0 0
        %2057 = vmatpush1.bf16.msra.mxu0 0
        %2058 = vmatprep.subr.bf16.mxu0 0
        %2059 = vmatpush1.bf16.msra.mxu0 0
        %2060 = vmatprep.subr.bf16.mxu0 0
        %2061 = vmatpush1.bf16.msra.mxu0 0
        %2062 = vmatprep.subr.bf16.mxu0 0
        %2063 = vmatpush1.bf16.msra.mxu0 0
        %2064 = vmatprep.subr.bf16.mxu0 0
        %2065 = vmatpush1.bf16.msra.mxu0 0
        %2066 = vmatprep.subr.bf16.mxu0 0
        %2067 = vmatpush1.bf16.msra.mxu0 0
        %2068 = vmatprep.subr.bf16.mxu0 0
        %2069 = vmatpush1.bf16.msra.mxu0 0
        %2070 = vmatprep.subr.bf16.mxu0 0
        %2071 = vmatpush1.bf16.msra.mxu0 0
        %2072 = vmatprep.subr.bf16.mxu0 0
        %2073 = vmatpush1.bf16.msra.mxu0 0
        %2074 = vmatprep.subr.bf16.mxu0 0
        %2075 = vmatpush1.bf16.msra.mxu0 0
        %2076 = vmatprep.subr.bf16.mxu0 0
        %2077 = vmatpush1.bf16.msra.mxu0 0
        %2078 = vmatprep.subr.bf16.mxu0 0
        %2079 = vmatpush1.bf16.msra.mxu0 0
        %2080 = vmatprep.subr.bf16.mxu0 0
        %2081 = vmatpush1.bf16.msra.mxu0 0
        %2082 = vmatprep.mubr.bf16.mxu0 0
        %2083 = vmatmul.mubr.bf16.gmra.mrb[0].mxu0 %v2048
        %v2084 = vpop.f32.mrb[0].mxu0
        %v2085 = vadd.f32 0.0, %v2084
        %v2086 = vpop.f32.mrb[0].mxu0
        %v2087 = vpop.f32.mrb[0].mxu0
        %v2088 = vadd.f32 0.0, %v2087
        %v2089 = vpop.f32.mrb[0].mxu0
        %2090 = vdwg.mxu0
        %2091 = vrot.lane.b32.xlu0 %v1551, 96
        %v2092 = vpop.permute.xlu0 %2091
        %2093 = vrot.lane.b32.xlu0 %v1561, 96
        %v2094 = vpop.permute.xlu0 %2093
        %2095 = vrot.lane.b32.xlu0 %v1562, 96
        %v2096 = vpop.permute.xlu0 %2095
        %v2098 = vsel %vm1563, %v2092, 0
        %v2101 = vsel %vm1563, %v2094, 0
        %v2104 = vsel %vm1563, %v2096, 0
        %2106 = vmatprep.subr.bf16.mxu0 0
        %2107 = vmatpush1.bf16.xpose.msra.mxu0 %v2101
        %2108 = vmatprep.subr.bf16.mxu0 0
        %2109 = vmatpush1.bf16.xpose.msra.mxu0 %v2104
        %2110 = vmatprep.subr.bf16.mxu0 0
        %2111 = vmatpush1.bf16.xpose.msra.mxu0 0
        %2112 = vmatprep.subr.bf16.mxu0 0
        %2113 = vmatpush1.bf16.xpose.msra.mxu0 0
        %2114 = vmatprep.subr.bf16.mxu0 0
        %2115 = vmatpush1.bf16.xpose.msra.mxu0 0
        %2116 = vmatprep.subr.bf16.mxu0 0
        %2117 = vmatpush1.bf16.xpose.msra.mxu0 0
        %2118 = vmatprep.subr.bf16.mxu0 0
        %2119 = vmatpush1.bf16.xpose.msra.mxu0 0
        %2120 = vmatprep.subr.bf16.mxu0 0
        %2121 = vmatpush1.bf16.xpose.msra.mxu0 0
        %2122 = vmatprep.subr.bf16.mxu0 0
        %2123 = vmatpush1.bf16.xpose.msra.mxu0 0
        %2124 = vmatprep.subr.bf16.mxu0 0
        %2125 = vmatpush1.bf16.xpose.msra.mxu0 0
        %2126 = vmatprep.subr.bf16.mxu0 0
        %2127 = vmatpush1.bf16.xpose.msra.mxu0 0
        %2128 = vmatprep.subr.bf16.mxu0 0
        %2129 = vmatpush1.bf16.xpose.msra.mxu0 0
        %2130 = vmatprep.subr.bf16.mxu0 0
        %2131 = vmatpush1.bf16.xpose.msra.mxu0 0
        %2132 = vmatprep.subr.bf16.mxu0 0
        %2133 = vmatpush1.bf16.xpose.msra.mxu0 0
        %2134 = vmatprep.subr.bf16.mxu0 0
        %2135 = vmatpush1.bf16.xpose.msra.mxu0 0
        %2136 = vmatprep.subr.bf16.mxu0 0
        %2137 = vmatpush1.bf16.xpose.msra.mxu0 0
        %2138 = vmatprep.mubr.bf16.mxu0 0
        %2139 = vmatmul.mubr.bf16.gmra.mrb[0].mxu0 %v2098
        %v2140 = vpop.f32.mrb[0].mxu0
        %v2141 = vadd.f32 0.0, %v2140
        %v2142 = vpop.f32.mrb[0].mxu0
        %v2143 = vpop.f32.mrb[0].mxu0
        %v2144 = vadd.f32 0.0, %v2143
        %v2145 = vpop.f32.mrb[0].mxu0
        %2146 = vdwg.mxu0
        %v2149 = vrot.slane %v2141, 1
        %v2150 = vrot.slane %v2144, 1
        %v2151 = vsel %vm1616, %v2149, %v2150
        %v2154 = vsel %vm1616, %v2150, %v2149
        %2156 = vrot.lane.b32.xlu0 %v2151, 17
        %v2157 = vpop.permute.xlu0 %2156
        %2158 = vrot.lane.b32.xlu0 %v2154, 17
        %v2159 = vpop.permute.xlu0 %2158
        %v2162 = vsel %vm1630, %v2141, %v2157
        %v2163 = vsel %vm1630, %v2144, %v2159
        %2165 = vrot.lane.b32.xlu0 %v2162, 1
        %v2166 = vpop.permute.xlu0 %2165
        %2168 = vrot.lane.b32.xlu0 %v2162, 2
        %v2169 = vpop.permute.xlu0 %2168
        %2171 = vrot.lane.b32.xlu0 %v2162, 3
        %v2172 = vpop.permute.xlu0 %2171
        %2174 = vrot.lane.b32.xlu0 %v2162, 4
        %v2175 = vpop.permute.xlu0 %2174
        %2177 = vrot.lane.b32.xlu0 %v2162, 5
        %v2178 = vpop.permute.xlu0 %2177
        %2180 = vrot.lane.b32.xlu0 %v2162, 6
        %v2181 = vpop.permute.xlu0 %2180
        %2183 = vrot.lane.b32.xlu0 %v2162, 7
        %v2184 = vpop.permute.xlu0 %2183
        %2187 = vrot.lane.b32.xlu0 %v2163, 8
        %v2188 = vpop.permute.xlu0 %2187
        %2190 = vrot.lane.b32.xlu0 %v2163, 9
        %v2191 = vpop.permute.xlu0 %2190
        %2193 = vrot.lane.b32.xlu0 %v2163, 10
        %v2194 = vpop.permute.xlu0 %2193
        %2196 = vrot.lane.b32.xlu0 %v2163, 11
        %v2197 = vpop.permute.xlu0 %2196
        %2199 = vrot.lane.b32.xlu0 %v2163, 12
        %v2200 = vpop.permute.xlu0 %2199
        %2202 = vrot.lane.b32.xlu0 %v2163, 13
        %v2203 = vpop.permute.xlu0 %2202
        %2205 = vrot.lane.b32.xlu0 %v2163, 14
        %v2206 = vpop.permute.xlu0 %2205
        %2208 = vrot.lane.b32.xlu0 %v2163, 15
        %v2209 = vpop.permute.xlu0 %2208
        %v2211 = vsel %vm1680, %v2162, %v2166
        %v2212 = vsel %vm1682, %v2211, %v2169
        %v2213 = vsel %vm1684, %v2212, %v2172
        %v2214 = vsel %vm1686, %v2213, %v2175
        %v2215 = vsel %vm1688, %v2214, %v2178
        %v2216 = vsel %vm1690, %v2215, %v2181
        %v2217 = vsel %vm1616, %v2216, %v2184
        %v2218 = vsel %vm1680, %v2188, %v2191
        %v2219 = vsel %vm1682, %v2218, %v2194
        %v2220 = vsel %vm1684, %v2219, %v2197
        %v2221 = vsel %vm1686, %v2220, %v2200
        %v2222 = vsel %vm1688, %v2221, %v2203
        %v2223 = vsel %vm1690, %v2222, %v2206
        %v2224 = vsel %vm1616, %v2223, %v2209
        %2225 = vrot.lane.b32.xlu0 %v1541, 96
        %v2226 = vpop.permute.xlu0 %2225
        %2227 = vrot.lane.b32.xlu0 %v1530, 32
        %v2228 = vpop.permute.xlu0 %2227
        %2231 = vrot.lane.b32.xlu0 %v2217, 112
        %v2232 = vpop.permute.xlu0 %2231
        %2233 = vrot.lane.b32.xlu0 %v2224, 112
        %v2234 = vpop.permute.xlu0 %2233
        %v2238 = vsel %vm1563, %v2226, 0
        %v2241 = vsel %vm1563, %v2228, 0
        %2243 = vmatprep.subr.bf16.mxu0 0
        %2244 = vmatpush1.bf16.xpose.msra.mxu0 %v2241
        %2245 = vmatprep.subr.bf16.mxu0 0
        %2246 = vmatpush1.bf16.xpose.msra.mxu0 0
        %2247 = vmatprep.subr.bf16.mxu0 0
        %2248 = vmatpush1.bf16.xpose.msra.mxu0 0
        %2249 = vmatprep.subr.bf16.mxu0 0
        %2250 = vmatpush1.bf16.xpose.msra.mxu0 0
        %2251 = vmatprep.subr.bf16.mxu0 0
        %2252 = vmatpush1.bf16.xpose.msra.mxu0 0
        %2253 = vmatprep.subr.bf16.mxu0 0
        %2254 = vmatpush1.bf16.xpose.msra.mxu0 0
        %2255 = vmatprep.subr.bf16.mxu0 0
        %2256 = vmatpush1.bf16.xpose.msra.mxu0 0
        %2257 = vmatprep.subr.bf16.mxu0 0
        %2258 = vmatpush1.bf16.xpose.msra.mxu0 0
        %2259 = vmatprep.subr.bf16.mxu0 0
        %2260 = vmatpush1.bf16.xpose.msra.mxu0 0
        %2261 = vmatprep.subr.bf16.mxu0 0
        %2262 = vmatpush1.bf16.xpose.msra.mxu0 0
        %2263 = vmatprep.subr.bf16.mxu0 0
        %2264 = vmatpush1.bf16.xpose.msra.mxu0 0
        %2265 = vmatprep.subr.bf16.mxu0 0
        %2266 = vmatpush1.bf16.xpose.msra.mxu0 0
        %2267 = vmatprep.subr.bf16.mxu0 0
        %2268 = vmatpush1.bf16.xpose.msra.mxu0 0
        %2269 = vmatprep.subr.bf16.mxu0 0
        %2270 = vmatpush1.bf16.xpose.msra.mxu0 0
        %2271 = vmatprep.subr.bf16.mxu0 0
        %2272 = vmatpush1.bf16.xpose.msra.mxu0 0
        %2273 = vmatprep.subr.bf16.mxu0 0
        %2274 = vmatpush1.bf16.xpose.msra.mxu0 0
        %2275 = vmatprep.mubr.bf16.mxu0 0
        %2276 = vmatmul.mubr.bf16.gmra.mrb[0].mxu0 %v2238
        %v2277 = vpop.f32.mrb[0].mxu0
        %v2278 = vadd.f32 %v2232, %v2277
        %v2279 = vpop.f32.mrb[0].mxu0
        %v2280 = vpop.f32.mrb[0].mxu0
        %v2281 = vadd.f32 %v2234, %v2280
        %v2282 = vpop.f32.mrb[0].mxu0
        %2283 = vdwg.mxu0
        %v2284 = vsel %vm1563, %v2278, -inf
        %2285 = vmax.xlane.f32.xlu0 %v2284
        %v2286 = vpop.xlane.xlu0 %2285
        %v2287 = vsel %vm1563, %v2281, -inf
        %2288 = vmax.xlane.f32.xlu0 %v2287
        %v2289 = vpop.xlane.xlu0 %2288
        %v2290 = vsub.f32 %v2278, %v2286
        %v2291 = vsub.f32 %v2281, %v2289
        %v2292 = vmul.f32 %v2290, 1.442695
        %v2293 = vpow.pop %v2292
        %v2294 = vmul.f32 %v2291, 1.442695
        %v2295 = vpow.pop %v2294
        %v2296 = vsel %vm1563, %v2293, 0.0
        %2297 = vadd.xlane.f32.xlu0 %v2296
        %v2298 = vpop.xlane.xlu0 %2297
        %v2299 = vsel %vm1563, %v2295, 0.0
        %2300 = vadd.xlane.f32.xlu0 %v2299
        %v2301 = vpop.xlane.xlu0 %2300
        %v2302 = vrcp.pop %v2298
        %v2303 = vrcp.pop %v2301
        %v2304 = vmul.f32 %v2293, %v2302
        %v2305 = vmul.f32 %v2295, %v2303
        %v2306 = vpack.c.bf16 %v2305, %v2304
        %2307 = vrot.lane.b32.xlu0 %v1531, 96
        %v2308 = vpop.permute.xlu0 %2307
        %v2311 = vsel %vm1563, %v2306, 0
        %2313 = vmatprep.subr.bf16.mxu0 0
        %2314 = vmatpush1.bf16.msra.mxu0 %v2308
        %2315 = vmatprep.subr.bf16.mxu0 0
        %2316 = vmatpush1.bf16.msra.mxu0 0
        %2317 = vmatprep.subr.bf16.mxu0 0
        %2318 = vmatpush1.bf16.msra.mxu0 0
        %2319 = vmatprep.subr.bf16.mxu0 0
        %2320 = vmatpush1.bf16.msra.mxu0 0
        %2321 = vmatprep.subr.bf16.mxu0 0
        %2322 = vmatpush1.bf16.msra.mxu0 0
        %2323 = vmatprep.subr.bf16.mxu0 0
        %2324 = vmatpush1.bf16.msra.mxu0 0
        %2325 = vmatprep.subr.bf16.mxu0 0
        %2326 = vmatpush1.bf16.msra.mxu0 0
        %2327 = vmatprep.subr.bf16.mxu0 0
        %2328 = vmatpush1.bf16.msra.mxu0 0
        %2329 = vmatprep.subr.bf16.mxu0 0
        %2330 = vmatpush1.bf16.msra.mxu0 0
        %2331 = vmatprep.subr.bf16.mxu0 0
        %2332 = vmatpush1.bf16.msra.mxu0 0
        %2333 = vmatprep.subr.bf16.mxu0 0
        %2334 = vmatpush1.bf16.msra.mxu0 0
        %2335 = vmatprep.subr.bf16.mxu0 0
        %2336 = vmatpush1.bf16.msra.mxu0 0
        %2337 = vmatprep.subr.bf16.mxu0 0
        %2338 = vmatpush1.bf16.msra.mxu0 0
        %2339 = vmatprep.subr.bf16.mxu0 0
        %2340 = vmatpush1.bf16.msra.mxu0 0
        %2341 = vmatprep.subr.bf16.mxu0 0
        %2342 = vmatpush1.bf16.msra.mxu0 0
        %2343 = vmatprep.subr.bf16.mxu0 0
        %2344 = vmatpush1.bf16.msra.mxu0 0
        %2345 = vmatprep.mubr.bf16.mxu0 0
        %2346 = vmatmul.mubr.bf16.gmra.mrb[0].mxu0 %v2311
        %v2347 = vpop.f32.mrb[0].mxu0
        %v2348 = vadd.f32 0.0, %v2347
        %v2349 = vpop.f32.mrb[0].mxu0
        %v2350 = vpop.f32.mrb[0].mxu0
        %v2351 = vadd.f32 0.0, %v2350
        %v2352 = vpop.f32.mrb[0].mxu0
        %2353 = vdwg.mxu0
        %2354 = vrot.lane.b32.xlu0 %v1551, 80
        %v2355 = vpop.permute.xlu0 %2354
        %2356 = vrot.lane.b32.xlu0 %v1561, 80
        %v2357 = vpop.permute.xlu0 %2356
        %2358 = vrot.lane.b32.xlu0 %v1562, 80
        %v2359 = vpop.permute.xlu0 %2358
        %v2361 = vsel %vm1563, %v2355, 0
        %v2364 = vsel %vm1563, %v2357, 0
        %v2367 = vsel %vm1563, %v2359, 0
        %2369 = vmatprep.subr.bf16.mxu0 0
        %2370 = vmatpush1.bf16.xpose.msra.mxu0 %v2364
        %2371 = vmatprep.subr.bf16.mxu0 0
        %2372 = vmatpush1.bf16.xpose.msra.mxu0 %v2367
        %2373 = vmatprep.subr.bf16.mxu0 0
        %2374 = vmatpush1.bf16.xpose.msra.mxu0 0
        %2375 = vmatprep.subr.bf16.mxu0 0
        %2376 = vmatpush1.bf16.xpose.msra.mxu0 0
        %2377 = vmatprep.subr.bf16.mxu0 0
        %2378 = vmatpush1.bf16.xpose.msra.mxu0 0
        %2379 = vmatprep.subr.bf16.mxu0 0
        %2380 = vmatpush1.bf16.xpose.msra.mxu0 0
        %2381 = vmatprep.subr.bf16.mxu0 0
        %2382 = vmatpush1.bf16.xpose.msra.mxu0 0
        %2383 = vmatprep.subr.bf16.mxu0 0
        %2384 = vmatpush1.bf16.xpose.msra.mxu0 0
        %2385 = vmatprep.subr.bf16.mxu0 0
        %2386 = vmatpush1.bf16.xpose.msra.mxu0 0
        %2387 = vmatprep.subr.bf16.mxu0 0
        %2388 = vmatpush1.bf16.xpose.msra.mxu0 0
        %2389 = vmatprep.subr.bf16.mxu0 0
        %2390 = vmatpush1.bf16.xpose.msra.mxu0 0
        %2391 = vmatprep.subr.bf16.mxu0 0
        %2392 = vmatpush1.bf16.xpose.msra.mxu0 0
        %2393 = vmatprep.subr.bf16.mxu0 0
        %2394 = vmatpush1.bf16.xpose.msra.mxu0 0
        %2395 = vmatprep.subr.bf16.mxu0 0
        %2396 = vmatpush1.bf16.xpose.msra.mxu0 0
        %2397 = vmatprep.subr.bf16.mxu0 0
        %2398 = vmatpush1.bf16.xpose.msra.mxu0 0
        %2399 = vmatprep.subr.bf16.mxu0 0
        %2400 = vmatpush1.bf16.xpose.msra.mxu0 0
        %2401 = vmatprep.mubr.bf16.mxu0 0
        %2402 = vmatmul.mubr.bf16.gmra.mrb[0].mxu0 %v2361
        %v2403 = vpop.f32.mrb[0].mxu0
        %v2404 = vadd.f32 0.0, %v2403
        %v2405 = vpop.f32.mrb[0].mxu0
        %v2406 = vpop.f32.mrb[0].mxu0
        %v2407 = vadd.f32 0.0, %v2406
        %v2408 = vpop.f32.mrb[0].mxu0
        %2409 = vdwg.mxu0
        %v2412 = vrot.slane %v2404, 1
        %v2413 = vrot.slane %v2407, 1
        %v2414 = vsel %vm1616, %v2412, %v2413
        %v2417 = vsel %vm1616, %v2413, %v2412
        %2419 = vrot.lane.b32.xlu0 %v2414, 17
        %v2420 = vpop.permute.xlu0 %2419
        %2421 = vrot.lane.b32.xlu0 %v2417, 17
        %v2422 = vpop.permute.xlu0 %2421
        %v2425 = vsel %vm1630, %v2404, %v2420
        %v2426 = vsel %vm1630, %v2407, %v2422
        %2428 = vrot.lane.b32.xlu0 %v2425, 1
        %v2429 = vpop.permute.xlu0 %2428
        %2431 = vrot.lane.b32.xlu0 %v2425, 2
        %v2432 = vpop.permute.xlu0 %2431
        %2434 = vrot.lane.b32.xlu0 %v2425, 3
        %v2435 = vpop.permute.xlu0 %2434
        %2437 = vrot.lane.b32.xlu0 %v2425, 4
        %v2438 = vpop.permute.xlu0 %2437
        %2440 = vrot.lane.b32.xlu0 %v2425, 5
        %v2441 = vpop.permute.xlu0 %2440
        %2443 = vrot.lane.b32.xlu0 %v2425, 6
        %v2444 = vpop.permute.xlu0 %2443
        %2446 = vrot.lane.b32.xlu0 %v2425, 7
        %v2447 = vpop.permute.xlu0 %2446
        %2450 = vrot.lane.b32.xlu0 %v2426, 8
        %v2451 = vpop.permute.xlu0 %2450
        %2453 = vrot.lane.b32.xlu0 %v2426, 9
        %v2454 = vpop.permute.xlu0 %2453
        %2456 = vrot.lane.b32.xlu0 %v2426, 10
        %v2457 = vpop.permute.xlu0 %2456
        %2459 = vrot.lane.b32.xlu0 %v2426, 11
        %v2460 = vpop.permute.xlu0 %2459
        %2462 = vrot.lane.b32.xlu0 %v2426, 12
        %v2463 = vpop.permute.xlu0 %2462
        %2465 = vrot.lane.b32.xlu0 %v2426, 13
        %v2466 = vpop.permute.xlu0 %2465
        %2468 = vrot.lane.b32.xlu0 %v2426, 14
        %v2469 = vpop.permute.xlu0 %2468
        %2471 = vrot.lane.b32.xlu0 %v2426, 15
        %v2472 = vpop.permute.xlu0 %2471
        %v2474 = vsel %vm1680, %v2425, %v2429
        %v2475 = vsel %vm1682, %v2474, %v2432
        %v2476 = vsel %vm1684, %v2475, %v2435
        %v2477 = vsel %vm1686, %v2476, %v2438
        %v2478 = vsel %vm1688, %v2477, %v2441
        %v2479 = vsel %vm1690, %v2478, %v2444
        %v2480 = vsel %vm1616, %v2479, %v2447
        %v2481 = vsel %vm1680, %v2451, %v2454
        %v2482 = vsel %vm1682, %v2481, %v2457
        %v2483 = vsel %vm1684, %v2482, %v2460
        %v2484 = vsel %vm1686, %v2483, %v2463
        %v2485 = vsel %vm1688, %v2484, %v2466
        %v2486 = vsel %vm1690, %v2485, %v2469
        %v2487 = vsel %vm1616, %v2486, %v2472
        %2488 = vrot.lane.b32.xlu0 %v1541, 80
        %v2489 = vpop.permute.xlu0 %2488
        %2490 = vrot.lane.b32.xlu0 %v1530, 16
        %v2491 = vpop.permute.xlu0 %2490
        %2494 = vrot.lane.b32.xlu0 %v2480, 112
        %v2495 = vpop.permute.xlu0 %2494
        %2496 = vrot.lane.b32.xlu0 %v2487, 112
        %v2497 = vpop.permute.xlu0 %2496
        %v2501 = vsel %vm1563, %v2489, 0
        %v2504 = vsel %vm1563, %v2491, 0
        %2506 = vmatprep.subr.bf16.mxu0 0
        %2507 = vmatpush1.bf16.xpose.msra.mxu0 %v2504
        %2508 = vmatprep.subr.bf16.mxu0 0
        %2509 = vmatpush1.bf16.xpose.msra.mxu0 0
        %2510 = vmatprep.subr.bf16.mxu0 0
        %2511 = vmatpush1.bf16.xpose.msra.mxu0 0
        %2512 = vmatprep.subr.bf16.mxu0 0
        %2513 = vmatpush1.bf16.xpose.msra.mxu0 0
        %2514 = vmatprep.subr.bf16.mxu0 0
        %2515 = vmatpush1.bf16.xpose.msra.mxu0 0
        %2516 = vmatprep.subr.bf16.mxu0 0
        %2517 = vmatpush1.bf16.xpose.msra.mxu0 0
        %2518 = vmatprep.subr.bf16.mxu0 0
        %2519 = vmatpush1.bf16.xpose.msra.mxu0 0
        %2520 = vmatprep.subr.bf16.mxu0 0
        %2521 = vmatpush1.bf16.xpose.msra.mxu0 0
        %2522 = vmatprep.subr.bf16.mxu0 0
        %2523 = vmatpush1.bf16.xpose.msra.mxu0 0
        %2524 = vmatprep.subr.bf16.mxu0 0
        %2525 = vmatpush1.bf16.xpose.msra.mxu0 0
        %2526 = vmatprep.subr.bf16.mxu0 0
        %2527 = vmatpush1.bf16.xpose.msra.mxu0 0
        %2528 = vmatprep.subr.bf16.mxu0 0
        %2529 = vmatpush1.bf16.xpose.msra.mxu0 0
        %2530 = vmatprep.subr.bf16.mxu0 0
        %2531 = vmatpush1.bf16.xpose.msra.mxu0 0
        %2532 = vmatprep.subr.bf16.mxu0 0
        %2533 = vmatpush1.bf16.xpose.msra.mxu0 0
        %2534 = vmatprep.subr.bf16.mxu0 0
        %2535 = vmatpush1.bf16.xpose.msra.mxu0 0
        %2536 = vmatprep.subr.bf16.mxu0 0
        %2537 = vmatpush1.bf16.xpose.msra.mxu0 0
        %2538 = vmatprep.mubr.bf16.mxu0 0
        %2539 = vmatmul.mubr.bf16.gmra.mrb[0].mxu0 %v2501
        %v2540 = vpop.f32.mrb[0].mxu0
        %v2541 = vadd.f32 %v2495, %v2540
        %v2542 = vpop.f32.mrb[0].mxu0
        %v2543 = vpop.f32.mrb[0].mxu0
        %v2544 = vadd.f32 %v2497, %v2543
        %v2545 = vpop.f32.mrb[0].mxu0
        %2546 = vdwg.mxu0
        %v2547 = vsel %vm1563, %v2541, -inf
        %2548 = vmax.xlane.f32.xlu0 %v2547
        %v2549 = vpop.xlane.xlu0 %2548
        %v2550 = vsel %vm1563, %v2544, -inf
        %2551 = vmax.xlane.f32.xlu0 %v2550
        %v2552 = vpop.xlane.xlu0 %2551
        %v2553 = vsub.f32 %v2541, %v2549
        %v2554 = vsub.f32 %v2544, %v2552
        %v2555 = vmul.f32 %v2553, 1.442695
        %v2556 = vpow.pop %v2555
        %v2557 = vmul.f32 %v2554, 1.442695
        %v2558 = vpow.pop %v2557
        %v2559 = vsel %vm1563, %v2556, 0.0
        %2560 = vadd.xlane.f32.xlu0 %v2559
        %v2561 = vpop.xlane.xlu0 %2560
        %v2562 = vsel %vm1563, %v2558, 0.0
        %2563 = vadd.xlane.f32.xlu0 %v2562
        %v2564 = vpop.xlane.xlu0 %2563
        %v2565 = vrcp.pop %v2561
        %v2566 = vrcp.pop %v2564
        %v2567 = vmul.f32 %v2556, %v2565
        %v2568 = vmul.f32 %v2558, %v2566
        %v2569 = vpack.c.bf16 %v2568, %v2567
        %2570 = vrot.lane.b32.xlu0 %v1531, 80
        %v2571 = vpop.permute.xlu0 %2570
        %v2574 = vsel %vm1563, %v2569, 0
        %2576 = vmatprep.subr.bf16.mxu0 0
        %2577 = vmatpush1.bf16.msra.mxu0 %v2571
        %2578 = vmatprep.subr.bf16.mxu0 0
        %2579 = vmatpush1.bf16.msra.mxu0 0
        %2580 = vmatprep.subr.bf16.mxu0 0
        %2581 = vmatpush1.bf16.msra.mxu0 0
        %2582 = vmatprep.subr.bf16.mxu0 0
        %2583 = vmatpush1.bf16.msra.mxu0 0
        %2584 = vmatprep.subr.bf16.mxu0 0
        %2585 = vmatpush1.bf16.msra.mxu0 0
        %2586 = vmatprep.subr.bf16.mxu0 0
        %2587 = vmatpush1.bf16.msra.mxu0 0
        %2588 = vmatprep.subr.bf16.mxu0 0
        %2589 = vmatpush1.bf16.msra.mxu0 0
        %2590 = vmatprep.subr.bf16.mxu0 0
        %2591 = vmatpush1.bf16.msra.mxu0 0
        %2592 = vmatprep.subr.bf16.mxu0 0
        %2593 = vmatpush1.bf16.msra.mxu0 0
        %2594 = vmatprep.subr.bf16.mxu0 0
        %2595 = vmatpush1.bf16.msra.mxu0 0
        %2596 = vmatprep.subr.bf16.mxu0 0
        %2597 = vmatpush1.bf16.msra.mxu0 0
        %2598 = vmatprep.subr.bf16.mxu0 0
        %2599 = vmatpush1.bf16.msra.mxu0 0
        %2600 = vmatprep.subr.bf16.mxu0 0
        %2601 = vmatpush1.bf16.msra.mxu0 0
        %2602 = vmatprep.subr.bf16.mxu0 0
        %2603 = vmatpush1.bf16.msra.mxu0 0
        %2604 = vmatprep.subr.bf16.mxu0 0
        %2605 = vmatpush1.bf16.msra.mxu0 0
        %2606 = vmatprep.subr.bf16.mxu0 0
        %2607 = vmatpush1.bf16.msra.mxu0 0
        %2608 = vmatprep.mubr.bf16.mxu0 0
        %2609 = vmatmul.mubr.bf16.gmra.mrb[0].mxu0 %v2574
        %v2610 = vpop.f32.mrb[0].mxu0
        %v2611 = vadd.f32 0.0, %v2610
        %v2612 = vpop.f32.mrb[0].mxu0
        %v2613 = vpop.f32.mrb[0].mxu0
        %v2614 = vadd.f32 0.0, %v2613
        %v2615 = vpop.f32.mrb[0].mxu0
        %2616 = vdwg.mxu0
        %2619 = vrot.lane.b32.xlu0 %v2085, 16
        %v2620 = vpop.permute.xlu0 %2619
        %2621 = vrot.lane.b32.xlu0 %v2088, 16
        %v2622 = vpop.permute.xlu0 %2621
        %2627 = vrot.lane.b32.xlu0 %v2348, 32
        %v2628 = vpop.permute.xlu0 %2627
        %2629 = vrot.lane.b32.xlu0 %v2351, 32
        %v2630 = vpop.permute.xlu0 %2629
        %2635 = vrot.lane.b32.xlu0 %v2611, 48
        %v2636 = vpop.permute.xlu0 %2635
        %2637 = vrot.lane.b32.xlu0 %v2614, 48
        %v2638 = vpop.permute.xlu0 %2637
        %v2641 = vsel %vm1563, %v1819, %v2620
        %v2642 = vsel %vm1563, %v1822, %v2622
        %vm2643 = vcmask 261120
        %v2644 = vsel %vm2643, %v2641, %v2628
        %v2645 = vsel %vm2643, %v2642, %v2630
        %vm2646 = vcmask 392192
        %v2647 = vsel %vm2646, %v2644, %v2636
        %v2648 = vsel %vm2646, %v2645, %v2638
        %v2649 = vpack.c.bf16 %v2648, %v2647
        %v2650 = vld [vmem:[%s29] sm:$0xf]
        %v2651 = vld [vmem:[%s29 + $0x4] sm:$0xf]
        %v2652 = vld [vmem:[%s29 + $0x8] sm:$0xf]
        %v2653 = vld [vmem:[%s29 + $0xc] sm:$0xf]
        %v2654 = vld [vmem:[%s29 + $0x10] sm:$0xf]
        %v2655 = vld [vmem:[%s29 + $0x14] sm:$0xf]
        %v2656 = vld [vmem:[%s29 + $0x18] sm:$0xf]
        %v2657 = vld [vmem:[%s29 + $0x1c] sm:$0xf]
        %v2658 = vld [vmem:[%s31] sm:$0x1]
        %v2660 = vlaneseq
        %v2661 = vshrl.u32 %v2660, 7
        %v2662 = vsub.s32 0, %v2661
        %v2663 = vrot.slane %v2658, %v2662
        %v2673 = vunpack.c.l.b16 %v2650
        %v2674 = vunpack.c.l.b16 %v2651
        %v2675 = vunpack.c.l.b16 %v2652
        %v2676 = vunpack.c.l.b16 %v2653
        %v2677 = vunpack.c.l.b16 %v2654
        %v2678 = vunpack.c.l.b16 %v2655
        %v2679 = vunpack.c.l.b16 %v2656
        %v2680 = vunpack.c.l.b16 %v2657
        %v2681 = vpack.c.b16 %v2674, %v2673
        %v2682 = vpack.c.b16 %v2676, %v2675
        %v2683 = vpack.c.b16 %v2678, %v2677
        %v2684 = vpack.c.b16 %v2680, %v2679
        %v2690 = vsel %vm1060, %v2649, 0
        %2692 = vmatprep.subr.bf16.mxu0 0
        %2693 = vmatpush1.bf16.msra.mxu0 %v2681
        %2694 = vmatprep.subr.bf16.mxu0 0
        %2695 = vmatpush1.bf16.msra.mxu0 %v2682
        %2696 = vmatprep.subr.bf16.mxu0 0
        %2697 = vmatpush1.bf16.msra.mxu0 %v2683
        %2698 = vmatprep.subr.bf16.mxu0 0
        %2699 = vmatpush1.bf16.msra.mxu0 %v2684
        %2700 = vmatprep.subr.bf16.mxu0 0
        %2701 = vmatpush1.bf16.msra.mxu0 0
        %2702 = vmatprep.subr.bf16.mxu0 0
        %2703 = vmatpush1.bf16.msra.mxu0 0
        %2704 = vmatprep.subr.bf16.mxu0 0
        %2705 = vmatpush1.bf16.msra.mxu0 0
        %2706 = vmatprep.subr.bf16.mxu0 0
        %2707 = vmatpush1.bf16.msra.mxu0 0
        %2708 = vmatprep.subr.bf16.mxu0 0
        %2709 = vmatpush1.bf16.msra.mxu0 0
        %2710 = vmatprep.subr.bf16.mxu0 0
        %2711 = vmatpush1.bf16.msra.mxu0 0
        %2712 = vmatprep.subr.bf16.mxu0 0
        %2713 = vmatpush1.bf16.msra.mxu0 0
        %2714 = vmatprep.subr.bf16.mxu0 0
        %2715 = vmatpush1.bf16.msra.mxu0 0
        %2716 = vmatprep.subr.bf16.mxu0 0
        %2717 = vmatpush1.bf16.msra.mxu0 0
        %2718 = vmatprep.subr.bf16.mxu0 0
        %2719 = vmatpush1.bf16.msra.mxu0 0
        %2720 = vmatprep.subr.bf16.mxu0 0
        %2721 = vmatpush1.bf16.msra.mxu0 0
        %2722 = vmatprep.subr.bf16.mxu0 0
        %2723 = vmatpush1.bf16.msra.mxu0 0
        %2724 = vmatprep.mubr.bf16.mxu0 0
        %2725 = vmatmul.mubr.bf16.gmra.mrb[0].mxu0 %v2690
        %v2726 = vpop.f32.mrb[0].mxu0
        %v2727 = vadd.f32 %v2663, %v2726
        %v2728 = vpop.f32.mrb[0].mxu0
        %v2729 = vpop.f32.mrb[0].mxu0
        %v2730 = vadd.f32 %v2663, %v2729
        %v2731 = vpop.f32.mrb[0].mxu0
        %2732 = vdwg.mxu0
        %v2733 = vadd.f32 %v2727, %v1377
        %v2734 = vadd.f32 %v2730, %v1378
        %v2735 = vld [vmem:[%s33] sm:$0x1]
        %v2736 = vld [vmem:[%s35] sm:$0x1]
        %v2737 = vsel %vm1060, %v2733, 0.0
        %2738 = vadd.xlane.f32.xlu0 %v2737
        %v2739 = vpop.xlane.xlu0 %2738
        %v2740 = vsel %vm1060, %v2734, 0.0
        %2741 = vadd.xlane.f32.xlu0 %v2740
        %v2742 = vpop.xlane.xlu0 %2741
        %v2743 = vmul.f32 %v2739, %v1067
        %v2744 = vmul.f32 %v2742, %v1067
        %v2745 = vsub.f32 %v2733, %v2743
        %v2746 = vsub.f32 %v2734, %v2744
        %v2747 = vmul.f32 %v2745, %v2745
        %v2748 = vmul.f32 %v2746, %v2746
        %v2749 = vsel %vm1060, %v2747, 0.0
        %2750 = vadd.xlane.f32.xlu0 %v2749
        %v2751 = vpop.xlane.xlu0 %2750
        %v2752 = vsel %vm1060, %v2748, 0.0
        %2753 = vadd.xlane.f32.xlu0 %v2752
        %v2754 = vpop.xlane.xlu0 %2753
        %v2755 = vmul.f32 %v2751, %v1067
        %v2756 = vmul.f32 %v2754, %v1067
        %v2757 = vadd.f32 %v2755, 1e-05
        %v2758 = vadd.f32 %v2756, 1e-05
        %v2759 = vrsqrt.pop %v2757
        %v2760 = vrsqrt.pop %v2758
        %v2761 = vmul.f32 %v2745, %v2759
        %v2762 = vmul.f32 %v2746, %v2760
        %v2764 = vlaneseq
        %v2765 = vshrl.u32 %v2764, 7
        %v2766 = vsub.s32 0, %v2765
        %v2767 = vrot.slane %v2735, %v2766
        %v2769 = vmul.f32 %v2761, %v2767
        %v2770 = vmul.f32 %v2762, %v2767
        %v2772 = vlaneseq
        %v2773 = vshrl.u32 %v2772, 7
        %v2774 = vsub.s32 0, %v2773
        %v2775 = vrot.slane %v2736, %v2774
        %v2777 = vadd.f32 %v2769, %v2775
        %v2778 = vadd.f32 %v2770, %v2775
        %v2779 = vpack.c.bf16 %v2778, %v2777
        %v2780 = vld [vmem:[%s37] sm:$0xf]
        %v2781 = vld [vmem:[%s37 + $0x4] sm:$0xf]
        %v2782 = vld [vmem:[%s37 + $0x8] sm:$0xf]
        %v2783 = vld [vmem:[%s37 + $0xc] sm:$0xf]
        %v2784 = vld [vmem:[%s37 + $0x10] sm:$0xf]
        %v2785 = vld [vmem:[%s37 + $0x14] sm:$0xf]
        %v2786 = vld [vmem:[%s37 + $0x18] sm:$0xf]
        %v2787 = vld [vmem:[%s37 + $0x1c] sm:$0xf]
        %v2788 = vld [vmem:[%s39] sm:$0x1]
        %v2790 = vlaneseq
        %v2791 = vshrl.u32 %v2790, 7
        %v2792 = vsub.s32 0, %v2791
        %v2793 = vrot.slane %v2788, %v2792
        %v2803 = vunpack.c.l.b16 %v2780
        %v2804 = vunpack.c.l.b16 %v2781
        %v2805 = vunpack.c.l.b16 %v2782
        %v2806 = vunpack.c.l.b16 %v2783
        %v2807 = vunpack.c.l.b16 %v2784
        %v2808 = vunpack.c.l.b16 %v2785
        %v2809 = vunpack.c.l.b16 %v2786
        %v2810 = vunpack.c.l.b16 %v2787
        %v2811 = vpack.c.b16 %v2804, %v2803
        %v2812 = vpack.c.b16 %v2806, %v2805
        %v2813 = vpack.c.b16 %v2808, %v2807
        %v2814 = vpack.c.b16 %v2810, %v2809
        %v2820 = vsel %vm1060, %v2779, 0
        %2822 = vmatprep.subr.bf16.mxu0 0
        %2823 = vmatpush1.bf16.msra.mxu0 %v2811
        %2824 = vmatprep.subr.bf16.mxu0 0
        %2825 = vmatpush1.bf16.msra.mxu0 %v2812
        %2826 = vmatprep.subr.bf16.mxu0 0
        %2827 = vmatpush1.bf16.msra.mxu0 %v2813
        %2828 = vmatprep.subr.bf16.mxu0 0
        %2829 = vmatpush1.bf16.msra.mxu0 %v2814
        %2830 = vmatprep.subr.bf16.mxu0 0
        %2831 = vmatpush1.bf16.msra.mxu0 0
        %2832 = vmatprep.subr.bf16.mxu0 0
        %2833 = vmatpush1.bf16.msra.mxu0 0
        %2834 = vmatprep.subr.bf16.mxu0 0
        %2835 = vmatpush1.bf16.msra.mxu0 0
        %2836 = vmatprep.subr.bf16.mxu0 0
        %2837 = vmatpush1.bf16.msra.mxu0 0
        %2838 = vmatprep.subr.bf16.mxu0 0
        %2839 = vmatpush1.bf16.msra.mxu0 0
        %2840 = vmatprep.subr.bf16.mxu0 0
        %2841 = vmatpush1.bf16.msra.mxu0 0
        %2842 = vmatprep.subr.bf16.mxu0 0
        %2843 = vmatpush1.bf16.msra.mxu0 0
        %2844 = vmatprep.subr.bf16.mxu0 0
        %2845 = vmatpush1.bf16.msra.mxu0 0
        %2846 = vmatprep.subr.bf16.mxu0 0
        %2847 = vmatpush1.bf16.msra.mxu0 0
        %2848 = vmatprep.subr.bf16.mxu0 0
        %2849 = vmatpush1.bf16.msra.mxu0 0
        %2850 = vmatprep.subr.bf16.mxu0 0
        %2851 = vmatpush1.bf16.msra.mxu0 0
        %2852 = vmatprep.subr.bf16.mxu0 0
        %2853 = vmatpush1.bf16.msra.mxu0 0
        %2854 = vmatprep.mubr.bf16.mxu0 0
        %2855 = vmatmul.mubr.bf16.gmra.mrb[0].mxu0 %v2820
        %v2856 = vpop.f32.mrb[0].mxu0
        %v2857 = vadd.f32 %v2793, %v2856
        %v2858 = vpop.f32.mrb[0].mxu0
        %v2859 = vpop.f32.mrb[0].mxu0
        %v2860 = vadd.f32 %v2793, %v2859
        %v2861 = vpop.f32.mrb[0].mxu0
        %2862 = vdwg.mxu0
        %v2863 = vxor.u32 %v2857, 2147483648
        %v2864 = vxor.u32 %v2860, 2147483648
        %v2865 = vmul.f32 %v2863, 1.442695
        %v2866 = vpow.pop %v2865
        %v2867 = vmul.f32 %v2864, 1.442695
        %v2868 = vpow.pop %v2867
        %v2869 = vadd.f32 %v2866, 1.0
        %v2870 = vadd.f32 %v2868, 1.0
        %v2871 = vrcp.pop %v2869
        %v2872 = vmul.f32 1.0, %v2871
        %v2873 = vrcp.pop %v2870
        %v2874 = vmul.f32 1.0, %v2873
        %2877 = vrot.lane.b32.xlu0 %v2872, 64
        %v2878 = vpop.permute.xlu0 %2877
        %2879 = vrot.lane.b32.xlu0 %v2874, 64
        %v2880 = vpop.permute.xlu0 %2879
        %v2883 = vmul.f32 %v2857, %v2878
        %v2884 = vmul.f32 %v2860, %v2880
        %v2887 = vrot.slane %v2883, 1
        %v2888 = vrot.slane %v2884, 1
        %v2889 = vsel %vm1616, %v2887, %v2888
        %v2893 = vsel %vm1616, 0.0, %v2887
        %v2894 = vsel %vm1616, %v2888, 0.0
        %v2895 = vld [vmem:[%s41] sm:$0xff]
        %v2896 = vld [vmem:[%s41 + $0x8] sm:$0x7f]
        %v2897 = vlaneseq
        %v2898 = vshrl.u32 %v2897, 7
        %v2899 = vsub.s32 0, %v2898
        %v2900 = vrot.slane %v2895, %v2899
        %v2901 = vmul.f32 %v2893, %v2900
        %v2902 = vmul.f32 %v2889, %v2900
        %v2903 = vadd.f32 %v2901, 0.0
        %v2904 = vadd.f32 %v2902, 0.0
        %v2905 = vlaneseq
        %v2906 = vshrl.u32 %v2905, 7
        %v2907 = vsub.s32 1, %v2906
        %v2908 = vrot.slane %v2895, %v2907
        %v2909 = vmul.f32 %v2893, %v2908
        %v2910 = vmul.f32 %v2889, %v2908
        %v2911 = vmul.f32 %v2894, %v2908
        %v2915 = vrot.slane %v2909, 1
        %v2916 = vrot.slane %v2910, 1
        %v2917 = vsel %vm1616, %v2915, %v2916
        %v2918 = vrot.slane %v2911, 1
        %v2919 = vsel %vm1616, %v2916, %v2918
        %v2922 = vadd.f32 %v2903, %v2917
        %v2923 = vadd.f32 %v2904, %v2919
        %v2924 = vlaneseq
        %v2925 = vshrl.u32 %v2924, 7
        %v2926 = vsub.s32 2, %v2925
        %v2927 = vrot.slane %v2895, %v2926
        %v2928 = vmul.f32 %v2893, %v2927
        %v2929 = vmul.f32 %v2889, %v2927
        %v2930 = vmul.f32 %v2894, %v2927
        %v2934 = vrot.slane %v2928, 2
        %v2935 = vrot.slane %v2929, 2
        %v2936 = vsel %vm1690, %v2934, %v2935
        %v2937 = vrot.slane %v2930, 2
        %v2938 = vsel %vm1690, %v2935, %v2937
        %v2941 = vadd.f32 %v2922, %v2936
        %v2942 = vadd.f32 %v2923, %v2938
        %v2943 = vlaneseq
        %v2944 = vshrl.u32 %v2943, 7
        %v2945 = vsub.s32 3, %v2944
        %v2946 = vrot.slane %v2895, %v2945
        %v2947 = vmul.f32 %v2893, %v2946
        %v2948 = vmul.f32 %v2889, %v2946
        %v2949 = vmul.f32 %v2894, %v2946
        %v2953 = vrot.slane %v2947, 3
        %v2954 = vrot.slane %v2948, 3
        %v2955 = vsel %vm1688, %v2953, %v2954
        %v2956 = vrot.slane %v2949, 3
        %v2957 = vsel %vm1688, %v2954, %v2956
        %v2960 = vadd.f32 %v2941, %v2955
        %v2961 = vadd.f32 %v2942, %v2957
        %v2962 = vlaneseq
        %v2963 = vshrl.u32 %v2962, 7
        %v2964 = vsub.s32 4, %v2963
        %v2965 = vrot.slane %v2895, %v2964
        %v2966 = vmul.f32 %v2893, %v2965
        %v2967 = vmul.f32 %v2889, %v2965
        %v2968 = vmul.f32 %v2894, %v2965
        %v2972 = vrot.slane %v2966, 4
        %v2973 = vrot.slane %v2967, 4
        %v2974 = vsel %vm1686, %v2972, %v2973
        %v2975 = vrot.slane %v2968, 4
        %v2976 = vsel %vm1686, %v2973, %v2975
        %v2979 = vadd.f32 %v2960, %v2974
        %v2980 = vadd.f32 %v2961, %v2976
        %v2981 = vlaneseq
        %v2982 = vshrl.u32 %v2981, 7
        %v2983 = vsub.s32 5, %v2982
        %v2984 = vrot.slane %v2895, %v2983
        %v2985 = vmul.f32 %v2893, %v2984
        %v2986 = vmul.f32 %v2889, %v2984
        %v2987 = vmul.f32 %v2894, %v2984
        %v2991 = vrot.slane %v2985, 5
        %v2992 = vrot.slane %v2986, 5
        %v2993 = vsel %vm1684, %v2991, %v2992
        %v2994 = vrot.slane %v2987, 5
        %v2995 = vsel %vm1684, %v2992, %v2994
        %v2998 = vadd.f32 %v2979, %v2993
        %v2999 = vadd.f32 %v2980, %v2995
        %v3000 = vlaneseq
        %v3001 = vshrl.u32 %v3000, 7
        %v3002 = vsub.s32 6, %v3001
        %v3003 = vrot.slane %v2895, %v3002
        %v3004 = vmul.f32 %v2893, %v3003
        %v3005 = vmul.f32 %v2889, %v3003
        %v3006 = vmul.f32 %v2894, %v3003
        %v3010 = vrot.slane %v3004, 6
        %v3011 = vrot.slane %v3005, 6
        %v3012 = vsel %vm1682, %v3010, %v3011
        %v3013 = vrot.slane %v3006, 6
        %v3014 = vsel %vm1682, %v3011, %v3013
        %v3017 = vadd.f32 %v2998, %v3012
        %v3018 = vadd.f32 %v2999, %v3014
        %v3019 = vlaneseq
        %v3020 = vshrl.u32 %v3019, 7
        %v3021 = vsub.s32 7, %v3020
        %v3022 = vrot.slane %v2895, %v3021
        %v3023 = vmul.f32 %v2893, %v3022
        %v3024 = vmul.f32 %v2889, %v3022
        %v3025 = vmul.f32 %v2894, %v3022
        %v3029 = vrot.slane %v3023, 7
        %v3030 = vrot.slane %v3024, 7
        %v3031 = vsel %vm1680, %v3029, %v3030
        %v3032 = vrot.slane %v3025, 7
        %v3033 = vsel %vm1680, %v3030, %v3032
        %v3036 = vadd.f32 %v3017, %v3031
        %v3037 = vadd.f32 %v3018, %v3033
        %v3038 = vlaneseq
        %v3039 = vshrl.u32 %v3038, 7
        %v3040 = vsub.s32 0, %v3039
        %v3041 = vrot.slane %v2896, %v3040
        %v3042 = vmul.f32 %v2889, %v3041
        %v3043 = vmul.f32 %v2894, %v3041
        %v3044 = vadd.f32 %v3036, %v3042
        %v3045 = vadd.f32 %v3037, %v3043
        %v3046 = vlaneseq
        %v3047 = vshrl.u32 %v3046, 7
        %v3048 = vsub.s32 1, %v3047
        %v3049 = vrot.slane %v2896, %v3048
        %v3050 = vmul.f32 %v2889, %v3049
        %v3051 = vmul.f32 %v2894, %v3049
        %v3052 = vmul.f32 %v3049, 0.0
        %v3056 = vrot.slane %v3050, 1
        %v3057 = vrot.slane %v3051, 1
        %v3058 = vsel %vm1616, %v3056, %v3057
        %v3059 = vrot.slane %v3052, 1
        %v3060 = vsel %vm1616, %v3057, %v3059
        %v3063 = vadd.f32 %v3044, %v3058
        %v3064 = vadd.f32 %v3045, %v3060
        %v3065 = vlaneseq
        %v3066 = vshrl.u32 %v3065, 7
        %v3067 = vsub.s32 2, %v3066
        %v3068 = vrot.slane %v2896, %v3067
        %v3069 = vmul.f32 %v2889, %v3068
        %v3070 = vmul.f32 %v2894, %v3068
        %v3071 = vmul.f32 %v3068, 0.0
        %v3075 = vrot.slane %v3069, 2
        %v3076 = vrot.slane %v3070, 2
        %v3077 = vsel %vm1690, %v3075, %v3076
        %v3078 = vrot.slane %v3071, 2
        %v3079 = vsel %vm1690, %v3076, %v3078
        %v3082 = vadd.f32 %v3063, %v3077
        %v3083 = vadd.f32 %v3064, %v3079
        %v3084 = vlaneseq
        %v3085 = vshrl.u32 %v3084, 7
        %v3086 = vsub.s32 3, %v3085
        %v3087 = vrot.slane %v2896, %v3086
        %v3088 = vmul.f32 %v2889, %v3087
        %v3089 = vmul.f32 %v2894, %v3087
        %v3090 = vmul.f32 %v3087, 0.0
        %v3094 = vrot.slane %v3088, 3
        %v3095 = vrot.slane %v3089, 3
        %v3096 = vsel %vm1688, %v3094, %v3095
        %v3097 = vrot.slane %v3090, 3
        %v3098 = vsel %vm1688, %v3095, %v3097
        %v3101 = vadd.f32 %v3082, %v3096
        %v3102 = vadd.f32 %v3083, %v3098
        %v3103 = vlaneseq
        %v3104 = vshrl.u32 %v3103, 7
        %v3105 = vsub.s32 4, %v3104
        %v3106 = vrot.slane %v2896, %v3105
        %v3107 = vmul.f32 %v2889, %v3106
        %v3108 = vmul.f32 %v2894, %v3106
        %v3109 = vmul.f32 %v3106, 0.0
        %v3113 = vrot.slane %v3107, 4
        %v3114 = vrot.slane %v3108, 4
        %v3115 = vsel %vm1686, %v3113, %v3114
        %v3116 = vrot.slane %v3109, 4
        %v3117 = vsel %vm1686, %v3114, %v3116
        %v3120 = vadd.f32 %v3101, %v3115
        %v3121 = vadd.f32 %v3102, %v3117
        %v3122 = vlaneseq
        %v3123 = vshrl.u32 %v3122, 7
        %v3124 = vsub.s32 5, %v3123
        %v3125 = vrot.slane %v2896, %v3124
        %v3126 = vmul.f32 %v2889, %v3125
        %v3127 = vmul.f32 %v2894, %v3125
        %v3128 = vmul.f32 %v3125, 0.0
        %v3132 = vrot.slane %v3126, 5
        %v3133 = vrot.slane %v3127, 5
        %v3134 = vsel %vm1684, %v3132, %v3133
        %v3135 = vrot.slane %v3128, 5
        %v3136 = vsel %vm1684, %v3133, %v3135
        %v3139 = vadd.f32 %v3120, %v3134
        %v3140 = vadd.f32 %v3121, %v3136
        %v3141 = vlaneseq
        %v3142 = vshrl.u32 %v3141, 7
        %v3143 = vsub.s32 6, %v3142
        %v3144 = vrot.slane %v2896, %v3143
        %v3145 = vmul.f32 %v2889, %v3144
        %v3146 = vmul.f32 %v2894, %v3144
        %v3147 = vmul.f32 %v3144, 0.0
        %v3151 = vrot.slane %v3145, 6
        %v3152 = vrot.slane %v3146, 6
        %v3153 = vsel %vm1682, %v3151, %v3152
        %v3154 = vrot.slane %v3147, 6
        %v3155 = vsel %vm1682, %v3152, %v3154
        %v3158 = vadd.f32 %v3139, %v3153
        %v3159 = vadd.f32 %v3140, %v3155
        %v3160 = vld [vmem:[%s43] sm:$0x1]
        %v3162 = vlaneseq
        %v3163 = vshrl.u32 %v3162, 7
        %v3164 = vsub.s32 0, %v3163
        %v3165 = vrot.slane %v3160, %v3164
        %v3167 = vmul.f32 %v3158, %v3165
        %v3168 = vmul.f32 %v3159, %v3165
        %v3169 = vld [vmem:[%s45] sm:$0x1]
        %v3171 = vlaneseq
        %v3172 = vshrl.u32 %v3171, 7
        %v3173 = vsub.s32 0, %v3172
        %v3174 = vrot.slane %v3169, %v3173
        %v3176 = vadd.f32 %v3167, %v3174
        %v3177 = vadd.f32 %v3168, %v3174
        %v3178 = vxor.u32 %v3176, 2147483648
        %v3179 = vxor.u32 %v3177, 2147483648
        %v3180 = vmul.f32 %v3178, 1.442695
        %v3181 = vpow.pop %v3180
        %v3182 = vmul.f32 %v3179, 1.442695
        %v3183 = vpow.pop %v3182
        %v3184 = vadd.f32 %v3181, 1.0
        %v3185 = vadd.f32 %v3183, 1.0
        %v3186 = vrcp.pop %v3184
        %v3187 = vmul.f32 1.0, %v3186
        %v3188 = vrcp.pop %v3185
        %v3189 = vmul.f32 1.0, %v3188
        %v3190 = vmul.f32 %v3176, %v3187
        %v3191 = vmul.f32 %v3177, %v3189
        %v3192 = vpack.c.bf16 %v3191, %v3190
        %v3193 = vld [vmem:[%s47] sm:$0xf]
        %v3194 = vld [vmem:[%s47 + $0x4] sm:$0xf]
        %v3195 = vld [vmem:[%s47 + $0x8] sm:$0xf]
        %v3196 = vld [vmem:[%s47 + $0xc] sm:$0xf]
        %v3197 = vld [vmem:[%s47 + $0x10] sm:$0xf]
        %v3198 = vld [vmem:[%s47 + $0x14] sm:$0xf]
        %v3199 = vld [vmem:[%s47 + $0x18] sm:$0xf]
        %v3200 = vld [vmem:[%s47 + $0x1c] sm:$0xf]
        %v3209 = vunpack.c.l.b16 %v3193
        %v3210 = vunpack.c.l.b16 %v3194
        %v3211 = vunpack.c.l.b16 %v3195
        %v3212 = vunpack.c.l.b16 %v3196
        %v3213 = vunpack.c.l.b16 %v3197
        %v3214 = vunpack.c.l.b16 %v3198
        %v3215 = vunpack.c.l.b16 %v3199
        %v3216 = vunpack.c.l.b16 %v3200
        %v3217 = vpack.c.b16 %v3210, %v3209
        %v3218 = vpack.c.b16 %v3212, %v3211
        %v3219 = vpack.c.b16 %v3214, %v3213
        %v3220 = vpack.c.b16 %v3216, %v3215
        %v3226 = vsel %vm1060, %v3192, 0
        %3228 = vmatprep.subr.bf16.mxu0 0
        %3229 = vmatpush1.bf16.msra.mxu0 %v3217
        %3230 = vmatprep.subr.bf16.mxu0 0
        %3231 = vmatpush1.bf16.msra.mxu0 %v3218
        %3232 = vmatprep.subr.bf16.mxu0 0
        %3233 = vmatpush1.bf16.msra.mxu0 %v3219
        %3234 = vmatprep.subr.bf16.mxu0 0
        %3235 = vmatpush1.bf16.msra.mxu0 %v3220
        %3236 = vmatprep.subr.bf16.mxu0 0
        %3237 = vmatpush1.bf16.msra.mxu0 0
        %3238 = vmatprep.subr.bf16.mxu0 0
        %3239 = vmatpush1.bf16.msra.mxu0 0
        %3240 = vmatprep.subr.bf16.mxu0 0
        %3241 = vmatpush1.bf16.msra.mxu0 0
        %3242 = vmatprep.subr.bf16.mxu0 0
        %3243 = vmatpush1.bf16.msra.mxu0 0
        %3244 = vmatprep.subr.bf16.mxu0 0
        %3245 = vmatpush1.bf16.msra.mxu0 0
        %3246 = vmatprep.subr.bf16.mxu0 0
        %3247 = vmatpush1.bf16.msra.mxu0 0
        %3248 = vmatprep.subr.bf16.mxu0 0
        %3249 = vmatpush1.bf16.msra.mxu0 0
        %3250 = vmatprep.subr.bf16.mxu0 0
        %3251 = vmatpush1.bf16.msra.mxu0 0
        %3252 = vmatprep.subr.bf16.mxu0 0
        %3253 = vmatpush1.bf16.msra.mxu0 0
        %3254 = vmatprep.subr.bf16.mxu0 0
        %3255 = vmatpush1.bf16.msra.mxu0 0
        %3256 = vmatprep.subr.bf16.mxu0 0
        %3257 = vmatpush1.bf16.msra.mxu0 0
        %3258 = vmatprep.subr.bf16.mxu0 0
        %3259 = vmatpush1.bf16.msra.mxu0 0
        %3260 = vmatprep.mubr.bf16.mxu0 0
        %3261 = vmatmul.mubr.bf16.gmra.mrb[0].mxu0 %v3226
        %v3262 = vpop.f32.mrb[0].mxu0
        %v3263 = vadd.f32 0.0, %v3262
        %v3264 = vpop.f32.mrb[0].mxu0
        %v3265 = vpop.f32.mrb[0].mxu0
        %v3266 = vadd.f32 0.0, %v3265
        %v3267 = vpop.f32.mrb[0].mxu0
        %3268 = vdwg.mxu0
        %v3269 = vadd.f32 %v2733, %v3263
        %v3270 = vadd.f32 %v2734, %v3266
        %v3271 = vld [vmem:[%s49] sm:$0x1]
        %v3273 = vlaneseq
        %v3274 = vshrl.u32 %v3273, 7
        %v3275 = vsub.s32 0, %v3274
        %v3276 = vrot.slane %v3271, %v3275
        %v3278 = vadd.f32 %v3269, %v3276
        %v3279 = vadd.f32 %v3270, %v3276
        %v3280 = vld [vmem:[%s51] sm:$0x1]
        %v3281 = vld [vmem:[%s53] sm:$0x1]
        %v3282 = vld [vmem:[%s55] sm:$0xff]
        %v3283 = vld [vmem:[%s55 + $0x8] sm:$0xff]
        %v3284 = vld [vmem:[%s55 + $0x10] sm:$0xff]
        %v3285 = vld [vmem:[%s55 + $0x18] sm:$0xff]
        %v3286 = vld [vmem:[%s55 + $0x20] sm:$0xff]
        %v3287 = vld [vmem:[%s55 + $0x28] sm:$0xff]
        %v3288 = vld [vmem:[%s55 + $0x30] sm:$0xff]
        %v3289 = vld [vmem:[%s55 + $0x38] sm:$0xff]
        %v3290 = vld [vmem:[%s57] sm:$0x3]
        %v3291 = vld [vmem:[%s59] sm:$0xf]
        %v3292 = vld [vmem:[%s59 + $0x4] sm:$0xf]
        %v3293 = vld [vmem:[%s59 + $0x8] sm:$0xf]
        %v3294 = vld [vmem:[%s59 + $0xc] sm:$0xf]
        %v3295 = vld [vmem:[%s59 + $0x10] sm:$0xf]
        %v3296 = vld [vmem:[%s59 + $0x14] sm:$0xf]
        %v3297 = vld [vmem:[%s59 + $0x18] sm:$0xf]
        %v3298 = vld [vmem:[%s59 + $0x1c] sm:$0xf]
        %v3299 = vld [vmem:[%s59 + $0x20] sm:$0xf]
        %v3300 = vld [vmem:[%s59 + $0x24] sm:$0xf]
        %v3301 = vld [vmem:[%s59 + $0x28] sm:$0xf]
        %v3302 = vld [vmem:[%s59 + $0x2c] sm:$0xf]
        %v3303 = vld [vmem:[%s59 + $0x30] sm:$0xf]
        %v3304 = vld [vmem:[%s59 + $0x34] sm:$0xf]
        %v3305 = vld [vmem:[%s59 + $0x38] sm:$0xf]
        %v3306 = vld [vmem:[%s59 + $0x3c] sm:$0xf]
        %v3307 = vld [vmem:[%s59 + $0x40] sm:$0xf]
        %v3308 = vld [vmem:[%s59 + $0x44] sm:$0xf]
        %v3309 = vld [vmem:[%s59 + $0x48] sm:$0xf]
        %v3310 = vld [vmem:[%s59 + $0x4c] sm:$0xf]
        %v3311 = vld [vmem:[%s59 + $0x50] sm:$0xf]
        %v3312 = vld [vmem:[%s59 + $0x54] sm:$0xf]
        %v3313 = vld [vmem:[%s59 + $0x58] sm:$0xf]
        %v3314 = vld [vmem:[%s59 + $0x5c] sm:$0xf]
        %v3315 = vld [vmem:[%s59 + $0x60] sm:$0xf]
        %v3316 = vld [vmem:[%s59 + $0x64] sm:$0xf]
        %v3317 = vld [vmem:[%s59 + $0x68] sm:$0xf]
        %v3318 = vld [vmem:[%s59 + $0x6c] sm:$0xf]
        %v3319 = vld [vmem:[%s59 + $0x70] sm:$0xf]
        %v3320 = vld [vmem:[%s59 + $0x74] sm:$0xf]
        %v3321 = vld [vmem:[%s59 + $0x78] sm:$0xf]
        %v3322 = vld [vmem:[%s59 + $0x7c] sm:$0xf]
        %v3323 = vld [vmem:[%s61] sm:$0x1]
        %v3324 = vsel %vm1060, %v3278, 0.0
        %3325 = vadd.xlane.f32.xlu0 %v3324
        %v3326 = vpop.xlane.xlu0 %3325
        %v3327 = vsel %vm1060, %v3279, 0.0
        %3328 = vadd.xlane.f32.xlu0 %v3327
        %v3329 = vpop.xlane.xlu0 %3328
        %v3330 = vmul.f32 %v3326, %v1067
        %v3331 = vmul.f32 %v3329, %v1067
        %v3332 = vsub.f32 %v3278, %v3330
        %v3333 = vsub.f32 %v3279, %v3331
        %v3334 = vmul.f32 %v3332, %v3332
        %v3335 = vmul.f32 %v3333, %v3333
        %v3336 = vsel %vm1060, %v3334, 0.0
        %3337 = vadd.xlane.f32.xlu0 %v3336
        %v3338 = vpop.xlane.xlu0 %3337
        %v3339 = vsel %vm1060, %v3335, 0.0
        %3340 = vadd.xlane.f32.xlu0 %v3339
        %v3341 = vpop.xlane.xlu0 %3340
        %v3342 = vmul.f32 %v3338, %v1067
        %v3343 = vmul.f32 %v3341, %v1067
        %v3344 = vadd.f32 %v3342, 1e-05
        %v3345 = vadd.f32 %v3343, 1e-05
        %v3346 = vrsqrt.pop %v3344
        %v3347 = vrsqrt.pop %v3345
        %v3348 = vmul.f32 %v3332, %v3346
        %v3349 = vmul.f32 %v3333, %v3347
        %v3351 = vlaneseq
        %v3352 = vshrl.u32 %v3351, 7
        %v3353 = vsub.s32 0, %v3352
        %v3354 = vrot.slane %v3280, %v3353
        %v3356 = vmul.f32 %v3348, %v3354
        %v3357 = vmul.f32 %v3349, %v3354
        %v3359 = vlaneseq
        %v3360 = vshrl.u32 %v3359, 7
        %v3361 = vsub.s32 0, %v3360
        %v3362 = vrot.slane %v3281, %v3361
        %v3364 = vadd.f32 %v3356, %v3362
        %v3365 = vadd.f32 %v3357, %v3362
        %v3366 = vpack.c.bf16 %v3365, %v3364
        %v3368 = vlaneseq
        %v3369 = vshrl.u32 %v3368, 7
        %v3370 = vsub.s32 0, %v3369
        %v3371 = vrot.slane %v3290, %v3370
        %v3372 = vlaneseq
        %v3373 = vshrl.u32 %v3372, 7
        %v3374 = vsub.s32 1, %v3373
        %v3375 = vrot.slane %v3290, %v3374
        %v3386 = vunpack.c.l.b16 %v3282
        %v3387 = vunpack.c.h.b16 %v3282
        %v3388 = vunpack.c.l.b16 %v3283
        %v3389 = vunpack.c.h.b16 %v3283
        %v3390 = vunpack.c.l.b16 %v3284
        %v3391 = vunpack.c.h.b16 %v3284
        %v3392 = vunpack.c.l.b16 %v3285
        %v3393 = vunpack.c.h.b16 %v3285
        %v3394 = vunpack.c.l.b16 %v3286
        %v3395 = vunpack.c.h.b16 %v3286
        %v3396 = vunpack.c.l.b16 %v3287
        %v3397 = vunpack.c.h.b16 %v3287
        %v3398 = vunpack.c.l.b16 %v3288
        %v3399 = vunpack.c.h.b16 %v3288
        %v3400 = vunpack.c.l.b16 %v3289
        %v3401 = vunpack.c.h.b16 %v3289
        %v3402 = vpack.c.b16 %v3388, %v3386
        %v3403 = vpack.c.b16 %v3389, %v3387
        %v3404 = vpack.c.b16 %v3392, %v3390
        %v3405 = vpack.c.b16 %v3393, %v3391
        %v3406 = vpack.c.b16 %v3396, %v3394
        %v3407 = vpack.c.b16 %v3397, %v3395
        %v3408 = vpack.c.b16 %v3400, %v3398
        %v3409 = vpack.c.b16 %v3401, %v3399
        %v3419 = vsel %vm1060, %v3366, 0
        %3421 = vmatprep.subr.bf16.mxu0 %v3403
        %3422 = vmatpush1.bf16.msra.mxu0 %v3402
        %3423 = vmatprep.subr.bf16.mxu0 %v3405
        %3424 = vmatpush1.bf16.msra.mxu0 %v3404
        %3425 = vmatprep.subr.bf16.mxu0 %v3407
        %3426 = vmatpush1.bf16.msra.mxu0 %v3406
        %3427 = vmatprep.subr.bf16.mxu0 %v3409
        %3428 = vmatpush1.bf16.msra.mxu0 %v3408
        %3429 = vmatprep.subr.bf16.mxu0 0
        %3430 = vmatpush1.bf16.msra.mxu0 0
        %3431 = vmatprep.subr.bf16.mxu0 0
        %3432 = vmatpush1.bf16.msra.mxu0 0
        %3433 = vmatprep.subr.bf16.mxu0 0
        %3434 = vmatpush1.bf16.msra.mxu0 0
        %3435 = vmatprep.subr.bf16.mxu0 0
        %3436 = vmatpush1.bf16.msra.mxu0 0
        %3437 = vmatprep.subr.bf16.mxu0 0
        %3438 = vmatpush1.bf16.msra.mxu0 0
        %3439 = vmatprep.subr.bf16.mxu0 0
        %3440 = vmatpush1.bf16.msra.mxu0 0
        %3441 = vmatprep.subr.bf16.mxu0 0
        %3442 = vmatpush1.bf16.msra.mxu0 0
        %3443 = vmatprep.subr.bf16.mxu0 0
        %3444 = vmatpush1.bf16.msra.mxu0 0
        %3445 = vmatprep.subr.bf16.mxu0 0
        %3446 = vmatpush1.bf16.msra.mxu0 0
        %3447 = vmatprep.subr.bf16.mxu0 0
        %3448 = vmatpush1.bf16.msra.mxu0 0
        %3449 = vmatprep.subr.bf16.mxu0 0
        %3450 = vmatpush1.bf16.msra.mxu0 0
        %3451 = vmatprep.subr.bf16.mxu0 0
        %3452 = vmatpush1.bf16.msra.mxu0 0
        %3453 = vmatprep.mubr.bf16.mxu0 0
        %3454 = vmatmul.mubr.bf16.gmra.mrb[0].mxu0 %v3419
        %v3455 = vpop.f32.mrb[0].mxu0
        %v3456 = vadd.f32 %v3371, %v3455
        %v3457 = vpop.f32.mrb[0].mxu0
        %v3458 = vadd.f32 %v3375, %v3457
        %v3459 = vpop.f32.mrb[0].mxu0
        %v3460 = vadd.f32 %v3371, %v3459
        %v3461 = vpop.f32.mrb[0].mxu0
        %v3462 = vadd.f32 %v3375, %v3461
        %3463 = vdwg.mxu0
        %v3464 = vxor.u32 %v3456, 2147483648
        %v3465 = vxor.u32 %v3458, 2147483648
        %v3466 = vxor.u32 %v3460, 2147483648
        %v3467 = vxor.u32 %v3462, 2147483648
        %v3468 = vmul.f32 %v3464, 1.442695
        %v3469 = vpow.pop %v3468
        %v3470 = vmul.f32 %v3465, 1.442695
        %v3471 = vpow.pop %v3470
        %v3472 = vmul.f32 %v3466, 1.442695
        %v3473 = vpow.pop %v3472
        %v3474 = vmul.f32 %v3467, 1.442695
        %v3475 = vpow.pop %v3474
        %v3476 = vadd.f32 %v3469, 1.0
        %v3477 = vadd.f32 %v3471, 1.0
        %v3478 = vadd.f32 %v3473, 1.0
        %v3479 = vadd.f32 %v3475, 1.0
        %v3480 = vrcp.pop %v3476
        %v3481 = vmul.f32 1.0, %v3480
        %v3482 = vrcp.pop %v3477
        %v3483 = vmul.f32 1.0, %v3482
        %v3484 = vrcp.pop %v3478
        %v3485 = vmul.f32 1.0, %v3484
        %v3486 = vrcp.pop %v3479
        %v3487 = vmul.f32 1.0, %v3486
        %v3488 = vmul.f32 %v3456, %v3481
        %v3489 = vmul.f32 %v3458, %v3483
        %v3490 = vmul.f32 %v3460, %v3485
        %v3491 = vmul.f32 %v3462, %v3487
        %v3492 = vpack.c.bf16 %v3490, %v3488
        %v3493 = vpack.c.bf16 %v3491, %v3489
        %v3495 = vlaneseq
        %v3496 = vshrl.u32 %v3495, 7
        %v3497 = vsub.s32 0, %v3496
        %v3498 = vrot.slane %v3323, %v3497
        %v3532 = vunpack.c.l.b16 %v3291
        %v3533 = vunpack.c.l.b16 %v3292
        %v3534 = vunpack.c.l.b16 %v3293
        %v3535 = vunpack.c.l.b16 %v3294
        %v3536 = vunpack.c.l.b16 %v3295
        %v3537 = vunpack.c.l.b16 %v3296
        %v3538 = vunpack.c.l.b16 %v3297
        %v3539 = vunpack.c.l.b16 %v3298
        %v3540 = vunpack.c.l.b16 %v3299
        %v3541 = vunpack.c.l.b16 %v3300
        %v3542 = vunpack.c.l.b16 %v3301
        %v3543 = vunpack.c.l.b16 %v3302
        %v3544 = vunpack.c.l.b16 %v3303
        %v3545 = vunpack.c.l.b16 %v3304
        %v3546 = vunpack.c.l.b16 %v3305
        %v3547 = vunpack.c.l.b16 %v3306
        %v3548 = vunpack.c.l.b16 %v3307
        %v3549 = vunpack.c.l.b16 %v3308
        %v3550 = vunpack.c.l.b16 %v3309
        %v3551 = vunpack.c.l.b16 %v3310
        %v3552 = vunpack.c.l.b16 %v3311
        %v3553 = vunpack.c.l.b16 %v3312
        %v3554 = vunpack.c.l.b16 %v3313
        %v3555 = vunpack.c.l.b16 %v3314
        %v3556 = vunpack.c.l.b16 %v3315
        %v3557 = vunpack.c.l.b16 %v3316
        %v3558 = vunpack.c.l.b16 %v3317
        %v3559 = vunpack.c.l.b16 %v3318
        %v3560 = vunpack.c.l.b16 %v3319
        %v3561 = vunpack.c.l.b16 %v3320
        %v3562 = vunpack.c.l.b16 %v3321
        %v3563 = vunpack.c.l.b16 %v3322
        %v3564 = vpack.c.b16 %v3533, %v3532
        %v3565 = vpack.c.b16 %v3535, %v3534
        %v3566 = vpack.c.b16 %v3537, %v3536
        %v3567 = vpack.c.b16 %v3539, %v3538
        %v3568 = vpack.c.b16 %v3541, %v3540
        %v3569 = vpack.c.b16 %v3543, %v3542
        %v3570 = vpack.c.b16 %v3545, %v3544
        %v3571 = vpack.c.b16 %v3547, %v3546
        %v3572 = vpack.c.b16 %v3549, %v3548
        %v3573 = vpack.c.b16 %v3551, %v3550
        %v3574 = vpack.c.b16 %v3553, %v3552
        %v3575 = vpack.c.b16 %v3555, %v3554
        %v3576 = vpack.c.b16 %v3557, %v3556
        %v3577 = vpack.c.b16 %v3559, %v3558
        %v3578 = vpack.c.b16 %v3561, %v3560
        %v3579 = vpack.c.b16 %v3563, %v3562
        %3596 = vmatprep.subr.bf16.mxu0 0
        %3597 = vmatpush1.bf16.msra.mxu0 %v3564
        %3598 = vmatprep.subr.bf16.mxu0 0
        %3599 = vmatpush1.bf16.msra.mxu0 %v3565
        %3600 = vmatprep.subr.bf16.mxu0 0
        %3601 = vmatpush1.bf16.msra.mxu0 %v3566
        %3602 = vmatprep.subr.bf16.mxu0 0
        %3603 = vmatpush1.bf16.msra.mxu0 %v3567
        %3604 = vmatprep.subr.bf16.mxu0 0
        %3605 = vmatpush1.bf16.msra.mxu0 %v3568
        %3606 = vmatprep.subr.bf16.mxu0 0
        %3607 = vmatpush1.bf16.msra.mxu0 %v3569
        %3608 = vmatprep.subr.bf16.mxu0 0
        %3609 = vmatpush1.bf16.msra.mxu0 %v3570
        %3610 = vmatprep.subr.bf16.mxu0 0
        %3611 = vmatpush1.bf16.msra.mxu0 %v3571
        %3612 = vmatprep.subr.bf16.mxu0 0
        %3613 = vmatpush1.bf16.msra.mxu0 %v3572
        %3614 = vmatprep.subr.bf16.mxu0 0
        %3615 = vmatpush1.bf16.msra.mxu0 %v3573
        %3616 = vmatprep.subr.bf16.mxu0 0
        %3617 = vmatpush1.bf16.msra.mxu0 %v3574
        %3618 = vmatprep.subr.bf16.mxu0 0
        %3619 = vmatpush1.bf16.msra.mxu0 %v3575
        %3620 = vmatprep.subr.bf16.mxu0 0
        %3621 = vmatpush1.bf16.msra.mxu0 %v3576
        %3622 = vmatprep.subr.bf16.mxu0 0
        %3623 = vmatpush1.bf16.msra.mxu0 %v3577
        %3624 = vmatprep.subr.bf16.mxu0 0
        %3625 = vmatpush1.bf16.msra.mxu0 %v3578
        %3626 = vmatprep.subr.bf16.mxu0 0
        %3627 = vmatpush1.bf16.msra.mxu0 %v3579
        %3628 = vmatprep.mubr.bf16.mxu0 %v3493
        %3629 = vmatmul.mubr.bf16.gmra.mrb[0].mxu0 %v3492
        %v3630 = vpop.f32.mrb[0].mxu0
        %v3631 = vadd.f32 %v3498, %v3630
        %v3632 = vpop.f32.mrb[0].mxu0
        %v3633 = vpop.f32.mrb[0].mxu0
        %v3634 = vadd.f32 %v3498, %v3633
        %v3635 = vpop.f32.mrb[0].mxu0
        %3636 = vdwg.mxu0
        %v3637 = vmul.f32 %v3631, 0.5
        %v3638 = vmul.f32 %v3634, 0.5
        %v3639 = vadd.f32 %v3278, %v3637
        %v3640 = vadd.f32 %v3279, %v3638
        %v3641 = vld [vmem:[%s63] sm:$0x1]
        %v3642 = vld [vmem:[%s65] sm:$0x1]
        %v3643 = vsel %vm1060, %v3639, 0.0
        %3644 = vadd.xlane.f32.xlu0 %v3643
        %v3645 = vpop.xlane.xlu0 %3644
        %v3646 = vsel %vm1060, %v3640, 0.0
        %3647 = vadd.xlane.f32.xlu0 %v3646
        %v3648 = vpop.xlane.xlu0 %3647
        %v3649 = vmul.f32 %v3645, %v1067
        %v3650 = vmul.f32 %v3648, %v1067
        %v3651 = vsub.f32 %v3639, %v3649
        %v3652 = vsub.f32 %v3640, %v3650
        %v3653 = vmul.f32 %v3651, %v3651
        %v3654 = vmul.f32 %v3652, %v3652
        %v3655 = vsel %vm1060, %v3653, 0.0
        %3656 = vadd.xlane.f32.xlu0 %v3655
        %v3657 = vpop.xlane.xlu0 %3656
        %v3658 = vsel %vm1060, %v3654, 0.0
        %3659 = vadd.xlane.f32.xlu0 %v3658
        %v3660 = vpop.xlane.xlu0 %3659
        %v3661 = vmul.f32 %v3657, %v1067
        %v3662 = vmul.f32 %v3660, %v1067
        %v3663 = vadd.f32 %v3661, 1e-05
        %v3664 = vadd.f32 %v3662, 1e-05
        %v3665 = vrsqrt.pop %v3663
        %v3666 = vrsqrt.pop %v3664
        %v3667 = vmul.f32 %v3651, %v3665
        %v3668 = vmul.f32 %v3652, %v3666
        %v3670 = vlaneseq
        %v3671 = vshrl.u32 %v3670, 7
        %v3672 = vsub.s32 0, %v3671
        %v3673 = vrot.slane %v3641, %v3672
        %v3675 = vmul.f32 %v3667, %v3673
        %v3676 = vmul.f32 %v3668, %v3673
        %v3678 = vlaneseq
        %v3679 = vshrl.u32 %v3678, 7
        %v3680 = vsub.s32 0, %v3679
        %v3681 = vrot.slane %v3642, %v3680
        %v3683 = vadd.f32 %v3675, %v3681
        %v3684 = vadd.f32 %v3676, %v3681
        %3685 = vst.msk [vmem:[%s1007] sm:$0xff] %vm1060, %v3683
        %3686 = vst.msk [vmem:[%s1007 + $0x8] sm:$0xff] %vm1060, %v3684
        %s3687 = sand.u32 %s787, 1
        %s3688 = scalar_lea.sflag [#allocation3], %s3687
        %s3689 = sand.u32 %s787, 1
        %s3690 = smul.addr %s3689, 16
        %s3691 = scalar_lea.vmem [#allocation2], %s3690
        // Predicated region
        $region153: #{conformer_block_forward.1} parent=151 // pred_check
          %p3692 = pneg %p797
        $region154: #{conformer_block_forward.1} parent=151 // pred_check_branch
          %3694 = sbr.rel (%p3692) target = $region156
        $region155: #{conformer_block_forward.1} parent=151 // pred_region
          %s3696 = ssub.s32 256, 256
          %3697 = vsyncadd %s3688, %s3696
          %s3698 = smul.addr %s81, 2
          %s3699 = smul.addr %s3698, 128
          %s3700 = scalar_lea.hbm %s67, %s3699
          %s3701 = sshll.u32 %s3691, 4
          %s3702 = int_to_ptr.vmem [resolvable:$true] %s3701
          %3707 = dma.vmem_to_hbm [thread:$0]  %s3702, 256, %s3700, %s3688, 128, 128, 8
        $region156: #{conformer_block_forward.1} parent=151 // pred_fallthru
          _
      $region152: #{conformer_block_forward.1} parent=5 // pred_fallthru
        _
      %p3708 = scmp.le.s32.totalorder 2, %s76
      // Predicated region
      $region157: #{conformer_block_forward.1} parent=5 // pred_check
        %p3709 = pneg %p3708
      $region158: #{conformer_block_forward.1} parent=5 // pred_check_branch
        %3711 = sbr.rel (%p3709) target = $region160
      $region159: #{conformer_block_forward.1} parent=5 // pred_region
        %s3712 = ssub.s32 %s76, 2
        // Predicated region
        $region161: #{conformer_block_forward.1} parent=159 // pred_check
          %p3713 = pneg %p803
        $region162: #{conformer_block_forward.1} parent=159 // pred_check_branch
          %3715 = sbr.rel (%p3713) target = $region164
        $region163: #{conformer_block_forward.1} parent=159 // pred_region
          %s3716 = sand.u32 %s788, 1
          %s3717 = scalar_lea.sflag [#allocation3], %s3716
          %s3718 = sand.u32 %s788, 1
          %s3719 = smul.addr %s3718, 16
          %s3720 = scalar_lea.vmem [#allocation2], %s3719
          %3721 = dma.done %s3717, 256
        $region164: #{conformer_block_forward.1} parent=159 // pred_fallthru
          _
      $region160: #{conformer_block_forward.1} parent=5 // pred_fallthru
        _
    $region6: #{conformer_block_forward.1} parent=1 // loop_footer
      %s80 = sadd.s32 1, %s76
    $region7: #{conformer_block_forward.1} parent=1 // loop_footer_branch
      %75 = sbr.rel target = $region3
    $region8: #{conformer_block_forward.1} parent=1 // loop_exit
      _
    %3722 = vsyncpa [#allocation3], 1
    %s3723 = scalar_lea.sflag [#allocation3], 1
    %3724 = vsyncpa %s3723, 1

</llo_original>
